<compile_context>
chip_gen: v5e
topology: v5e:2x2
jax: 0.10.0
libtpu: 0.0.40
codegen_flags: <defaults>
</compile_context>

<pallas_src>
import math

import jax
import jax.numpy as jnp
from jax import lax
from jax.experimental import pallas as pl
from jax.experimental.pallas import tpu as pltpu

EPS = 1e-6      # module eps
LN_EPS = 1e-5   # nn.LayerNorm default eps


# ---------------------------------------------------------------------------
# Fused kernel: adjacency + LN + TransformerConv + residual + LN2  (grid over B)
# ---------------------------------------------------------------------------
def _make_gacet_kernel(S, N, F, H):
    HBP = 128               # per-head weight block width (lane aligned)
    SKIP_OFF = H * HBP      # start of the lin_skip columns in the slab
    inv_sqrt_f = 1.0 / math.sqrt(F)
    inv_nf = 1.0 / (N * F)
    inv_h = 1.0 / H

    def kernel(scalars_ref,   # SMEM f32[4]: [tau, |beta|, theta, alpha]
               z_ref,         # (1, N, L)       latent node positions (this batch)
               geom_ref,      # (N, N)          precomputed geometric cdist (shared)
               u_ref,         # (1, N, N)       uniform noise in [0, 1)
               nf_ref,        # (1, S*N, F)     raw node features, row = s*N + n
               w_ref,         # (F, H*128 + F)  per-head blocks [Wq|Wk|Wv|Wq@we|pad], then Wskip
               b_ref,         # (1, H*128 + F)  matching biases
               we_ref,        # (1, H*F)        lin_edge weights (edge_dim=1, no bias)
               ln1_ref,       # (2, F)          [gamma1; beta1]   LayerNorm(feat_dim)
               ln2_ref,       # (2, N, F)       [gamma2; beta2]   LayerNorm(N*F), reshaped
               out_ref):      # (1, S*N, F)     dense output block (flattened in wrapper)
        tau = scalars_ref[0]
        beta_abs = scalars_ref[1]
        theta = scalars_ref[2]
        alpha = scalars_ref[3]

        # ------------------- dynamic adjacency (once per batch) -------------------
        z = z_ref[0]                                           # [N, L]
        dz = z[:, None, :] - z[None, :, :]
        latent_dist = jnp.sqrt(jnp.sum(dz * dz, axis=-1))      # [N, N]  (exact-zero diag)
        logits = -(latent_dist + beta_abs * geom_ref[...])
        gumbel = -jnp.log(-jnp.log(u_ref[0] + EPS) + EPS)
        y = (logits + gumbel) / (tau + EPS)
        y = y - jnp.max(y, axis=-1, keepdims=True)
        ey = jnp.exp(y)
        soft_adj = ey / jnp.sum(ey, axis=-1, keepdims=True)

        gate_prob = jax.nn.sigmoid(alpha * (soft_adj - theta))
        # straight-through estimator: forward value == hard_adj exactly
        hard_adj = (gate_prob > 0.5).astype(jnp.float32)

        rows = lax.broadcasted_iota(jnp.int32, (N, N), 0)
        cols = lax.broadcasted_iota(jnp.int32, (N, N), 1)
        eye_b = rows == cols
        eye_f = eye_b.astype(jnp.float32)
        # hard_adj.T via one-hot matmul (tiny; avoids sub-tile transpose lowering)
        hard_t = lax.dot_general(eye_f, hard_adj, (((1,), (1,)), ((), ())),
                                 preferred_element_type=jnp.float32)
        adj_sym = 0.5 * (hard_adj + hard_t)
        adj = jnp.where(eye_b, soft_adj, adj_sym)              # diagonal <- diag(soft_adj)

        deg_r = jnp.maximum(jnp.sum(adj, axis=1, keepdims=True), EPS)   # [N, 1]
        deg_c = jnp.maximum(jnp.sum(adj, axis=0, keepdims=True), EPS)   # [1, N] (symmetric)
        A = lax.rsqrt(deg_r) * adj * lax.rsqrt(deg_c)          # normalized, symmetric
        Ab = A[None]                                           # [1, N, N]
        # Additive softmax mask, shared by all heads.  Diagonal is a softmax value
        # (> 0), so no target row is fully masked; relies (like the reference) on
        # non-edges of the normalized adjacency being exactly 0.0.
        neg_mask = jnp.where(Ab != 0.0, 0.0, -1e30)            # [1, N, N]

        # -------------- LayerNorm(feat_dim), batched over all S*N rows ------------
        x0 = nf_ref[0]                                         # [S*N, F]
        mu = jnp.mean(x0, axis=-1, keepdims=True)
        xc = x0 - mu
        var = jnp.mean(xc * xc, axis=-1, keepdims=True)
        xn = xc * lax.rsqrt(var + LN_EPS) * ln1_ref[0:1, :] + ln1_ref[1:2, :]

        # ------------ dense masked multi-head attention (per-head matmul) ---------
        # TODO(synk): attention dropout (p=dropout) omitted -> eval-mode semantics.
        acc = jnp.zeros((S, N, F), dtype=jnp.float32)
        for h in range(H):
            base = h * HBP
            # q | k | v | (q . we) for this head in one 128-lane-aligned matmul
            qkv = jnp.dot(xn, w_ref[:, base:base + HBP],
                          preferred_element_type=jnp.float32) + b_ref[:, base:base + HBP]
            qkv3 = qkv.reshape(S, N, HBP)                      # leading-dim split only
            qh = qkv3[..., 0:F]                                # [S, N, F]
            kh = qkv3[..., F:2 * F]
            vh = qkv3[..., 2 * F:3 * F]
            qe = qkv3[..., 3 * F:3 * F + 1]                    # [S, N, 1]  (= q_h . we_h)
            we_h = we_ref[0:1, h * F:(h + 1) * F][None]        # [1, 1, F]

            # score[s, i, j] = q_si . (k_sj + A[i, j] * We_h) / sqrt(F)   (A symmetric)
            qk = jnp.einsum('snd,smd->snm', qh, kh,
                            preferred_element_type=jnp.float32)            # [S, N, N]
            score = (qk + Ab * qe) * inv_sqrt_f + neg_mask
            score = score - jnp.max(score, axis=-1, keepdims=True)
            p = jnp.exp(score)                                 # masked entries underflow to 0
            attn = p / jnp.sum(p, axis=-1, keepdims=True)

            # out_si = sum_j attn[s,i,j] * (v_sj + A[i,j] * We_h)
            out_h = jnp.einsum('snm,smd->snd', attn, vh,
                               preferred_element_type=jnp.float32)
            out_h = out_h + jnp.sum(attn * Ab, axis=-1, keepdims=True) * we_h
            acc = acc + out_h

        skip = jnp.dot(xn, w_ref[:, SKIP_OFF:SKIP_OFF + F],
                       preferred_element_type=jnp.float32) + b_ref[:, SKIP_OFF:SKIP_OFF + F]
        conv = acc * inv_h + skip.reshape(S, N, F)             # concat=False -> head mean
        res = x0.reshape(S, N, F) + conv                       # residual with raw features

        # ---------------- LayerNorm over the flattened N*F dim (per s) ------------
        s1 = jnp.sum(res, axis=-1, keepdims=True)              # [S, N, 1]
        mu2 = jnp.sum(s1, axis=1, keepdims=True) * inv_nf      # [S, 1, 1]
        rc = res - mu2
        s2 = jnp.sum(rc * rc, axis=-1, keepdims=True)
        var2 = jnp.sum(s2, axis=1, keepdims=True) * inv_nf
        o3 = rc * lax.rsqrt(var2 + LN_EPS) * ln2_ref[0][None] + ln2_ref[1][None]

        # Single dense block store; (B, S*N, F) -> (B, S, N*F) is a free reshape
        # in the wrapper (byte-identical contiguous layout).
        out_ref[0] = o3.reshape(S * N, F)

    return kernel


def dynamic_graph_forward(node_feats, z, geom, u, tau, beta_abs, theta, alpha, p):
    B, S, N, F = node_feats.shape
    H = p["wq"].shape[0]
    HF = H * F
    L = z.shape[-1]
    HBP = 128

    scalars = jnp.stack([tau, beta_abs, theta, alpha]).astype(jnp.float32)

    # per-head 128-lane weight blocks: [Wq_h | Wk_h | Wv_h | Wq_h @ we_h | pad], then lin_skip
    blocks, bias_blocks = [], []
    for h in range(H):
        wqe = jnp.dot(p["wq"][h], p["we"][h].reshape(F))                   # [F]
        blk = jnp.concatenate(
            [p["wq"][h], p["wk"][h], p["wv"][h], wqe[:, None],
             jnp.zeros((F, HBP - 3 * F - 1), jnp.float32)], axis=1)        # (F, 128)
        blocks.append(blk)
        bqe = jnp.sum(p["bq"][h] * p["we"][h])
        bblk = jnp.concatenate(
            [p["bq"][h].reshape(1, F), p["bk"][h].reshape(1, F),
             p["bv"][h].reshape(1, F), bqe.reshape(1, 1),
             jnp.zeros((1, HBP - 3 * F - 1), jnp.float32)], axis=1)        # (1, 128)
        bias_blocks.append(bblk)
    w_slab = jnp.concatenate(blocks + [p["ws"]], axis=1)                   # (F, H*128 + F)
    b_slab = jnp.concatenate(bias_blocks + [p["bs"]], axis=1)              # (1, H*128 + F)
    we_slab = p["we"].reshape(1, HF)                                       # (1, HF)
    ln1 = jnp.concatenate([p["g1"], p["b1"]], axis=0)                      # (2, F)
    ln2 = jnp.stack([p["g2"], p["b2"]], axis=0)                            # (2, N, F)

    W = H * HBP + F
    kernel = _make_gacet_kernel(S, N, F, H)
    out = pl.pallas_call(
        kernel,
        out_shape=jax.ShapeDtypeStruct((B, S * N, F), jnp.float32),
        grid=(B,),
        in_specs=[
            pl.BlockSpec(memory_space=pltpu.MemorySpace.SMEM),
            pl.BlockSpec((1, N, L), lambda b: (b, 0, 0)),
            pl.BlockSpec((N, N), lambda b: (0, 0)),
            pl.BlockSpec((1, N, N), lambda b: (b, 0, 0)),
            pl.BlockSpec((1, S * N, F), lambda b: (b, 0, 0)),
            pl.BlockSpec((F, W), lambda b: (0, 0)),
            pl.BlockSpec((1, W), lambda b: (0, 0)),
            pl.BlockSpec((1, HF), lambda b: (0, 0)),
            pl.BlockSpec((2, F), lambda b: (0, 0)),
            pl.BlockSpec((2, N, F), lambda b: (0, 0, 0)),
        ],
        out_specs=pl.BlockSpec((1, S * N, F), lambda b: (b, 0, 0)),
        compiler_params=pltpu.CompilerParams(dimension_semantics=("parallel",)),
    )(scalars,
      z.astype(jnp.float32),
      geom.astype(jnp.float32),
      u.astype(jnp.float32),
      node_feats.astype(jnp.float32).reshape(B, S * N, F),
      w_slab.astype(jnp.float32), b_slab.astype(jnp.float32), we_slab.astype(jnp.float32),
      ln1.astype(jnp.float32), ln2.astype(jnp.float32))
    # contiguous, copy-free flatten to the module's (B, S, N*F) return layout
    return out.reshape(B, S, N * F)


# ---------------------------------------------------------------------------
# Plain-JAX glue (parameter setup, buffers, tiny projections)
# ---------------------------------------------------------------------------
def init_params(key, n_nodes, coord_dim, base_dim, feat_dim, latent_dim, heads):
    ks = iter(jax.random.split(key, 20))

    def uni(k, shape, fan_in):
        b = 1.0 / math.sqrt(fan_in)
        return jax.random.uniform(k, shape, jnp.float32, -b, b)

    p = {}
    p["wp"] = uni(next(ks), (coord_dim, latent_dim), coord_dim)            # pos_proj (no bias)
    p["w1"] = uni(next(ks), (base_dim, 2 * base_dim), base_dim)            # delta_mlp
    p["b1m"] = uni(next(ks), (2 * base_dim,), base_dim)
    p["w2"] = uni(next(ks), (2 * base_dim, n_nodes * latent_dim), 2 * base_dim)
    p["b2m"] = uni(next(ks), (n_nodes * latent_dim,), 2 * base_dim)
    p["log_tau"] = jnp.array(math.log(1.0), jnp.float32)                   # initial_tau = 1.0
    p["min_tau"] = 0.01
    p["logit_theta"] = jnp.array(0.0, jnp.float32)
    p["logit_alpha"] = jnp.array(-2.0, jnp.float32)
    p["raw_beta"] = jnp.array(1.0, jnp.float32)
    # TransformerConv(feat_dim, feat_dim, heads, edge_dim=1, concat=False), per-head layout
    p["wq"] = uni(next(ks), (heads, feat_dim, feat_dim), feat_dim)
    p["bq"] = uni(next(ks), (heads, 1, feat_dim), feat_dim)
    p["wk"] = uni(next(ks), (heads, feat_dim, feat_dim), feat_dim)
    p["bk"] = uni(next(ks), (heads, 1, feat_dim), feat_dim)
    p["wv"] = uni(next(ks), (heads, feat_dim, feat_dim), feat_dim)
    p["bv"] = uni(next(ks), (heads, 1, feat_dim), feat_dim)
    p["we"] = uni(next(ks), (heads, 1, feat_dim), 1)                       # lin_edge (no bias)
    p["ws"] = uni(next(ks), (feat_dim, feat_dim), feat_dim)                # lin_skip
    p["bs"] = uni(next(ks), (1, feat_dim), feat_dim)
    p["g1"] = jnp.ones((1, feat_dim), jnp.float32)                         # norm
    p["b1"] = jnp.zeros((1, feat_dim), jnp.float32)
    p["g2"] = jnp.ones((n_nodes, feat_dim), jnp.float32)                   # norm2 (reshaped N*F)
    p["b2"] = jnp.zeros((n_nodes, feat_dim), jnp.float32)
    return p


def prepare_graph_inputs(pooled, pos, p, n_nodes):
    """Buffer + tiny projections kept as glue (pos_proj, delta_mlp, geometric cdist)."""
    hp = lax.Precision.HIGHEST
    B = pooled.shape[0]
    pos_c = pos - jnp.mean(pos, axis=0, keepdims=True)
    pos_n = pos_c / jnp.maximum(jnp.linalg.norm(pos_c, axis=1, keepdims=True), 1e-12)
    pos_emb = jnp.dot(pos_n, p["wp"], precision=hp)                        # [N, L]
    # geometric cdist depends only on pos -> hoisted out of the kernel, computed once
    dp = pos_emb[:, None, :] - pos_emb[None, :, :]
    geom = jnp.sqrt(jnp.sum(dp * dp, axis=-1))                             # [N, N]
    # TODO(synk): delta_mlp stays in plain JAX so the exact erf-GELU (nn.GELU default)
    #             is preserved; erf is not guaranteed to lower in Mosaic.
    h = jnp.dot(pooled, p["w1"], precision=hp) + p["b1m"]
    h = jax.nn.gelu(h, approximate=False)
    delta = jnp.dot(h, p["w2"], precision=hp) + p["b2m"]
    z = pos_emb[None] + delta.reshape(B, n_nodes, -1)
    tau = jnp.maximum(jnp.exp(p["log_tau"]), p["min_tau"])
    beta_abs = jnp.abs(p["raw_beta"])
    theta = jax.nn.sigmoid(p["logit_theta"])
    alpha = jax.nn.sigmoid(p["logit_alpha"]) * 10.0
    return pos_emb, z, geom, tau, beta_abs, theta, alpha


# ---------------------------------------------------------------------------
# Pure-JAX reference (mirrors the PyTorch forward) for self-checking
# ---------------------------------------------------------------------------
def reference_forward(node_feats, z, pos_emb, u, tau, beta_abs, theta, alpha, p):
    hp = lax.Precision.HIGHEST
    B, S, N, F = node_feats.shape

    def cdist(a, b):
        d = a[..., :, None, :] - b[..., None, :, :]
        return jnp.sqrt(jnp.sum(d * d, axis=-1))

    latent = cdist(z, z)
    geom = jnp.broadcast_to(cdist(pos_emb[None], pos_emb[None]), (B, N, N))
    logits = -(latent + beta_abs * geom)
    gum = -jnp.log(-jnp.log(u + EPS) + EPS)
    y = (logits + gum) / (tau + EPS)
    soft = jax.nn.softmax(y, axis=-1)
    gate = jax.nn.sigmoid(alpha * (soft - theta))
    hard = (gate > 0.5).astype(jnp.float32)
    adj_sym = 0.5 * (hard + jnp.swapaxes(hard, -1, -2))
    eye = jnp.eye(N, dtype=bool)
    adj = jnp.where(eye[None], soft, adj_sym)
    deg = jnp.clip(jnp.sum(adj, -1, keepdims=True), EPS, None)
    dinv = deg ** -0.5
    adj_n = dinv * adj * jnp.swapaxes(dinv, -1, -2)

    mu = node_feats.mean(-1, keepdims=True)
    var = ((node_feats - mu) ** 2).mean(-1, keepdims=True)
    xn = (node_feats - mu) / jnp.sqrt(var + LN_EPS) * p["g1"][0] + p["b1"][0]

    H = p["wq"].shape[0]
    out = jnp.zeros((B, S, N, F), jnp.float32)
    for b in range(B):
        At = adj_n[b].T                    # At[i, j] = weight of edge j -> i
        mask = At != 0.0
        for s in range(S):
            x = xn[b, s]
            acc = jnp.zeros((N, F), jnp.float32)
            for h in range(H):
                q = jnp.dot(x, p["wq"][h], precision=hp) + p["bq"][h]
                k = jnp.dot(x, p["wk"][h], precision=hp) + p["bk"][h]
                v = jnp.dot(x, p["wv"][h], precision=hp) + p["bv"][h]
                we = p["we"][h]
                qk = jnp.dot(q, k.T, precision=hp)
                qe = jnp.sum(q * we, -1, keepdims=True)
                scores = (qk + At * qe) / math.sqrt(F)
                scores = jnp.where(mask, scores, -jnp.inf)
                attn = jnp.where(mask, jax.nn.softmax(scores, axis=-1), 0.0)
                out_h = jnp.dot(attn, v, precision=hp) \
                    + jnp.sum(attn * At, -1, keepdims=True) * we
                acc = acc + out_h
            conv = acc / H + jnp.dot(x, p["ws"], precision=hp) + p["bs"]
            out = out.at[b, s].set(conv)
    res = node_feats + out
    resf = res.reshape(B, S, N * F)
    mu2 = resf.mean(-1, keepdims=True)
    var2 = ((resf - mu2) ** 2).mean(-1, keepdims=True)
    return (resf - mu2) / jnp.sqrt(var2 + LN_EPS) * p["g2"].reshape(-1) + p["b2"].reshape(-1)


# ---------------------------------------------------------------------------
if __name__ == "__main__":
    B, S, N, F = 2, 8, 8, 32           # batch, seq, n_nodes, feat_dim
    COORD, L, H = 3, 16, 4             # coord_dim, latent_dim, heads
    BASE = N * F                       # LayerNorm(base_dim) over flattened (N, F) requires this

    key = jax.random.PRNGKey(0)
    k_pos, k_pool, k_feat, k_noise, k_par = jax.random.split(key, 5)
    pos = jax.random.normal(k_pos, (N, COORD), jnp.float32)
    pooled = jax.random.normal(k_pool, (B, BASE), jnp.float32)
    node_feats = jax.random.normal(k_feat, (B, S, N, F), jnp.float32)
    u = jax.random.uniform(k_noise, (B, N, N), jnp.float32)   # torch.rand_like equivalent
    params = init_params(k_par, N, COORD, BASE, F, L, H)

    pos_emb, z, geom, tau, beta_abs, theta, alpha = prepare_graph_inputs(pooled, pos, params, N)

    out = dynamic_graph_forward(node_feats, z, geom, u, tau, beta_abs, theta, alpha, params)
    out = jax.block_until_ready(out)

    assert out.shape == (B, S, N * F)
    assert bool(jnp.all(jnp.isfinite(out)))

    ref = reference_forward(node_feats, z, pos_emb, u, tau, beta_abs, theta, alpha, params)
    err = float(jnp.max(jnp.abs(out - ref)))
    assert err < 5e-3, f"mismatch vs reference: {err}"

    print("KERNEL_OK")
</pallas_src>

<mosaic_0001>
module attributes {stable_mosaic.version = 11 : i64} {
  func.func @kernel(%arg0: i32, %arg1: memref<4xf32, #tpu.memory_space<smem>>, %arg2: memref<1x8x16xf32, #tpu.memory_space<vmem>>, %arg3: memref<8x8xf32, #tpu.memory_space<vmem>>, %arg4: memref<1x8x8xf32, #tpu.memory_space<vmem>>, %arg5: memref<1x64x32xf32, #tpu.memory_space<vmem>>, %arg6: memref<32x544xf32, #tpu.memory_space<vmem>>, %arg7: memref<1x544xf32, #tpu.memory_space<vmem>>, %arg8: memref<1x128xf32, #tpu.memory_space<vmem>>, %arg9: memref<2x32xf32, #tpu.memory_space<vmem>>, %arg10: memref<2x8x32xf32, #tpu.memory_space<vmem>>, %arg11: memref<1x64x32xf32, #tpu.memory_space<vmem>>) attributes {dimension_semantics = [#tpu.dimension_semantics<parallel>], iteration_bounds = array<i64: 2>, scalar_prefetch = 0 : i64, scratch_operands = 0 : i64, tpu.core_type = #tpu.core_type<tc>, window_params = [{transform_indices = @transform_0, window_bounds = array<i64: 4>}, {transform_indices = @transform_1, window_bounds = array<i64: 1, 8, 16>}, {pipeline_mode = #tpu.pipeline_mode<synchronous>, transform_indices = @transform_2, window_bounds = array<i64: 8, 8>}, {transform_indices = @transform_3, window_bounds = array<i64: 1, 8, 8>}, {transform_indices = @transform_4, window_bounds = array<i64: 1, 64, 32>}, {pipeline_mode = #tpu.pipeline_mode<synchronous>, transform_indices = @transform_5, window_bounds = array<i64: 32, 544>}, {pipeline_mode = #tpu.pipeline_mode<synchronous>, transform_indices = @transform_6, window_bounds = array<i64: 1, 544>}, {pipeline_mode = #tpu.pipeline_mode<synchronous>, transform_indices = @transform_7, window_bounds = array<i64: 1, 128>}, {pipeline_mode = #tpu.pipeline_mode<synchronous>, transform_indices = @transform_8, window_bounds = array<i64: 2, 32>}, {pipeline_mode = #tpu.pipeline_mode<synchronous>, transform_indices = @transform_9, window_bounds = array<i64: 2, 8, 32>}, {transform_indices = @transform_10, window_bounds = array<i64: 1, 64, 32>}]} {
    %c0 = arith.constant 0 : index
    %0 = memref.load %arg1[%c0] : memref<4xf32, #tpu.memory_space<smem>>
    %c1 = arith.constant 1 : index
    %1 = memref.load %arg1[%c1] : memref<4xf32, #tpu.memory_space<smem>>
    %c2 = arith.constant 2 : index
    %2 = memref.load %arg1[%c2] : memref<4xf32, #tpu.memory_space<smem>>
    %c3 = arith.constant 3 : index
    %3 = memref.load %arg1[%c3] : memref<4xf32, #tpu.memory_space<smem>>
    %c0_0 = arith.constant 0 : index
    %c0_1 = arith.constant 0 : index
    %c0_2 = arith.constant 0 : index
    %4 = vector.load %arg2[%c0_0, %c0_1, %c0_2] : memref<1x8x16xf32, #tpu.memory_space<vmem>>, vector<1x8x16xf32>
    %5 = vector.shape_cast %4 : vector<1x8x16xf32> to vector<8x16xf32>
    %6 = vector.shape_cast %5 : vector<8x16xf32> to vector<8x1x16xf32>
    %7 = vector.shape_cast %5 : vector<8x16xf32> to vector<1x8x16xf32>
    %8 = vector.broadcast %6 : vector<8x1x16xf32> to vector<8x8x16xf32>
    %9 = vector.broadcast %7 : vector<1x8x16xf32> to vector<8x8x16xf32>
    %10 = arith.subf %8, %9 : vector<8x8x16xf32>
    %11 = arith.mulf %10, %10 : vector<8x8x16xf32>
    %cst = arith.constant dense<0.000000e+00> : vector<8x8xf32>
    %12 = vector.multi_reduction <add>, %11, %cst [2] : vector<8x8x16xf32> to vector<8x8xf32>
    %13 = math.sqrt %12 : vector<8x8xf32>
    %c0_3 = arith.constant 0 : index
    %c0_4 = arith.constant 0 : index
    %14 = vector.load %arg3[%c0_3, %c0_4] : memref<8x8xf32, #tpu.memory_space<vmem>>, vector<8x8xf32>
    %15 = vector.broadcast %1 : f32 to vector<8x8xf32>
    %16 = arith.mulf %15, %14 : vector<8x8xf32>
    %17 = arith.addf %13, %16 : vector<8x8xf32>
    %cst_5 = arith.constant 0.000000e+00 : f32
    %18 = vector.broadcast %cst_5 : f32 to vector<8x8xf32>
    %19 = arith.subf %18, %17 : vector<8x8xf32>
    %c0_6 = arith.constant 0 : index
    %c0_7 = arith.constant 0 : index
    %c0_8 = arith.constant 0 : index
    %20 = vector.load %arg4[%c0_6, %c0_7, %c0_8] : memref<1x8x8xf32, #tpu.memory_space<vmem>>, vector<1x8x8xf32>
    %21 = vector.shape_cast %20 : vector<1x8x8xf32> to vector<8x8xf32>
    %cst_9 = arith.constant 9.99999997E-7 : f32
    %22 = vector.broadcast %cst_9 : f32 to vector<8x8xf32>
    %23 = arith.addf %21, %22 : vector<8x8xf32>
    %24 = math.log %23 : vector<8x8xf32>
    %cst_10 = arith.constant 0.000000e+00 : f32
    %25 = vector.broadcast %cst_10 : f32 to vector<8x8xf32>
    %26 = arith.subf %25, %24 : vector<8x8xf32>
    %cst_11 = arith.constant 9.99999997E-7 : f32
    %27 = vector.broadcast %cst_11 : f32 to vector<8x8xf32>
    %28 = arith.addf %26, %27 : vector<8x8xf32>
    %29 = math.log %28 : vector<8x8xf32>
    %cst_12 = arith.constant 0.000000e+00 : f32
    %30 = vector.broadcast %cst_12 : f32 to vector<8x8xf32>
    %31 = arith.subf %30, %29 : vector<8x8xf32>
    %32 = arith.addf %19, %31 : vector<8x8xf32>
    %cst_13 = arith.constant 9.99999997E-7 : f32
    %33 = arith.addf %0, %cst_13 : f32
    %34 = vector.broadcast %33 : f32 to vector<8x8xf32>
    %35 = arith.divf %32, %34 : vector<8x8xf32>
    %cst_14 = arith.constant dense<0xFF800000> : vector<8xf32>
    %36 = vector.multi_reduction <maximumf>, %35, %cst_14 [1] : vector<8x8xf32> to vector<8xf32>
    %37 = vector.shape_cast %36 : vector<8xf32> to vector<8x1xf32>
    %38 = vector.broadcast %37 : vector<8x1xf32> to vector<8x8xf32>
    %39 = arith.subf %35, %38 : vector<8x8xf32>
    %40 = math.exp %39 : vector<8x8xf32>
    %cst_15 = arith.constant dense<0.000000e+00> : vector<8xf32>
    %41 = vector.multi_reduction <add>, %40, %cst_15 [1] : vector<8x8xf32> to vector<8xf32>
    %42 = vector.shape_cast %41 : vector<8xf32> to vector<8x1xf32>
    %43 = vector.broadcast %42 : vector<8x1xf32> to vector<8x8xf32>
    %44 = arith.divf %40, %43 : vector<8x8xf32>
    %45 = vector.broadcast %2 : f32 to vector<8x8xf32>
    %46 = arith.subf %44, %45 : vector<8x8xf32>
    %47 = vector.broadcast %3 : f32 to vector<8x8xf32>
    %48 = arith.mulf %47, %46 : vector<8x8xf32>
    %49 = arith.negf %48 : vector<8x8xf32>
    %50 = math.exp %49 : vector<8x8xf32>
    %cst_16 = arith.constant 1.000000e+00 : f32
    %51 = vector.broadcast %cst_16 : f32 to vector<8x8xf32>
    %52 = arith.addf %51, %50 : vector<8x8xf32>
    %53 = arith.divf %51, %52 : vector<8x8xf32>
    %cst_17 = arith.constant 5.000000e-01 : f32
    %54 = vector.broadcast %cst_17 : f32 to vector<8x8xf32>
    %55 = arith.cmpf ogt, %53, %54 : vector<8x8xf32>
    %56 = arith.extui %55 : vector<8x8xi1> to vector<8x8xi32>
    %57 = arith.sitofp %56 : vector<8x8xi32> to vector<8x8xf32>
    %58 = tpu.iota {dimensions = array<i32: 0>} : vector<8x8xi32>
    %59 = tpu.iota {dimensions = array<i32: 1>} : vector<8x8xi32>
    %60 = arith.cmpi eq, %58, %59 : vector<8x8xi32>
    %61 = arith.extui %60 : vector<8x8xi1> to vector<8x8xi32>
    %62 = arith.sitofp %61 : vector<8x8xi32> to vector<8x8xf32>
    %cst_18 = arith.constant dense<0.000000e+00> : vector<8x8xf32>
    %63 = tpu.matmul %62, %57, %cst_18 {dimension_numbers = #tpu.dot_dimension_numbers<[1], [1], [0], [0], [0, 0, 1, 0], [], []>} : vector<8x8xf32>, vector<8x8xf32>, vector<8x8xf32> -> vector<8x8xf32>
    %64 = arith.addf %57, %63 : vector<8x8xf32>
    %cst_19 = arith.constant 5.000000e-01 : f32
    %65 = vector.broadcast %cst_19 : f32 to vector<8x8xf32>
    %66 = arith.mulf %65, %64 : vector<8x8xf32>
    %67 = arith.select %60, %44, %66 : vector<8x8xi1>, vector<8x8xf32>
    %cst_20 = arith.constant dense<0.000000e+00> : vector<8xf32>
    %68 = vector.multi_reduction <add>, %67, %cst_20 [1] : vector<8x8xf32> to vector<8xf32>
    %69 = vector.shape_cast %68 : vector<8xf32> to vector<8x1xf32>
    %cst_21 = arith.constant 9.99999997E-7 : f32
    %70 = vector.broadcast %cst_21 : f32 to vector<8x1xf32>
    %71 = arith.maximumf %69, %70 : vector<8x1xf32>
    %cst_22 = arith.constant dense<0.000000e+00> : vector<8xf32>
    %72 = vector.multi_reduction <add>, %67, %cst_22 [0] : vector<8x8xf32> to vector<8xf32>
    %73 = vector.shape_cast %72 : vector<8xf32> to vector<1x8xf32>
    %cst_23 = arith.constant 9.99999997E-7 : f32
    %74 = vector.broadcast %cst_23 : f32 to vector<1x8xf32>
    %75 = arith.maximumf %73, %74 : vector<1x8xf32>
    %76 = math.rsqrt %71 : vector<8x1xf32>
    %77 = vector.broadcast %76 : vector<8x1xf32> to vector<8x8xf32>
    %78 = arith.mulf %77, %67 : vector<8x8xf32>
    %79 = math.rsqrt %75 : vector<1x8xf32>
    %80 = vector.broadcast %79 : vector<1x8xf32> to vector<8x8xf32>
    %81 = arith.mulf %78, %80 : vector<8x8xf32>
    %82 = vector.shape_cast %81 : vector<8x8xf32> to vector<1x8x8xf32>
    %cst_24 = arith.constant 0.000000e+00 : f32
    %83 = vector.broadcast %cst_24 : f32 to vector<1x8x8xf32>
    %84 = arith.cmpf one, %82, %83 : vector<1x8x8xf32>
    %cst_25 = arith.constant 0.000000e+00 : f32
    %cst_26 = arith.constant -1.000000e+30 : f32
    %85 = vector.broadcast %cst_25 : f32 to vector<1x8x8xf32>
    %86 = vector.broadcast %cst_26 : f32 to vector<1x8x8xf32>
    %87 = arith.select %84, %85, %86 : vector<1x8x8xi1>, vector<1x8x8xf32>
    %c0_27 = arith.constant 0 : index
    %c0_28 = arith.constant 0 : index
    %c0_29 = arith.constant 0 : index
    %88 = vector.load %arg5[%c0_27, %c0_28, %c0_29] : memref<1x64x32xf32, #tpu.memory_space<vmem>>, vector<1x64x32xf32>
    %89 = vector.shape_cast %88 : vector<1x64x32xf32> to vector<64x32xf32>
    %cst_30 = arith.constant dense<0.000000e+00> : vector<64xf32>
    %90 = vector.multi_reduction <add>, %89, %cst_30 [1] : vector<64x32xf32> to vector<64xf32>
    %91 = vector.shape_cast %90 : vector<64xf32> to vector<64x1xf32>
    %cst_31 = arith.constant 3.200000e+01 : f32
    %92 = vector.broadcast %cst_31 : f32 to vector<64x1xf32>
    %93 = arith.divf %91, %92 : vector<64x1xf32>
    %94 = vector.broadcast %93 : vector<64x1xf32> to vector<64x32xf32>
    %95 = arith.subf %89, %94 : vector<64x32xf32>
    %96 = arith.mulf %95, %95 : vector<64x32xf32>
    %cst_32 = arith.constant dense<0.000000e+00> : vector<64xf32>
    %97 = vector.multi_reduction <add>, %96, %cst_32 [1] : vector<64x32xf32> to vector<64xf32>
    %98 = vector.shape_cast %97 : vector<64xf32> to vector<64x1xf32>
    %cst_33 = arith.constant 3.200000e+01 : f32
    %99 = vector.broadcast %cst_33 : f32 to vector<64x1xf32>
    %100 = arith.divf %98, %99 : vector<64x1xf32>
    %cst_34 = arith.constant 9.99999974E-6 : f32
    %101 = vector.broadcast %cst_34 : f32 to vector<64x1xf32>
    %102 = arith.addf %100, %101 : vector<64x1xf32>
    %103 = math.rsqrt %102 : vector<64x1xf32>
    %104 = vector.broadcast %103 : vector<64x1xf32> to vector<64x32xf32>
    %105 = arith.mulf %95, %104 : vector<64x32xf32>
    %c0_35 = arith.constant 0 : index
    %c0_36 = arith.constant 0 : index
    %106 = vector.load %arg9[%c0_35, %c0_36] : memref<2x32xf32, #tpu.memory_space<vmem>>, vector<1x32xf32>
    %107 = vector.broadcast %106 : vector<1x32xf32> to vector<64x32xf32>
    %108 = arith.mulf %105, %107 : vector<64x32xf32>
    %c1_37 = arith.constant 1 : index
    %c0_38 = arith.constant 0 : index
    %109 = vector.load %arg9[%c1_37, %c0_38] : memref<2x32xf32, #tpu.memory_space<vmem>>, vector<1x32xf32>
    %110 = vector.broadcast %109 : vector<1x32xf32> to vector<64x32xf32>
    %111 = arith.addf %108, %110 : vector<64x32xf32>
    %cst_39 = arith.constant 0.000000e+00 : f32
    %112 = vector.broadcast %cst_39 : f32 to vector<8x8x32xf32>
    %c0_40 = arith.constant 0 : index
    %c0_41 = arith.constant 0 : index
    %113 = vector.load %arg6[%c0_40, %c0_41] : memref<32x544xf32, #tpu.memory_space<vmem>>, vector<32x128xf32>
    %cst_42 = arith.constant dense<0.000000e+00> : vector<64x128xf32>
    %114 = tpu.matmul %111, %113, %cst_42 {dimension_numbers = #tpu.dot_dimension_numbers<[1], [0], [0], [1], [0, 0, 1, 1], [], []>} : vector<64x32xf32>, vector<32x128xf32>, vector<64x128xf32> -> vector<64x128xf32>
    %c0_43 = arith.constant 0 : index
    %c0_44 = arith.constant 0 : index
    %115 = vector.load %arg7[%c0_43, %c0_44] : memref<1x544xf32, #tpu.memory_space<vmem>>, vector<1x128xf32>
    %116 = vector.broadcast %115 : vector<1x128xf32> to vector<64x128xf32>
    %117 = arith.addf %114, %116 : vector<64x128xf32>
    %118 = vector.shape_cast %117 : vector<64x128xf32> to vector<8x8x128xf32>
    %119 = vector.extract_strided_slice %118 {offsets = [0, 0, 0], sizes = [8, 8, 32], strides = [1, 1, 1]} : vector<8x8x128xf32> to vector<8x8x32xf32>
    %120 = vector.extract_strided_slice %118 {offsets = [0, 0, 32], sizes = [8, 8, 32], strides = [1, 1, 1]} : vector<8x8x128xf32> to vector<8x8x32xf32>
    %121 = vector.extract_strided_slice %118 {offsets = [0, 0, 64], sizes = [8, 8, 32], strides = [1, 1, 1]} : vector<8x8x128xf32> to vector<8x8x32xf32>
    %122 = vector.extract_strided_slice %118 {offsets = [0, 0, 96], sizes = [8, 8, 1], strides = [1, 1, 1]} : vector<8x8x128xf32> to vector<8x8x1xf32>
    %c0_45 = arith.constant 0 : index
    %c0_46 = arith.constant 0 : index
    %123 = vector.load %arg8[%c0_45, %c0_46] : memref<1x128xf32, #tpu.memory_space<vmem>>, vector<1x32xf32>
    %124 = vector.shape_cast %123 : vector<1x32xf32> to vector<1x1x32xf32>
    "tpu.trace_start"() <{level = 10 : i32, message = "snd,smd->snm"}> : () -> ()
    %cst_47 = arith.constant dense<0.000000e+00> : vector<8x8x8xf32>
    %125 = tpu.matmul %119, %120, %cst_47 {dimension_numbers = #tpu.dot_dimension_numbers<[2], [2], [1], [1], [0, 0, 0, 1, 1, 1], [0], [0]>} : vector<8x8x32xf32>, vector<8x8x32xf32>, vector<8x8x8xf32> -> vector<8x8x8xf32>
    "tpu.trace_stop"() : () -> ()
    %126 = vector.broadcast %82 : vector<1x8x8xf32> to vector<8x8x8xf32>
    %127 = vector.broadcast %122 : vector<8x8x1xf32> to vector<8x8x8xf32>
    %128 = arith.mulf %126, %127 : vector<8x8x8xf32>
    %129 = arith.addf %125, %128 : vector<8x8x8xf32>
    %cst_48 = arith.constant 0.176776692 : f32
    %130 = vector.broadcast %cst_48 : f32 to vector<8x8x8xf32>
    %131 = arith.mulf %129, %130 : vector<8x8x8xf32>
    %132 = vector.broadcast %87 : vector<1x8x8xf32> to vector<8x8x8xf32>
    %133 = arith.addf %131, %132 : vector<8x8x8xf32>
    %cst_49 = arith.constant dense<0xFF800000> : vector<8x8xf32>
    %134 = vector.multi_reduction <maximumf>, %133, %cst_49 [2] : vector<8x8x8xf32> to vector<8x8xf32>
    %135 = vector.shape_cast %134 : vector<8x8xf32> to vector<8x8x1xf32>
    %136 = vector.broadcast %135 : vector<8x8x1xf32> to vector<8x8x8xf32>
    %137 = arith.subf %133, %136 : vector<8x8x8xf32>
    %138 = math.exp %137 : vector<8x8x8xf32>
    %cst_50 = arith.constant dense<0.000000e+00> : vector<8x8xf32>
    %139 = vector.multi_reduction <add>, %138, %cst_50 [2] : vector<8x8x8xf32> to vector<8x8xf32>
    %140 = vector.shape_cast %139 : vector<8x8xf32> to vector<8x8x1xf32>
    %141 = vector.broadcast %140 : vector<8x8x1xf32> to vector<8x8x8xf32>
    %142 = arith.divf %138, %141 : vector<8x8x8xf32>
    "tpu.trace_start"() <{level = 10 : i32, message = "snm,smd->snd"}> : () -> ()
    %cst_51 = arith.constant dense<0.000000e+00> : vector<8x8x32xf32>
    %143 = tpu.matmul %142, %121, %cst_51 {dimension_numbers = #tpu.dot_dimension_numbers<[2], [1], [1], [2], [0, 0, 0, 1, 1, 2], [0], [0]>} : vector<8x8x8xf32>, vector<8x8x32xf32>, vector<8x8x32xf32> -> vector<8x8x32xf32>
    "tpu.trace_stop"() : () -> ()
    %144 = vector.broadcast %82 : vector<1x8x8xf32> to vector<8x8x8xf32>
    %145 = arith.mulf %142, %144 : vector<8x8x8xf32>
    %cst_52 = arith.constant dense<0.000000e+00> : vector<8x8xf32>
    %146 = vector.multi_reduction <add>, %145, %cst_52 [2] : vector<8x8x8xf32> to vector<8x8xf32>
    %147 = vector.shape_cast %146 : vector<8x8xf32> to vector<8x8x1xf32>
    %148 = vector.broadcast %147 : vector<8x8x1xf32> to vector<8x8x32xf32>
    %149 = vector.broadcast %124 : vector<1x1x32xf32> to vector<8x8x32xf32>
    %150 = arith.mulf %148, %149 : vector<8x8x32xf32>
    %151 = arith.addf %143, %150 : vector<8x8x32xf32>
    %152 = arith.addf %112, %151 : vector<8x8x32xf32>
    %c0_53 = arith.constant 0 : index
    %c128 = arith.constant 128 : index
    %153 = vector.load %arg6[%c0_53, %c128] : memref<32x544xf32, #tpu.memory_space<vmem>>, vector<32x128xf32>
    %cst_54 = arith.constant dense<0.000000e+00> : vector<64x128xf32>
    %154 = tpu.matmul %111, %153, %cst_54 {dimension_numbers = #tpu.dot_dimension_numbers<[1], [0], [0], [1], [0, 0, 1, 1], [], []>} : vector<64x32xf32>, vector<32x128xf32>, vector<64x128xf32> -> vector<64x128xf32>
    %c0_55 = arith.constant 0 : index
    %c128_56 = arith.constant 128 : index
    %155 = vector.load %arg7[%c0_55, %c128_56] : memref<1x544xf32, #tpu.memory_space<vmem>>, vector<1x128xf32>
    %156 = vector.broadcast %155 : vector<1x128xf32> to vector<64x128xf32>
    %157 = arith.addf %154, %156 : vector<64x128xf32>
    %158 = vector.shape_cast %157 : vector<64x128xf32> to vector<8x8x128xf32>
    %159 = vector.extract_strided_slice %158 {offsets = [0, 0, 0], sizes = [8, 8, 32], strides = [1, 1, 1]} : vector<8x8x128xf32> to vector<8x8x32xf32>
    %160 = vector.extract_strided_slice %158 {offsets = [0, 0, 32], sizes = [8, 8, 32], strides = [1, 1, 1]} : vector<8x8x128xf32> to vector<8x8x32xf32>
    %161 = vector.extract_strided_slice %158 {offsets = [0, 0, 64], sizes = [8, 8, 32], strides = [1, 1, 1]} : vector<8x8x128xf32> to vector<8x8x32xf32>
    %162 = vector.extract_strided_slice %158 {offsets = [0, 0, 96], sizes = [8, 8, 1], strides = [1, 1, 1]} : vector<8x8x128xf32> to vector<8x8x1xf32>
    %c0_57 = arith.constant 0 : index
    %c32 = arith.constant 32 : index
    %163 = vector.load %arg8[%c0_57, %c32] : memref<1x128xf32, #tpu.memory_space<vmem>>, vector<1x32xf32>
    %164 = vector.shape_cast %163 : vector<1x32xf32> to vector<1x1x32xf32>
    "tpu.trace_start"() <{level = 10 : i32, message = "snd,smd->snm"}> : () -> ()
    %cst_58 = arith.constant dense<0.000000e+00> : vector<8x8x8xf32>
    %165 = tpu.matmul %159, %160, %cst_58 {dimension_numbers = #tpu.dot_dimension_numbers<[2], [2], [1], [1], [0, 0, 0, 1, 1, 1], [0], [0]>} : vector<8x8x32xf32>, vector<8x8x32xf32>, vector<8x8x8xf32> -> vector<8x8x8xf32>
    "tpu.trace_stop"() : () -> ()
    %166 = vector.broadcast %82 : vector<1x8x8xf32> to vector<8x8x8xf32>
    %167 = vector.broadcast %162 : vector<8x8x1xf32> to vector<8x8x8xf32>
    %168 = arith.mulf %166, %167 : vector<8x8x8xf32>
    %169 = arith.addf %165, %168 : vector<8x8x8xf32>
    %cst_59 = arith.constant 0.176776692 : f32
    %170 = vector.broadcast %cst_59 : f32 to vector<8x8x8xf32>
    %171 = arith.mulf %169, %170 : vector<8x8x8xf32>
    %172 = vector.broadcast %87 : vector<1x8x8xf32> to vector<8x8x8xf32>
    %173 = arith.addf %171, %172 : vector<8x8x8xf32>
    %cst_60 = arith.constant dense<0xFF800000> : vector<8x8xf32>
    %174 = vector.multi_reduction <maximumf>, %173, %cst_60 [2] : vector<8x8x8xf32> to vector<8x8xf32>
    %175 = vector.shape_cast %174 : vector<8x8xf32> to vector<8x8x1xf32>
    %176 = vector.broadcast %175 : vector<8x8x1xf32> to vector<8x8x8xf32>
    %177 = arith.subf %173, %176 : vector<8x8x8xf32>
    %178 = math.exp %177 : vector<8x8x8xf32>
    %cst_61 = arith.constant dense<0.000000e+00> : vector<8x8xf32>
    %179 = vector.multi_reduction <add>, %178, %cst_61 [2] : vector<8x8x8xf32> to vector<8x8xf32>
    %180 = vector.shape_cast %179 : vector<8x8xf32> to vector<8x8x1xf32>
    %181 = vector.broadcast %180 : vector<8x8x1xf32> to vector<8x8x8xf32>
    %182 = arith.divf %178, %181 : vector<8x8x8xf32>
    "tpu.trace_start"() <{level = 10 : i32, message = "snm,smd->snd"}> : () -> ()
    %cst_62 = arith.constant dense<0.000000e+00> : vector<8x8x32xf32>
    %183 = tpu.matmul %182, %161, %cst_62 {dimension_numbers = #tpu.dot_dimension_numbers<[2], [1], [1], [2], [0, 0, 0, 1, 1, 2], [0], [0]>} : vector<8x8x8xf32>, vector<8x8x32xf32>, vector<8x8x32xf32> -> vector<8x8x32xf32>
    "tpu.trace_stop"() : () -> ()
    %184 = vector.broadcast %82 : vector<1x8x8xf32> to vector<8x8x8xf32>
    %185 = arith.mulf %182, %184 : vector<8x8x8xf32>
    %cst_63 = arith.constant dense<0.000000e+00> : vector<8x8xf32>
    %186 = vector.multi_reduction <add>, %185, %cst_63 [2] : vector<8x8x8xf32> to vector<8x8xf32>
    %187 = vector.shape_cast %186 : vector<8x8xf32> to vector<8x8x1xf32>
    %188 = vector.broadcast %187 : vector<8x8x1xf32> to vector<8x8x32xf32>
    %189 = vector.broadcast %164 : vector<1x1x32xf32> to vector<8x8x32xf32>
    %190 = arith.mulf %188, %189 : vector<8x8x32xf32>
    %191 = arith.addf %183, %190 : vector<8x8x32xf32>
    %192 = arith.addf %152, %191 : vector<8x8x32xf32>
    %c0_64 = arith.constant 0 : index
    %c256 = arith.constant 256 : index
    %193 = vector.load %arg6[%c0_64, %c256] : memref<32x544xf32, #tpu.memory_space<vmem>>, vector<32x128xf32>
    %cst_65 = arith.constant dense<0.000000e+00> : vector<64x128xf32>
    %194 = tpu.matmul %111, %193, %cst_65 {dimension_numbers = #tpu.dot_dimension_numbers<[1], [0], [0], [1], [0, 0, 1, 1], [], []>} : vector<64x32xf32>, vector<32x128xf32>, vector<64x128xf32> -> vector<64x128xf32>
    %c0_66 = arith.constant 0 : index
    %c256_67 = arith.constant 256 : index
    %195 = vector.load %arg7[%c0_66, %c256_67] : memref<1x544xf32, #tpu.memory_space<vmem>>, vector<1x128xf32>
    %196 = vector.broadcast %195 : vector<1x128xf32> to vector<64x128xf32>
    %197 = arith.addf %194, %196 : vector<64x128xf32>
    %198 = vector.shape_cast %197 : vector<64x128xf32> to vector<8x8x128xf32>
    %199 = vector.extract_strided_slice %198 {offsets = [0, 0, 0], sizes = [8, 8, 32], strides = [1, 1, 1]} : vector<8x8x128xf32> to vector<8x8x32xf32>
    %200 = vector.extract_strided_slice %198 {offsets = [0, 0, 32], sizes = [8, 8, 32], strides = [1, 1, 1]} : vector<8x8x128xf32> to vector<8x8x32xf32>
    %201 = vector.extract_strided_slice %198 {offsets = [0, 0, 64], sizes = [8, 8, 32], strides = [1, 1, 1]} : vector<8x8x128xf32> to vector<8x8x32xf32>
    %202 = vector.extract_strided_slice %198 {offsets = [0, 0, 96], sizes = [8, 8, 1], strides = [1, 1, 1]} : vector<8x8x128xf32> to vector<8x8x1xf32>
    %c0_68 = arith.constant 0 : index
    %c64 = arith.constant 64 : index
    %203 = vector.load %arg8[%c0_68, %c64] : memref<1x128xf32, #tpu.memory_space<vmem>>, vector<1x32xf32>
    %204 = vector.shape_cast %203 : vector<1x32xf32> to vector<1x1x32xf32>
    "tpu.trace_start"() <{level = 10 : i32, message = "snd,smd->snm"}> : () -> ()
    %cst_69 = arith.constant dense<0.000000e+00> : vector<8x8x8xf32>
    %205 = tpu.matmul %199, %200, %cst_69 {dimension_numbers = #tpu.dot_dimension_numbers<[2], [2], [1], [1], [0, 0, 0, 1, 1, 1], [0], [0]>} : vector<8x8x32xf32>, vector<8x8x32xf32>, vector<8x8x8xf32> -> vector<8x8x8xf32>
    "tpu.trace_stop"() : () -> ()
    %206 = vector.broadcast %82 : vector<1x8x8xf32> to vector<8x8x8xf32>
    %207 = vector.broadcast %202 : vector<8x8x1xf32> to vector<8x8x8xf32>
    %208 = arith.mulf %206, %207 : vector<8x8x8xf32>
    %209 = arith.addf %205, %208 : vector<8x8x8xf32>
    %cst_70 = arith.constant 0.176776692 : f32
    %210 = vector.broadcast %cst_70 : f32 to vector<8x8x8xf32>
    %211 = arith.mulf %209, %210 : vector<8x8x8xf32>
    %212 = vector.broadcast %87 : vector<1x8x8xf32> to vector<8x8x8xf32>
    %213 = arith.addf %211, %212 : vector<8x8x8xf32>
    %cst_71 = arith.constant dense<0xFF800000> : vector<8x8xf32>
    %214 = vector.multi_reduction <maximumf>, %213, %cst_71 [2] : vector<8x8x8xf32> to vector<8x8xf32>
    %215 = vector.shape_cast %214 : vector<8x8xf32> to vector<8x8x1xf32>
    %216 = vector.broadcast %215 : vector<8x8x1xf32> to vector<8x8x8xf32>
    %217 = arith.subf %213, %216 : vector<8x8x8xf32>
    %218 = math.exp %217 : vector<8x8x8xf32>
    %cst_72 = arith.constant dense<0.000000e+00> : vector<8x8xf32>
    %219 = vector.multi_reduction <add>, %218, %cst_72 [2] : vector<8x8x8xf32> to vector<8x8xf32>
    %220 = vector.shape_cast %219 : vector<8x8xf32> to vector<8x8x1xf32>
    %221 = vector.broadcast %220 : vector<8x8x1xf32> to vector<8x8x8xf32>
    %222 = arith.divf %218, %221 : vector<8x8x8xf32>
    "tpu.trace_start"() <{level = 10 : i32, message = "snm,smd->snd"}> : () -> ()
    %cst_73 = arith.constant dense<0.000000e+00> : vector<8x8x32xf32>
    %223 = tpu.matmul %222, %201, %cst_73 {dimension_numbers = #tpu.dot_dimension_numbers<[2], [1], [1], [2], [0, 0, 0, 1, 1, 2], [0], [0]>} : vector<8x8x8xf32>, vector<8x8x32xf32>, vector<8x8x32xf32> -> vector<8x8x32xf32>
    "tpu.trace_stop"() : () -> ()
    %224 = vector.broadcast %82 : vector<1x8x8xf32> to vector<8x8x8xf32>
    %225 = arith.mulf %222, %224 : vector<8x8x8xf32>
    %cst_74 = arith.constant dense<0.000000e+00> : vector<8x8xf32>
    %226 = vector.multi_reduction <add>, %225, %cst_74 [2] : vector<8x8x8xf32> to vector<8x8xf32>
    %227 = vector.shape_cast %226 : vector<8x8xf32> to vector<8x8x1xf32>
    %228 = vector.broadcast %227 : vector<8x8x1xf32> to vector<8x8x32xf32>
    %229 = vector.broadcast %204 : vector<1x1x32xf32> to vector<8x8x32xf32>
    %230 = arith.mulf %228, %229 : vector<8x8x32xf32>
    %231 = arith.addf %223, %230 : vector<8x8x32xf32>
    %232 = arith.addf %192, %231 : vector<8x8x32xf32>
    %c0_75 = arith.constant 0 : index
    %c384 = arith.constant 384 : index
    %233 = vector.load %arg6[%c0_75, %c384] : memref<32x544xf32, #tpu.memory_space<vmem>>, vector<32x128xf32>
    %cst_76 = arith.constant dense<0.000000e+00> : vector<64x128xf32>
    %234 = tpu.matmul %111, %233, %cst_76 {dimension_numbers = #tpu.dot_dimension_numbers<[1], [0], [0], [1], [0, 0, 1, 1], [], []>} : vector<64x32xf32>, vector<32x128xf32>, vector<64x128xf32> -> vector<64x128xf32>
    %c0_77 = arith.constant 0 : index
    %c384_78 = arith.constant 384 : index
    %235 = vector.load %arg7[%c0_77, %c384_78] : memref<1x544xf32, #tpu.memory_space<vmem>>, vector<1x128xf32>
    %236 = vector.broadcast %235 : vector<1x128xf32> to vector<64x128xf32>
    %237 = arith.addf %234, %236 : vector<64x128xf32>
    %238 = vector.shape_cast %237 : vector<64x128xf32> to vector<8x8x128xf32>
    %239 = vector.extract_strided_slice %238 {offsets = [0, 0, 0], sizes = [8, 8, 32], strides = [1, 1, 1]} : vector<8x8x128xf32> to vector<8x8x32xf32>
    %240 = vector.extract_strided_slice %238 {offsets = [0, 0, 32], sizes = [8, 8, 32], strides = [1, 1, 1]} : vector<8x8x128xf32> to vector<8x8x32xf32>
    %241 = vector.extract_strided_slice %238 {offsets = [0, 0, 64], sizes = [8, 8, 32], strides = [1, 1, 1]} : vector<8x8x128xf32> to vector<8x8x32xf32>
    %242 = vector.extract_strided_slice %238 {offsets = [0, 0, 96], sizes = [8, 8, 1], strides = [1, 1, 1]} : vector<8x8x128xf32> to vector<8x8x1xf32>
    %c0_79 = arith.constant 0 : index
    %c96 = arith.constant 96 : index
    %243 = vector.load %arg8[%c0_79, %c96] : memref<1x128xf32, #tpu.memory_space<vmem>>, vector<1x32xf32>
    %244 = vector.shape_cast %243 : vector<1x32xf32> to vector<1x1x32xf32>
    "tpu.trace_start"() <{level = 10 : i32, message = "snd,smd->snm"}> : () -> ()
    %cst_80 = arith.constant dense<0.000000e+00> : vector<8x8x8xf32>
    %245 = tpu.matmul %239, %240, %cst_80 {dimension_numbers = #tpu.dot_dimension_numbers<[2], [2], [1], [1], [0, 0, 0, 1, 1, 1], [0], [0]>} : vector<8x8x32xf32>, vector<8x8x32xf32>, vector<8x8x8xf32> -> vector<8x8x8xf32>
    "tpu.trace_stop"() : () -> ()
    %246 = vector.broadcast %82 : vector<1x8x8xf32> to vector<8x8x8xf32>
    %247 = vector.broadcast %242 : vector<8x8x1xf32> to vector<8x8x8xf32>
    %248 = arith.mulf %246, %247 : vector<8x8x8xf32>
    %249 = arith.addf %245, %248 : vector<8x8x8xf32>
    %cst_81 = arith.constant 0.176776692 : f32
    %250 = vector.broadcast %cst_81 : f32 to vector<8x8x8xf32>
    %251 = arith.mulf %249, %250 : vector<8x8x8xf32>
    %252 = vector.broadcast %87 : vector<1x8x8xf32> to vector<8x8x8xf32>
    %253 = arith.addf %251, %252 : vector<8x8x8xf32>
    %cst_82 = arith.constant dense<0xFF800000> : vector<8x8xf32>
    %254 = vector.multi_reduction <maximumf>, %253, %cst_82 [2] : vector<8x8x8xf32> to vector<8x8xf32>
    %255 = vector.shape_cast %254 : vector<8x8xf32> to vector<8x8x1xf32>
    %256 = vector.broadcast %255 : vector<8x8x1xf32> to vector<8x8x8xf32>
    %257 = arith.subf %253, %256 : vector<8x8x8xf32>
    %258 = math.exp %257 : vector<8x8x8xf32>
    %cst_83 = arith.constant dense<0.000000e+00> : vector<8x8xf32>
    %259 = vector.multi_reduction <add>, %258, %cst_83 [2] : vector<8x8x8xf32> to vector<8x8xf32>
    %260 = vector.shape_cast %259 : vector<8x8xf32> to vector<8x8x1xf32>
    %261 = vector.broadcast %260 : vector<8x8x1xf32> to vector<8x8x8xf32>
    %262 = arith.divf %258, %261 : vector<8x8x8xf32>
    "tpu.trace_start"() <{level = 10 : i32, message = "snm,smd->snd"}> : () -> ()
    %cst_84 = arith.constant dense<0.000000e+00> : vector<8x8x32xf32>
    %263 = tpu.matmul %262, %241, %cst_84 {dimension_numbers = #tpu.dot_dimension_numbers<[2], [1], [1], [2], [0, 0, 0, 1, 1, 2], [0], [0]>} : vector<8x8x8xf32>, vector<8x8x32xf32>, vector<8x8x32xf32> -> vector<8x8x32xf32>
    "tpu.trace_stop"() : () -> ()
    %264 = vector.broadcast %82 : vector<1x8x8xf32> to vector<8x8x8xf32>
    %265 = arith.mulf %262, %264 : vector<8x8x8xf32>
    %cst_85 = arith.constant dense<0.000000e+00> : vector<8x8xf32>
    %266 = vector.multi_reduction <add>, %265, %cst_85 [2] : vector<8x8x8xf32> to vector<8x8xf32>
    %267 = vector.shape_cast %266 : vector<8x8xf32> to vector<8x8x1xf32>
    %268 = vector.broadcast %267 : vector<8x8x1xf32> to vector<8x8x32xf32>
    %269 = vector.broadcast %244 : vector<1x1x32xf32> to vector<8x8x32xf32>
    %270 = arith.mulf %268, %269 : vector<8x8x32xf32>
    %271 = arith.addf %263, %270 : vector<8x8x32xf32>
    %272 = arith.addf %232, %271 : vector<8x8x32xf32>
    %c0_86 = arith.constant 0 : index
    %c512 = arith.constant 512 : index
    %273 = vector.load %arg6[%c0_86, %c512] : memref<32x544xf32, #tpu.memory_space<vmem>>, vector<32x32xf32>
    %cst_87 = arith.constant dense<0.000000e+00> : vector<64x32xf32>
    %274 = tpu.matmul %111, %273, %cst_87 {dimension_numbers = #tpu.dot_dimension_numbers<[1], [0], [0], [1], [0, 0, 1, 1], [], []>} : vector<64x32xf32>, vector<32x32xf32>, vector<64x32xf32> -> vector<64x32xf32>
    %c0_88 = arith.constant 0 : index
    %c512_89 = arith.constant 512 : index
    %275 = vector.load %arg7[%c0_88, %c512_89] : memref<1x544xf32, #tpu.memory_space<vmem>>, vector<1x32xf32>
    %276 = vector.broadcast %275 : vector<1x32xf32> to vector<64x32xf32>
    %277 = arith.addf %274, %276 : vector<64x32xf32>
    %cst_90 = arith.constant 2.500000e-01 : f32
    %278 = vector.broadcast %cst_90 : f32 to vector<8x8x32xf32>
    %279 = arith.mulf %272, %278 : vector<8x8x32xf32>
    %280 = vector.shape_cast %277 : vector<64x32xf32> to vector<8x8x32xf32>
    %281 = arith.addf %279, %280 : vector<8x8x32xf32>
    %282 = vector.shape_cast %89 : vector<64x32xf32> to vector<8x8x32xf32>
    %283 = arith.addf %282, %281 : vector<8x8x32xf32>
    %cst_91 = arith.constant dense<0.000000e+00> : vector<8x8xf32>
    %284 = vector.multi_reduction <add>, %283, %cst_91 [2] : vector<8x8x32xf32> to vector<8x8xf32>
    %285 = vector.shape_cast %284 : vector<8x8xf32> to vector<8x8x1xf32>
    %cst_92 = arith.constant dense<0.000000e+00> : vector<8x1xf32>
    %286 = vector.multi_reduction <add>, %285, %cst_92 [1] : vector<8x8x1xf32> to vector<8x1xf32>
    %287 = vector.shape_cast %286 : vector<8x1xf32> to vector<8x1x1xf32>
    %cst_93 = arith.constant 3.906250e-03 : f32
    %288 = vector.broadcast %cst_93 : f32 to vector<8x1x1xf32>
    %289 = arith.mulf %287, %288 : vector<8x1x1xf32>
    %290 = vector.broadcast %289 : vector<8x1x1xf32> to vector<8x8x32xf32>
    %291 = arith.subf %283, %290 : vector<8x8x32xf32>
    %292 = arith.mulf %291, %291 : vector<8x8x32xf32>
    %cst_94 = arith.constant dense<0.000000e+00> : vector<8x8xf32>
    %293 = vector.multi_reduction <add>, %292, %cst_94 [2] : vector<8x8x32xf32> to vector<8x8xf32>
    %294 = vector.shape_cast %293 : vector<8x8xf32> to vector<8x8x1xf32>
    %cst_95 = arith.constant dense<0.000000e+00> : vector<8x1xf32>
    %295 = vector.multi_reduction <add>, %294, %cst_95 [1] : vector<8x8x1xf32> to vector<8x1xf32>
    %296 = vector.shape_cast %295 : vector<8x1xf32> to vector<8x1x1xf32>
    %cst_96 = arith.constant 3.906250e-03 : f32
    %297 = vector.broadcast %cst_96 : f32 to vector<8x1x1xf32>
    %298 = arith.mulf %296, %297 : vector<8x1x1xf32>
    %cst_97 = arith.constant 9.99999974E-6 : f32
    %299 = vector.broadcast %cst_97 : f32 to vector<8x1x1xf32>
    %300 = arith.addf %298, %299 : vector<8x1x1xf32>
    %301 = math.rsqrt %300 : vector<8x1x1xf32>
    %302 = vector.broadcast %301 : vector<8x1x1xf32> to vector<8x8x32xf32>
    %303 = arith.mulf %291, %302 : vector<8x8x32xf32>
    %c0_98 = arith.constant 0 : index
    %c0_99 = arith.constant 0 : index
    %c0_100 = arith.constant 0 : index
    %304 = vector.load %arg10[%c0_98, %c0_99, %c0_100] : memref<2x8x32xf32, #tpu.memory_space<vmem>>, vector<1x8x32xf32>
    %305 = vector.shape_cast %304 : vector<1x8x32xf32> to vector<8x32xf32>
    %306 = vector.shape_cast %305 : vector<8x32xf32> to vector<1x8x32xf32>
    %307 = vector.broadcast %306 : vector<1x8x32xf32> to vector<8x8x32xf32>
    %308 = arith.mulf %303, %307 : vector<8x8x32xf32>
    %c1_101 = arith.constant 1 : index
    %c0_102 = arith.constant 0 : index
    %c0_103 = arith.constant 0 : index
    %309 = vector.load %arg10[%c1_101, %c0_102, %c0_103] : memref<2x8x32xf32, #tpu.memory_space<vmem>>, vector<1x8x32xf32>
    %310 = vector.shape_cast %309 : vector<1x8x32xf32> to vector<8x32xf32>
    %311 = vector.shape_cast %310 : vector<8x32xf32> to vector<1x8x32xf32>
    %312 = vector.broadcast %311 : vector<1x8x32xf32> to vector<8x8x32xf32>
    %313 = arith.addf %308, %312 : vector<8x8x32xf32>
    %314 = vector.shape_cast %313 : vector<8x8x32xf32> to vector<64x32xf32>
    %c0_104 = arith.constant 0 : index
    %c0_105 = arith.constant 0 : index
    %c0_106 = arith.constant 0 : index
    %315 = vector.load %arg11[%c0_104, %c0_105, %c0_106] : memref<1x64x32xf32, #tpu.memory_space<vmem>>, vector<1x64x32xf32>
    %316 = vector.shape_cast %315 : vector<1x64x32xf32> to vector<64x32xf32>
    %317 = vector.shape_cast %314 : vector<64x32xf32> to vector<1x64x32xf32>
    tpu.vector_store %arg11[%c0_104, %c0_105, %c0_106], %317 {strides = array<i32>} : memref<1x64x32xf32, #tpu.memory_space<vmem>>, vector<1x64x32xf32>,
    return
  }
  func.func @transform_0(%arg0: i32) -> i32 {
    %c0_i32 = arith.constant 0 : i32
    %c0_i32_0 = arith.constant 0 : i32
    return %c0_i32 : i32
  }
  func.func @transform_1(%arg0: i32) -> (i32, i32, i32) {
    %c0_i32 = arith.constant 0 : i32
    %c0_i32_0 = arith.constant 0 : i32
    %c0_i32_1 = arith.constant 0 : i32
    return %arg0, %c0_i32, %c0_i32_0 : i32, i32, i32
  }
  func.func @transform_2(%arg0: i32) -> (i32, i32) {
    %c0_i32 = arith.constant 0 : i32
    %c0_i32_0 = arith.constant 0 : i32
    %c0_i32_1 = arith.constant 0 : i32
    return %c0_i32, %c0_i32_0 : i32, i32
  }
  func.func @transform_3(%arg0: i32) -> (i32, i32, i32) {
    %c0_i32 = arith.constant 0 : i32
    %c0_i32_0 = arith.constant 0 : i32
    %c0_i32_1 = arith.constant 0 : i32
    return %arg0, %c0_i32, %c0_i32_0 : i32, i32, i32
  }
  func.func @transform_4(%arg0: i32) -> (i32, i32, i32) {
    %c0_i32 = arith.constant 0 : i32
    %c0_i32_0 = arith.constant 0 : i32
    %c0_i32_1 = arith.constant 0 : i32
    return %arg0, %c0_i32, %c0_i32_0 : i32, i32, i32
  }
  func.func @transform_5(%arg0: i32) -> (i32, i32) {
    %c0_i32 = arith.constant 0 : i32
    %c0_i32_0 = arith.constant 0 : i32
    %c0_i32_1 = arith.constant 0 : i32
    return %c0_i32, %c0_i32_0 : i32, i32
  }
  func.func @transform_6(%arg0: i32) -> (i32, i32) {
    %c0_i32 = arith.constant 0 : i32
    %c0_i32_0 = arith.constant 0 : i32
    %c0_i32_1 = arith.constant 0 : i32
    return %c0_i32, %c0_i32_0 : i32, i32
  }
  func.func @transform_7(%arg0: i32) -> (i32, i32) {
    %c0_i32 = arith.constant 0 : i32
    %c0_i32_0 = arith.constant 0 : i32
    %c0_i32_1 = arith.constant 0 : i32
    return %c0_i32, %c0_i32_0 : i32, i32
  }
  func.func @transform_8(%arg0: i32) -> (i32, i32) {
    %c0_i32 = arith.constant 0 : i32
    %c0_i32_0 = arith.constant 0 : i32
    %c0_i32_1 = arith.constant 0 : i32
    return %c0_i32, %c0_i32_0 : i32, i32
  }
  func.func @transform_9(%arg0: i32) -> (i32, i32, i32) {
    %c0_i32 = arith.constant 0 : i32
    %c0_i32_0 = arith.constant 0 : i32
    %c0_i32_1 = arith.constant 0 : i32
    %c0_i32_2 = arith.constant 0 : i32
    return %c0_i32, %c0_i32_0, %c0_i32_1 : i32, i32, i32
  }
  func.func @transform_10(%arg0: i32) -> (i32, i32, i32) {
    %c0_i32 = arith.constant 0 : i32
    %c0_i32_0 = arith.constant 0 : i32
    %c0_i32_1 = arith.constant 0 : i32
    return %arg0, %c0_i32, %c0_i32_0 : i32, i32, i32
  }
}

</mosaic_0001>

<llo_original>
// kernel: tpu_custom_call.1
$region0: #{tpu_custom_call.1}
  #allocation0 [shape = 'u32[]', space=smem, size = 0x4, offset = 0x4, fixed_abs, tag = 'smem constant byte address 0x4 - core index']
  #allocation1 [shape = 'u32[72,128]{1,0:T(1,128)}', space=vmem, size = 0x9000, scoped, tag = 'internal scratch']
  %s0 = inlined_call_operand.hbm [shape: f32[4], index: 0, kind: input, shape index: {}]
  %s1 = inlined_call_operand.vmem [shape: f32[2,8,16], index: 1, kind: input, shape index: {}]
  %s2 = inlined_call_operand.hbm [shape: f32[8,8], index: 2, kind: input, shape index: {}]
  %s3 = inlined_call_operand.vmem [shape: f32[2,8,8], index: 3, kind: input, shape index: {}]
  %s4 = inlined_call_operand.vmem [shape: f32[2,64,32], index: 4, kind: input, shape index: {}]
  %s5 = inlined_call_operand.vmem [shape: f32[32,544], index: 5, kind: input, shape index: {}]
  %s6 = inlined_call_operand.vmem [shape: f32[1,544], index: 6, kind: input, shape index: {}]
  %s7 = inlined_call_operand.hbm [shape: f32[1,128], index: 7, kind: input, shape index: {}]
  %s8 = inlined_call_operand.hbm [shape: f32[2,32], index: 8, kind: input, shape index: {}]
  %s9 = inlined_call_operand.hbm [shape: f32[2,8,32], index: 9, kind: input, shape index: {}]
  %s10 = inlined_call_operand.vmem [shape: f32[2,64,32], index: 10, kind: output, shape index: {}]
  %s11 = sld [smem:[#allocation0]]
  $region93: #{tpu_custom_call.1} parent=0
    _
  %s13 = ssub.s32 1, %s11
  %s14 = scalar_select 0, %s13, %s11
  $region1: #{tpu_custom_call.1} parent=0
    #allocation2 [shape = 'u8[512]{0}', space=smem, size = 0x200, scoped, tag = 'input window, operand 0, single buffered']
    #allocation3 [shape = 's32[2]{0}', space=sflag, size = 0x8, scoped, tag = 'scoped memory for tpu_custom_call.1']
    #allocation4 [shape = 's32[2]{0}', space=sflag, size = 0x8, scoped, tag = 'scoped memory for tpu_custom_call.1']
    #allocation5 [shape = 'u8[4096]{0}', space=vmem, size = 0x1000, scoped, tag = 'input window, operand 2, single buffered']
    #allocation6 [shape = 'u8[512]{0}', space=vmem, size = 0x400, scoped, tag = 'input window, operand 7, single buffered']
    #allocation7 [shape = 's32[1]{0}', space=sflag, size = 0x4, scoped, tag = 'scoped memory for tpu_custom_call.1']
    #allocation8 [shape = 'u8[1024]{0}', space=vmem, size = 0x400, scoped, tag = 'input window, operand 8, single buffered']
    #allocation9 [shape = 'u8[8192]{0}', space=vmem, size = 0x2000, scoped, tag = 'input window, operand 9, single buffered']
    #allocation10 [shape = 's32[1]{0}', space=sflag, size = 0x4, scoped, tag = 'scoped memory for tpu_custom_call.1']
    %15 = vsyncpa [#allocation4], 0
    %16 = vsyncpa [#allocation3], 0
    %17 = vsyncpa [#allocation7], 0
    %18 = vsyncpa [#allocation10], 0
    loop: start=0, step=1, limit=4
    $region2: #{tpu_custom_call.1} parent=1 // loop_pre_header
      _
    $region3: #{tpu_custom_call.1} parent=1 // loop_header
      %s20 = sphi 0, %s24
      %p21 = scmp.ge.s32.totalorder %s20, 4
      %s28 = sphi 0, %s28
      %s30 = sphi 0, %s28
      %s31 = sphi 0, %s30
      %s45 = sphi 0, %s31
      %s51 = sphi 0, %s53
      %s54 = sphi 0, %s51
      %s55 = sphi 0, %s54
      %s71 = sphi 0, %s55
      %s75 = sphi 0, %s75
      %s77 = sphi 0, %s75
      %s78 = sphi 0, %s77
      %s92 = sphi 0, %s78
      %s98 = sphi 0, %s100
      %s101 = sphi 0, %s98
      %s102 = sphi 0, %s101
      %s118 = sphi 0, %s102
      %s124 = sphi 0, %s126
      %s127 = sphi 0, %s124
      %s128 = sphi 0, %s127
      %s144 = sphi 0, %s128
      %s148 = sphi 0, %s148
      %s150 = sphi 0, %s148
      %s151 = sphi 0, %s150
      %s165 = sphi 0, %s151
      %s169 = sphi 0, %s169
      %s171 = sphi 0, %s169
      %s172 = sphi 0, %s171
      %s186 = sphi 0, %s172
      %s190 = sphi 0, %s190
      %s192 = sphi 0, %s190
      %s193 = sphi 0, %s192
      %s207 = sphi 0, %s193
      %s211 = sphi 0, %s211
      %s213 = sphi 0, %s211
      %s214 = sphi 0, %s213
      %s228 = sphi 0, %s214
      %s232 = sphi 0, %s232
      %s234 = sphi 0, %s232
      %s235 = sphi 0, %s234
      %s249 = sphi 0, %s235
      %s255 = sphi 0, %s257
      %s258 = sphi 0, %s255
      %s259 = sphi 0, %s258
      %s275 = sphi 0, %s259
    $region4: #{tpu_custom_call.1} parent=1 // loop_header_branch
      %23 = sbr.rel (%p21) target = $region8
    $region5: #{tpu_custom_call.1} parent=1 // loop_body
      %s25 = ssub.s32 %s20, 1
      %s26 = ssub.s32 %s20, 2
      %s27 = sadd.s32 %s20, 1
      %s29 = sadd.s32 %s28, 1
      %p32 = scmp.eq.s32.totalorder %s20, 1
      %p33 = scmp.ne.s32.totalorder %s28, %s30
      %p34 = scmp.eq.s32.totalorder %s20, 0
      %p35 = por %p33, %p34
      %p36 = scmp.ne.s32.totalorder %s28, %s30
      %p37 = scmp.eq.s32.totalorder %s25, 1
      %p38 = por %p36, %p37
      %p39 = scmp.ne.s32.totalorder %s30, %s31
      %p40 = scmp.eq.s32.totalorder %s25, 0
      %p41 = por %p39, %p40
      %p42 = scmp.ne.s32.totalorder %s30, %s31
      %p43 = scmp.eq.s32.totalorder %s26, 1
      %p44 = por %p42, %p43
      %p46 = scmp.ne.s32.totalorder %s31, %s45
      %p47 = scmp.eq.s32.totalorder %s26, 0
      %p48 = por %p46, %p47
      %s49 = ssub.s32 %s20, %s27
      %p50 = scmp.eq.s32.totalorder %s49, 0
      %s52 = sadd.s32 %s51, 1
      %s53 = scalar_select %p50, %s51, %s52
      %p56 = pneg %p50
      %p57 = scmp.eq.s32.totalorder %s20, 1
      %p58 = por %p56, %p57
      %p59 = scmp.ne.s32.totalorder %s51, %s54
      %p60 = scmp.eq.s32.totalorder %s20, 0
      %p61 = por %p59, %p60
      %p62 = scmp.ne.s32.totalorder %s51, %s54
      %p63 = scmp.eq.s32.totalorder %s25, 1
      %p64 = por %p62, %p63
      %p65 = scmp.ne.s32.totalorder %s54, %s55
      %p66 = scmp.eq.s32.totalorder %s25, 0
      %p67 = por %p65, %p66
      %p68 = scmp.ne.s32.totalorder %s54, %s55
      %p69 = scmp.eq.s32.totalorder %s26, 1
      %p70 = por %p68, %p69
      %p72 = scmp.ne.s32.totalorder %s55, %s71
      %p73 = scmp.eq.s32.totalorder %s26, 0
      %p74 = por %p72, %p73
      %s76 = sadd.s32 %s75, 1
      %p79 = scmp.eq.s32.totalorder %s20, 1
      %p80 = scmp.ne.s32.totalorder %s75, %s77
      %p81 = scmp.eq.s32.totalorder %s20, 0
      %p82 = por %p80, %p81
      %p83 = scmp.ne.s32.totalorder %s75, %s77
      %p84 = scmp.eq.s32.totalorder %s25, 1
      %p85 = por %p83, %p84
      %p86 = scmp.ne.s32.totalorder %s77, %s78
      %p87 = scmp.eq.s32.totalorder %s25, 0
      %p88 = por %p86, %p87
      %p89 = scmp.ne.s32.totalorder %s77, %s78
      %p90 = scmp.eq.s32.totalorder %s26, 1
      %p91 = por %p89, %p90
      %p93 = scmp.ne.s32.totalorder %s78, %s92
      %p94 = scmp.eq.s32.totalorder %s26, 0
      %p95 = por %p93, %p94
      %s96 = ssub.s32 %s20, %s27
      %p97 = scmp.eq.s32.totalorder %s96, 0
      %s99 = sadd.s32 %s98, 1
      %s100 = scalar_select %p97, %s98, %s99
      %p103 = pneg %p97
      %p104 = scmp.eq.s32.totalorder %s20, 1
      %p105 = por %p103, %p104
      %p106 = scmp.ne.s32.totalorder %s98, %s101
      %p107 = scmp.eq.s32.totalorder %s20, 0
      %p108 = por %p106, %p107
      %p109 = scmp.ne.s32.totalorder %s98, %s101
      %p110 = scmp.eq.s32.totalorder %s25, 1
      %p111 = por %p109, %p110
      %p112 = scmp.ne.s32.totalorder %s101, %s102
      %p113 = scmp.eq.s32.totalorder %s25, 0
      %p114 = por %p112, %p113
      %p115 = scmp.ne.s32.totalorder %s101, %s102
      %p116 = scmp.eq.s32.totalorder %s26, 1
      %p117 = por %p115, %p116
      %p119 = scmp.ne.s32.totalorder %s102, %s118
      %p120 = scmp.eq.s32.totalorder %s26, 0
      %p121 = por %p119, %p120
      %s122 = ssub.s32 %s20, %s27
      %p123 = scmp.eq.s32.totalorder %s122, 0
      %s125 = sadd.s32 %s124, 1
      %s126 = scalar_select %p123, %s124, %s125
      %p129 = pneg %p123
      %p130 = scmp.eq.s32.totalorder %s20, 1
      %p131 = por %p129, %p130
      %p132 = scmp.ne.s32.totalorder %s124, %s127
      %p133 = scmp.eq.s32.totalorder %s20, 0
      %p134 = por %p132, %p133
      %p135 = scmp.ne.s32.totalorder %s124, %s127
      %p136 = scmp.eq.s32.totalorder %s25, 1
      %p137 = por %p135, %p136
      %p138 = scmp.ne.s32.totalorder %s127, %s128
      %p139 = scmp.eq.s32.totalorder %s25, 0
      %p140 = por %p138, %p139
      %p141 = scmp.ne.s32.totalorder %s127, %s128
      %p142 = scmp.eq.s32.totalorder %s26, 1
      %p143 = por %p141, %p142
      %p145 = scmp.ne.s32.totalorder %s128, %s144
      %p146 = scmp.eq.s32.totalorder %s26, 0
      %p147 = por %p145, %p146
      %s149 = sadd.s32 %s148, 1
      %p152 = scmp.eq.s32.totalorder %s20, 1
      %p153 = scmp.ne.s32.totalorder %s148, %s150
      %p154 = scmp.eq.s32.totalorder %s20, 0
      %p155 = por %p153, %p154
      %p156 = scmp.ne.s32.totalorder %s148, %s150
      %p157 = scmp.eq.s32.totalorder %s25, 1
      %p158 = por %p156, %p157
      %p159 = scmp.ne.s32.totalorder %s150, %s151
      %p160 = scmp.eq.s32.totalorder %s25, 0
      %p161 = por %p159, %p160
      %p162 = scmp.ne.s32.totalorder %s150, %s151
      %p163 = scmp.eq.s32.totalorder %s26, 1
      %p164 = por %p162, %p163
      %p166 = scmp.ne.s32.totalorder %s151, %s165
      %p167 = scmp.eq.s32.totalorder %s26, 0
      %p168 = por %p166, %p167
      %s170 = sadd.s32 %s169, 1
      %p173 = scmp.eq.s32.totalorder %s20, 1
      %p174 = scmp.ne.s32.totalorder %s169, %s171
      %p175 = scmp.eq.s32.totalorder %s20, 0
      %p176 = por %p174, %p175
      %p177 = scmp.ne.s32.totalorder %s169, %s171
      %p178 = scmp.eq.s32.totalorder %s25, 1
      %p179 = por %p177, %p178
      %p180 = scmp.ne.s32.totalorder %s171, %s172
      %p181 = scmp.eq.s32.totalorder %s25, 0
      %p182 = por %p180, %p181
      %p183 = scmp.ne.s32.totalorder %s171, %s172
      %p184 = scmp.eq.s32.totalorder %s26, 1
      %p185 = por %p183, %p184
      %p187 = scmp.ne.s32.totalorder %s172, %s186
      %p188 = scmp.eq.s32.totalorder %s26, 0
      %p189 = por %p187, %p188
      %s191 = sadd.s32 %s190, 1
      %p194 = scmp.eq.s32.totalorder %s20, 1
      %p195 = scmp.ne.s32.totalorder %s190, %s192
      %p196 = scmp.eq.s32.totalorder %s20, 0
      %p197 = por %p195, %p196
      %p198 = scmp.ne.s32.totalorder %s190, %s192
      %p199 = scmp.eq.s32.totalorder %s25, 1
      %p200 = por %p198, %p199
      %p201 = scmp.ne.s32.totalorder %s192, %s193
      %p202 = scmp.eq.s32.totalorder %s25, 0
      %p203 = por %p201, %p202
      %p204 = scmp.ne.s32.totalorder %s192, %s193
      %p205 = scmp.eq.s32.totalorder %s26, 1
      %p206 = por %p204, %p205
      %p208 = scmp.ne.s32.totalorder %s193, %s207
      %p209 = scmp.eq.s32.totalorder %s26, 0
      %p210 = por %p208, %p209
      %s212 = sadd.s32 %s211, 1
      %p215 = scmp.eq.s32.totalorder %s20, 1
      %p216 = scmp.ne.s32.totalorder %s211, %s213
      %p217 = scmp.eq.s32.totalorder %s20, 0
      %p218 = por %p216, %p217
      %p219 = scmp.ne.s32.totalorder %s211, %s213
      %p220 = scmp.eq.s32.totalorder %s25, 1
      %p221 = por %p219, %p220
      %p222 = scmp.ne.s32.totalorder %s213, %s214
      %p223 = scmp.eq.s32.totalorder %s25, 0
      %p224 = por %p222, %p223
      %p225 = scmp.ne.s32.totalorder %s213, %s214
      %p226 = scmp.eq.s32.totalorder %s26, 1
      %p227 = por %p225, %p226
      %p229 = scmp.ne.s32.totalorder %s214, %s228
      %p230 = scmp.eq.s32.totalorder %s26, 0
      %p231 = por %p229, %p230
      %s233 = sadd.s32 %s232, 1
      %p236 = scmp.eq.s32.totalorder %s20, 1
      %p237 = scmp.ne.s32.totalorder %s232, %s234
      %p238 = scmp.eq.s32.totalorder %s20, 0
      %p239 = por %p237, %p238
      %p240 = scmp.ne.s32.totalorder %s232, %s234
      %p241 = scmp.eq.s32.totalorder %s25, 1
      %p242 = por %p240, %p241
      %p243 = scmp.ne.s32.totalorder %s234, %s235
      %p244 = scmp.eq.s32.totalorder %s25, 0
      %p245 = por %p243, %p244
      %p246 = scmp.ne.s32.totalorder %s234, %s235
      %p247 = scmp.eq.s32.totalorder %s26, 1
      %p248 = por %p246, %p247
      %p250 = scmp.ne.s32.totalorder %s235, %s249
      %p251 = scmp.eq.s32.totalorder %s26, 0
      %p252 = por %p250, %p251
      %s253 = ssub.s32 %s20, %s27
      %p254 = scmp.eq.s32.totalorder %s253, 0
      %s256 = sadd.s32 %s255, 1
      %s257 = scalar_select %p254, %s255, %s256
      %p260 = pneg %p254
      %p261 = scmp.eq.s32.totalorder %s20, 1
      %p262 = por %p260, %p261
      %p263 = scmp.ne.s32.totalorder %s255, %s258
      %p264 = scmp.eq.s32.totalorder %s20, 0
      %p265 = por %p263, %p264
      %p266 = scmp.ne.s32.totalorder %s255, %s258
      %p267 = scmp.eq.s32.totalorder %s25, 1
      %p268 = por %p266, %p267
      %p269 = scmp.ne.s32.totalorder %s258, %s259
      %p270 = scmp.eq.s32.totalorder %s25, 0
      %p271 = por %p269, %p270
      %p272 = scmp.ne.s32.totalorder %s258, %s259
      %p273 = scmp.eq.s32.totalorder %s26, 1
      %p274 = por %p272, %p273
      %p276 = scmp.ne.s32.totalorder %s259, %s275
      %p277 = scmp.eq.s32.totalorder %s26, 0
      %p278 = por %p276, %p277
      %p279 = scmp.le.s32.totalorder 1, %s20
      %p280 = scmp.lt.s32.totalorder %s20, 3
      %p281 = pnand %p279, %p280
      %p282 = pneg %p281
      // Predicated region
      $region9: #{tpu_custom_call.1} parent=5 // pred_check
        _
      $region10: #{tpu_custom_call.1} parent=5 // pred_check_branch
        %284 = sbr.rel (%p281) target = $region12
      $region11: #{tpu_custom_call.1} parent=5 // pred_region
        %s285 = ssub.s32 %s20, 1
        // Predicated region
        $region13: #{tpu_custom_call.1} parent=11 // pred_check
          %p286 = pneg %p41
        $region14: #{tpu_custom_call.1} parent=11 // pred_check_branch
          %288 = sbr.rel (%p286) target = $region16
        $region15: #{tpu_custom_call.1} parent=11 // pred_region
          %290 = vsyncadd [#allocation4], 0
          %s292 = sshll.u32 %s0, 4
          %s293 = int_to_ptr.hbm [resolvable:$true] %s292
          %295 = dma.hbm_to_smem %s293, 16, [#allocation2], [#allocation4]
        $region16: #{tpu_custom_call.1} parent=11 // pred_fallthru
          _
        // Predicated region
        $region17: #{tpu_custom_call.1} parent=11 // pred_check
          %p296 = pneg %p88
        $region18: #{tpu_custom_call.1} parent=11 // pred_check_branch
          %298 = sbr.rel (%p296) target = $region20
        $region19: #{tpu_custom_call.1} parent=11 // pred_region
          %300 = vsyncadd [#allocation3], 0
          %s302 = sshll.u32 %s2, 4
          %s303 = int_to_ptr.hbm [resolvable:$true] %s302
          %s304 = sshll.u32 [#allocation5], 4
          %s305 = int_to_ptr.vmem [resolvable:$true] %s304
          %307 = dma.hbm_to_vmem [thread:$0]  %s303, 128, %s305, [#allocation3]
        $region20: #{tpu_custom_call.1} parent=11 // pred_fallthru
          _
        // Predicated region
        $region21: #{tpu_custom_call.1} parent=11 // pred_check
          %p308 = pneg %p161
        $region22: #{tpu_custom_call.1} parent=11 // pred_check_branch
          %310 = sbr.rel (%p308) target = $region24
        $region23: #{tpu_custom_call.1} parent=11 // pred_region
          _
        $region24: #{tpu_custom_call.1} parent=11 // pred_fallthru
          _
        // Predicated region
        $region25: #{tpu_custom_call.1} parent=11 // pred_check
          %p311 = pneg %p182
        $region26: #{tpu_custom_call.1} parent=11 // pred_check_branch
          %313 = sbr.rel (%p311) target = $region28
        $region27: #{tpu_custom_call.1} parent=11 // pred_region
          _
        $region28: #{tpu_custom_call.1} parent=11 // pred_fallthru
          _
        // Predicated region
        $region29: #{tpu_custom_call.1} parent=11 // pred_check
          %p314 = pneg %p203
        $region30: #{tpu_custom_call.1} parent=11 // pred_check_branch
          %316 = sbr.rel (%p314) target = $region32
        $region31: #{tpu_custom_call.1} parent=11 // pred_region
          %318 = vsyncadd [#allocation7], 0
          %s320 = sshll.u32 %s7, 4
          %s321 = int_to_ptr.hbm [resolvable:$true] %s320
          %s322 = sshll.u32 [#allocation6], 4
          %s323 = int_to_ptr.vmem [resolvable:$true] %s322
          %325 = dma.hbm_to_vmem [thread:$0]  %s321, 16, %s323, [#allocation7]
        $region32: #{tpu_custom_call.1} parent=11 // pred_fallthru
          _
        // Predicated region
        $region33: #{tpu_custom_call.1} parent=11 // pred_check
          %p326 = pneg %p224
        $region34: #{tpu_custom_call.1} parent=11 // pred_check_branch
          %328 = sbr.rel (%p326) target = $region36
        $region35: #{tpu_custom_call.1} parent=11 // pred_region
          %330 = vsyncadd [#allocation7], 0
          %s332 = sshll.u32 %s8, 4
          %s333 = int_to_ptr.hbm [resolvable:$true] %s332
          %s334 = sshll.u32 [#allocation8], 4
          %s335 = int_to_ptr.vmem [resolvable:$true] %s334
          %337 = dma.hbm_to_vmem [thread:$0]  %s333, 32, %s335, [#allocation7]
        $region36: #{tpu_custom_call.1} parent=11 // pred_fallthru
          _
        // Predicated region
        $region37: #{tpu_custom_call.1} parent=11 // pred_check
          %p338 = pneg %p245
        $region38: #{tpu_custom_call.1} parent=11 // pred_check_branch
          %340 = sbr.rel (%p338) target = $region40
        $region39: #{tpu_custom_call.1} parent=11 // pred_region
          %342 = vsyncadd [#allocation10], 0
          %s343 = sshll.u32 %s9, 4
          %s344 = int_to_ptr.hbm [resolvable:$true] %s343
          %s345 = sshll.u32 [#allocation9], 4
          %s346 = int_to_ptr.vmem [resolvable:$true] %s345
          %351 = dma.hbm_to_vmem [thread:$0]  %s344, 256, %s346, [#allocation10], 128, 128, 8
        $region40: #{tpu_custom_call.1} parent=11 // pred_fallthru
          _
      $region12: #{tpu_custom_call.1} parent=5 // pred_fallthru
        _
      %p352 = scmp.lt.s32.totalorder %s20, 2
      // Predicated region
      $region41: #{tpu_custom_call.1} parent=5 // pred_check
        %p353 = pneg %p352
      $region42: #{tpu_custom_call.1} parent=5 // pred_check_branch
        %355 = sbr.rel (%p353) target = $region44
      $region43: #{tpu_custom_call.1} parent=5 // pred_region
        // Predicated region
        $region45: #{tpu_custom_call.1} parent=43 // pred_check
          %p356 = pneg %p61
        $region46: #{tpu_custom_call.1} parent=43 // pred_check_branch
          %358 = sbr.rel (%p356) target = $region48
        $region47: #{tpu_custom_call.1} parent=43 // pred_region
          %p359 = scmp.lt.s32.totalorder %s20, 1
          %s360 = scalar_select %p359, %s20, 1
          %s361 = smul.addr %s360, 8
          %s362 = scalar_lea.vmem %s1, %s361
        $region48: #{tpu_custom_call.1} parent=43 // pred_fallthru
          _
        // Predicated region
        $region49: #{tpu_custom_call.1} parent=43 // pred_check
          %p363 = pneg %p108
        $region50: #{tpu_custom_call.1} parent=43 // pred_check_branch
          %365 = sbr.rel (%p363) target = $region52
        $region51: #{tpu_custom_call.1} parent=43 // pred_region
          %p366 = scmp.lt.s32.totalorder %s20, 1
          %s367 = scalar_select %p366, %s20, 1
          %s368 = smul.addr %s367, 8
          %s369 = scalar_lea.vmem %s3, %s368
        $region52: #{tpu_custom_call.1} parent=43 // pred_fallthru
          _
        // Predicated region
        $region53: #{tpu_custom_call.1} parent=43 // pred_check
          %p370 = pneg %p134
        $region54: #{tpu_custom_call.1} parent=43 // pred_check_branch
          %372 = sbr.rel (%p370) target = $region56
        $region55: #{tpu_custom_call.1} parent=43 // pred_region
          %p373 = scmp.lt.s32.totalorder %s20, 1
          %s374 = scalar_select %p373, %s20, 1
          %s375 = smul.addr %s374, 8
          %s376 = smul.addr %s375, 8
          %s377 = scalar_lea.vmem %s4, %s376
        $region56: #{tpu_custom_call.1} parent=43 // pred_fallthru
          _
      $region44: #{tpu_custom_call.1} parent=5 // pred_fallthru
        _
      %p378 = scmp.le.s32.totalorder 1, %s20
      %p379 = scmp.lt.s32.totalorder %s20, 3
      %p380 = pnand %p378, %p379
      %p381 = pneg %p380
      // Predicated region
      $region57: #{tpu_custom_call.1} parent=5 // pred_check
        _
      $region58: #{tpu_custom_call.1} parent=5 // pred_check_branch
        %383 = sbr.rel (%p380) target = $region60
      $region59: #{tpu_custom_call.1} parent=5 // pred_region
        %s384 = ssub.s32 %s20, 1
        // Predicated region
        $region61: #{tpu_custom_call.1} parent=59 // pred_check
          %p385 = pneg %p41
        $region62: #{tpu_custom_call.1} parent=59 // pred_check_branch
          %387 = sbr.rel (%p385) target = $region64
        $region63: #{tpu_custom_call.1} parent=59 // pred_region
          %389 = dma.done [#allocation4], 16
        $region64: #{tpu_custom_call.1} parent=59 // pred_fallthru
          _
        // Predicated region
        $region65: #{tpu_custom_call.1} parent=59 // pred_check
          %p390 = pneg %p88
        $region66: #{tpu_custom_call.1} parent=59 // pred_check_branch
          %392 = sbr.rel (%p390) target = $region68
        $region67: #{tpu_custom_call.1} parent=59 // pred_region
          %394 = dma.done [#allocation3], 128
        $region68: #{tpu_custom_call.1} parent=59 // pred_fallthru
          _
        // Predicated region
        $region69: #{tpu_custom_call.1} parent=59 // pred_check
          %p395 = pneg %p203
        $region70: #{tpu_custom_call.1} parent=59 // pred_check_branch
          %397 = sbr.rel (%p395) target = $region72
        $region71: #{tpu_custom_call.1} parent=59 // pred_region
          %399 = dma.done [#allocation7], 16
        $region72: #{tpu_custom_call.1} parent=59 // pred_fallthru
          _
        // Predicated region
        $region73: #{tpu_custom_call.1} parent=59 // pred_check
          %p400 = pneg %p224
        $region74: #{tpu_custom_call.1} parent=59 // pred_check_branch
          %402 = sbr.rel (%p400) target = $region76
        $region75: #{tpu_custom_call.1} parent=59 // pred_region
          %404 = dma.done [#allocation7], 32
        $region76: #{tpu_custom_call.1} parent=59 // pred_fallthru
          _
        // Predicated region
        $region77: #{tpu_custom_call.1} parent=59 // pred_check
          %p405 = pneg %p245
        $region78: #{tpu_custom_call.1} parent=59 // pred_check_branch
          %407 = sbr.rel (%p405) target = $region80
        $region79: #{tpu_custom_call.1} parent=59 // pred_region
          %409 = dma.done [#allocation10], 256
        $region80: #{tpu_custom_call.1} parent=59 // pred_fallthru
          _
        %410 = sfence
        %p411 = pneg %p41
        %p412 = pneg %p38
        %p413 = scmp.lt.s32.totalorder %s25, 1
        %s414 = scalar_select %p413, %s25, 1
        %s415 = smul.addr %s414, 8
        %s416 = scalar_lea.vmem %s1, %s415
        %p417 = pneg %p67
        %p418 = pneg %p64
        %p419 = pneg %p88
        %p420 = pneg %p85
        %p421 = scmp.lt.s32.totalorder %s25, 1
        %s422 = scalar_select %p421, %s25, 1
        %s423 = smul.addr %s422, 8
        %s424 = scalar_lea.vmem %s3, %s423
        %p425 = pneg %p114
        %p426 = pneg %p111
        %p427 = scmp.lt.s32.totalorder %s25, 1
        %s428 = scalar_select %p427, %s25, 1
        %s429 = smul.addr %s428, 8
        %s430 = smul.addr %s429, 8
        %s431 = scalar_lea.vmem %s4, %s430
        %p432 = pneg %p140
        %p433 = pneg %p137
        %p434 = pneg %p161
        %p435 = pneg %p158
        %p436 = pneg %p182
        %p437 = pneg %p179
        %p438 = pneg %p203
        %p439 = pneg %p200
        %p440 = pneg %p224
        %p441 = pneg %p221
        %p442 = pneg %p245
        %p443 = pneg %p242
        %p444 = pneg %p271
        %p445 = pneg %p268
        %p446 = scmp.lt.s32.totalorder %s25, 1
        %s447 = scalar_select %p446, %s25, 1
        %s448 = smul.addr %s447, 8
        %s449 = smul.addr %s448, 8
        %s450 = scalar_lea.vmem %s10, %s449
        %p451 = scmp.lt.s32.totalorder %s25, 1
        %s452 = scalar_select %p451, %s25, 1
        %s453 = smul.addr %s452, 8
        %s454 = scalar_lea.vmem %s1, %s453
        %p455 = scmp.lt.s32.totalorder %s25, 1
        %s456 = scalar_select %p455, %s25, 1
        %s457 = smul.addr %s456, 8
        %s458 = scalar_lea.vmem %s3, %s457
        %p459 = scmp.lt.s32.totalorder %s25, 1
        %s460 = scalar_select %p459, %s25, 1
        %s461 = smul.addr %s460, 8
        %s462 = smul.addr %s461, 8
        %s463 = scalar_lea.vmem %s4, %s462
        %p464 = scmp.lt.s32.totalorder %s25, 1
        %s465 = scalar_select %p464, %s25, 1
        %s466 = smul.addr %s465, 8
        %s467 = smul.addr %s466, 8
        %s468 = scalar_lea.vmem %s10, %s467
        %s469 = sld [smem:[#allocation2]]
        %s470 = sld [smem:[#allocation2 + $0x1]]
        %s471 = sld [smem:[#allocation2 + $0x2]]
        %s472 = sld [smem:[#allocation2 + $0x3]]
        %v473 = vld [vmem:[%s454] sm:$0xff]
        %v475 = vrot.slane %v473, 1
        %v476 = vrot.slane %v473, 2
        %v477 = vrot.slane %v473, 3
        %v478 = vrot.slane %v473, 4
        %v479 = vrot.slane %v473, 5
        %v480 = vrot.slane %v473, 6
        %v481 = vrot.slane %v473, 7
        %v482 = vperm.slane %v473, 0
        %v483 = vperm.slane %v475, 0
        %v484 = vperm.slane %v476, 0
        %v485 = vperm.slane %v477, 0
        %v486 = vperm.slane %v478, 0
        %v487 = vperm.slane %v479, 0
        %v488 = vperm.slane %v480, 0
        %v489 = vperm.slane %v481, 0
        %v498 = vsub.f32 %v482, %v473
        %v499 = vsub.f32 %v483, %v473
        %v500 = vsub.f32 %v484, %v473
        %v501 = vsub.f32 %v485, %v473
        %v502 = vsub.f32 %v486, %v473
        %v503 = vsub.f32 %v487, %v473
        %v504 = vsub.f32 %v488, %v473
        %v505 = vsub.f32 %v489, %v473
        %v506 = vmul.f32 %v498, %v498
        %v507 = vmul.f32 %v499, %v499
        %v508 = vmul.f32 %v500, %v500
        %v509 = vmul.f32 %v501, %v501
        %v510 = vmul.f32 %v502, %v502
        %v511 = vmul.f32 %v503, %v503
        %v512 = vmul.f32 %v504, %v504
        %v513 = vmul.f32 %v505, %v505
        %vm514 = vcmask 130048
        %v515 = vsel %vm514, %v506, 0.0
        %516 = vadd.xlane.f32.xlu0 %v515
        %v517 = vpop.xlane.xlu0 %516
        %v518 = vsel %vm514, %v507, 0.0
        %519 = vadd.xlane.f32.xlu0 %v518
        %v520 = vpop.xlane.xlu0 %519
        %v521 = vsel %vm514, %v508, 0.0
        %522 = vadd.xlane.f32.xlu0 %v521
        %v523 = vpop.xlane.xlu0 %522
        %v524 = vsel %vm514, %v509, 0.0
        %525 = vadd.xlane.f32.xlu0 %v524
        %v526 = vpop.xlane.xlu0 %525
        %v527 = vsel %vm514, %v510, 0.0
        %528 = vadd.xlane.f32.xlu0 %v527
        %v529 = vpop.xlane.xlu0 %528
        %v530 = vsel %vm514, %v511, 0.0
        %531 = vadd.xlane.f32.xlu0 %v530
        %v532 = vpop.xlane.xlu0 %531
        %v533 = vsel %vm514, %v512, 0.0
        %534 = vadd.xlane.f32.xlu0 %v533
        %v535 = vpop.xlane.xlu0 %534
        %v536 = vsel %vm514, %v513, 0.0
        %537 = vadd.xlane.f32.xlu0 %v536
        %v538 = vpop.xlane.xlu0 %537
        %v539 = vrsqrt.pop %v517
        %v540 = vmul.f32 %v539, %v517
        %v541 = vmul.f32 %v540, %v539
        %v542 = vmul.f32 0.5, %v541
        %v543 = vsub.f32 1.5, %v542
        %v544 = vmul.f32 %v539, %v543
        %v545 = vmul.f32 %v517, %v544
        %vm546 = vcmp.eq.f32.partialorder %v517, inf
        %v547 = vsel %vm546, %v517, %v545
        %vm548 = vcmp.eq.f32.partialorder %v517, 0.0
        %v549 = vand.u32 %v517, 2147483648
        %v550 = vsel %vm548, %v549, %v547
        %v551 = vrsqrt.pop %v520
        %v552 = vmul.f32 %v551, %v520
        %v553 = vmul.f32 %v552, %v551
        %v554 = vmul.f32 0.5, %v553
        %v555 = vsub.f32 1.5, %v554
        %v556 = vmul.f32 %v551, %v555
        %v557 = vmul.f32 %v520, %v556
        %vm558 = vcmp.eq.f32.partialorder %v520, inf
        %v559 = vsel %vm558, %v520, %v557
        %vm560 = vcmp.eq.f32.partialorder %v520, 0.0
        %v561 = vand.u32 %v520, 2147483648
        %v562 = vsel %vm560, %v561, %v559
        %v563 = vrsqrt.pop %v523
        %v564 = vmul.f32 %v563, %v523
        %v565 = vmul.f32 %v564, %v563
        %v566 = vmul.f32 0.5, %v565
        %v567 = vsub.f32 1.5, %v566
        %v568 = vmul.f32 %v563, %v567
        %v569 = vmul.f32 %v523, %v568
        %vm570 = vcmp.eq.f32.partialorder %v523, inf
        %v571 = vsel %vm570, %v523, %v569
        %vm572 = vcmp.eq.f32.partialorder %v523, 0.0
        %v573 = vand.u32 %v523, 2147483648
        %v574 = vsel %vm572, %v573, %v571
        %v575 = vrsqrt.pop %v526
        %v576 = vmul.f32 %v575, %v526
        %v577 = vmul.f32 %v576, %v575
        %v578 = vmul.f32 0.5, %v577
        %v579 = vsub.f32 1.5, %v578
        %v580 = vmul.f32 %v575, %v579
        %v581 = vmul.f32 %v526, %v580
        %vm582 = vcmp.eq.f32.partialorder %v526, inf
        %v583 = vsel %vm582, %v526, %v581
        %vm584 = vcmp.eq.f32.partialorder %v526, 0.0
        %v585 = vand.u32 %v526, 2147483648
        %v586 = vsel %vm584, %v585, %v583
        %v587 = vrsqrt.pop %v529
        %v588 = vmul.f32 %v587, %v529
        %v589 = vmul.f32 %v588, %v587
        %v590 = vmul.f32 0.5, %v589
        %v591 = vsub.f32 1.5, %v590
        %v592 = vmul.f32 %v587, %v591
        %v593 = vmul.f32 %v529, %v592
        %vm594 = vcmp.eq.f32.partialorder %v529, inf
        %v595 = vsel %vm594, %v529, %v593
        %vm596 = vcmp.eq.f32.partialorder %v529, 0.0
        %v597 = vand.u32 %v529, 2147483648
        %v598 = vsel %vm596, %v597, %v595
        %v599 = vrsqrt.pop %v532
        %v600 = vmul.f32 %v599, %v532
        %v601 = vmul.f32 %v600, %v599
        %v602 = vmul.f32 0.5, %v601
        %v603 = vsub.f32 1.5, %v602
        %v604 = vmul.f32 %v599, %v603
        %v605 = vmul.f32 %v532, %v604
        %vm606 = vcmp.eq.f32.partialorder %v532, inf
        %v607 = vsel %vm606, %v532, %v605
        %vm608 = vcmp.eq.f32.partialorder %v532, 0.0
        %v609 = vand.u32 %v532, 2147483648
        %v610 = vsel %vm608, %v609, %v607
        %v611 = vrsqrt.pop %v535
        %v612 = vmul.f32 %v611, %v535
        %v613 = vmul.f32 %v612, %v611
        %v614 = vmul.f32 0.5, %v613
        %v615 = vsub.f32 1.5, %v614
        %v616 = vmul.f32 %v611, %v615
        %v617 = vmul.f32 %v535, %v616
        %vm618 = vcmp.eq.f32.partialorder %v535, inf
        %v619 = vsel %vm618, %v535, %v617
        %vm620 = vcmp.eq.f32.partialorder %v535, 0.0
        %v621 = vand.u32 %v535, 2147483648
        %v622 = vsel %vm620, %v621, %v619
        %v623 = vrsqrt.pop %v538
        %v624 = vmul.f32 %v623, %v538
        %v625 = vmul.f32 %v624, %v623
        %v626 = vmul.f32 0.5, %v625
        %v627 = vsub.f32 1.5, %v626
        %v628 = vmul.f32 %v623, %v627
        %v629 = vmul.f32 %v538, %v628
        %vm630 = vcmp.eq.f32.partialorder %v538, inf
        %v631 = vsel %vm630, %v538, %v629
        %vm632 = vcmp.eq.f32.partialorder %v538, 0.0
        %v633 = vand.u32 %v538, 2147483648
        %v634 = vsel %vm632, %v633, %v631
        %v635 = vld [vmem:[#allocation5] sm:$0xff]
        %v636 = vstv %s470
        %v637 = vmul.f32 %v636, %v635
        %v639 = vperm.slane %v637, 0
        %v640 = vlaneseq
        %v641 = vshrl.u32 %v640, 7
        %643 = vset.pattern.permute.xlu0 %v641
        %644 = vperm.xlu0 %643, %v639
        %v645 = vpop.permute.xlu0 %644
        %v646 = vperm.slane %v637, 1
        %v647 = vlaneseq
        %v648 = vshrl.u32 %v647, 7
        %650 = vset.pattern.permute.xlu0 %v648
        %651 = vperm.xlu0 %650, %v646
        %v652 = vpop.permute.xlu0 %651
        %v653 = vperm.slane %v637, 2
        %v654 = vlaneseq
        %v655 = vshrl.u32 %v654, 7
        %657 = vset.pattern.permute.xlu0 %v655
        %658 = vperm.xlu0 %657, %v653
        %v659 = vpop.permute.xlu0 %658
        %v660 = vperm.slane %v637, 3
        %v661 = vlaneseq
        %v662 = vshrl.u32 %v661, 7
        %664 = vset.pattern.permute.xlu0 %v662
        %665 = vperm.xlu0 %664, %v660
        %v666 = vpop.permute.xlu0 %665
        %v667 = vperm.slane %v637, 4
        %v668 = vlaneseq
        %v669 = vshrl.u32 %v668, 7
        %671 = vset.pattern.permute.xlu0 %v669
        %672 = vperm.xlu0 %671, %v667
        %v673 = vpop.permute.xlu0 %672
        %v674 = vperm.slane %v637, 5
        %v675 = vlaneseq
        %v676 = vshrl.u32 %v675, 7
        %678 = vset.pattern.permute.xlu0 %v676
        %679 = vperm.xlu0 %678, %v674
        %v680 = vpop.permute.xlu0 %679
        %v681 = vperm.slane %v637, 6
        %v682 = vlaneseq
        %v683 = vshrl.u32 %v682, 7
        %685 = vset.pattern.permute.xlu0 %v683
        %686 = vperm.xlu0 %685, %v681
        %v687 = vpop.permute.xlu0 %686
        %v688 = vperm.slane %v637, 7
        %v689 = vlaneseq
        %v690 = vshrl.u32 %v689, 7
        %692 = vset.pattern.permute.xlu0 %v690
        %693 = vperm.xlu0 %692, %v688
        %v694 = vpop.permute.xlu0 %693
        %v703 = vadd.f32 %v550, %v645
        %v704 = vadd.f32 %v562, %v652
        %v705 = vadd.f32 %v574, %v659
        %v706 = vadd.f32 %v586, %v666
        %v707 = vadd.f32 %v598, %v673
        %v708 = vadd.f32 %v610, %v680
        %v709 = vadd.f32 %v622, %v687
        %v710 = vadd.f32 %v634, %v694
        %v711 = vsub.f32 0.0, %v703
        %v712 = vsub.f32 0.0, %v704
        %v713 = vsub.f32 0.0, %v705
        %v714 = vsub.f32 0.0, %v706
        %v715 = vsub.f32 0.0, %v707
        %v716 = vsub.f32 0.0, %v708
        %v717 = vsub.f32 0.0, %v709
        %v718 = vsub.f32 0.0, %v710
        %v719 = vld [vmem:[%s458] sm:$0xff]
        %v720 = vadd.f32 %v719, 1e-06
        %v721 = vlog2.pop %v720
        %v722 = vmul.f32 %v721, 0.6931472
        %v723 = vsub.f32 0.0, %v722
        %v724 = vadd.f32 %v723, 1e-06
        %v725 = vlog2.pop %v724
        %v726 = vmul.f32 %v725, 0.6931472
        %v727 = vsub.f32 0.0, %v726
        %v729 = vperm.slane %v727, 0
        %v730 = vlaneseq
        %v731 = vshrl.u32 %v730, 7
        %733 = vset.pattern.permute.xlu0 %v731
        %734 = vperm.xlu0 %733, %v729
        %v735 = vpop.permute.xlu0 %734
        %v736 = vperm.slane %v727, 1
        %v737 = vlaneseq
        %v738 = vshrl.u32 %v737, 7
        %740 = vset.pattern.permute.xlu0 %v738
        %741 = vperm.xlu0 %740, %v736
        %v742 = vpop.permute.xlu0 %741
        %v743 = vperm.slane %v727, 2
        %v744 = vlaneseq
        %v745 = vshrl.u32 %v744, 7
        %747 = vset.pattern.permute.xlu0 %v745
        %748 = vperm.xlu0 %747, %v743
        %v749 = vpop.permute.xlu0 %748
        %v750 = vperm.slane %v727, 3
        %v751 = vlaneseq
        %v752 = vshrl.u32 %v751, 7
        %754 = vset.pattern.permute.xlu0 %v752
        %755 = vperm.xlu0 %754, %v750
        %v756 = vpop.permute.xlu0 %755
        %v757 = vperm.slane %v727, 4
        %v758 = vlaneseq
        %v759 = vshrl.u32 %v758, 7
        %761 = vset.pattern.permute.xlu0 %v759
        %762 = vperm.xlu0 %761, %v757
        %v763 = vpop.permute.xlu0 %762
        %v764 = vperm.slane %v727, 5
        %v765 = vlaneseq
        %v766 = vshrl.u32 %v765, 7
        %768 = vset.pattern.permute.xlu0 %v766
        %769 = vperm.xlu0 %768, %v764
        %v770 = vpop.permute.xlu0 %769
        %v771 = vperm.slane %v727, 6
        %v772 = vlaneseq
        %v773 = vshrl.u32 %v772, 7
        %775 = vset.pattern.permute.xlu0 %v773
        %776 = vperm.xlu0 %775, %v771
        %v777 = vpop.permute.xlu0 %776
        %v778 = vperm.slane %v727, 7
        %v779 = vlaneseq
        %v780 = vshrl.u32 %v779, 7
        %782 = vset.pattern.permute.xlu0 %v780
        %783 = vperm.xlu0 %782, %v778
        %v784 = vpop.permute.xlu0 %783
        %v793 = vadd.f32 %v711, %v735
        %v794 = vadd.f32 %v712, %v742
        %v795 = vadd.f32 %v713, %v749
        %v796 = vadd.f32 %v714, %v756
        %v797 = vadd.f32 %v715, %v763
        %v798 = vadd.f32 %v716, %v770
        %v799 = vadd.f32 %v717, %v777
        %v800 = vadd.f32 %v718, %v784
        %s801 = sadd.f32 %s469, 1e-06
        %v802 = vstv %s801
        %v803 = vrcp.pop %v802
        %v804 = vmul.f32 %v802, %v803
        %v805 = vsub.f32 1.0, %v804
        %v806 = vmul.f32 %v803, %v805
        %v807 = vadd.f32 %v803, %v806
        %vm808 = vweird.f32 %v802
        %vm809 = vweird.f32 %v803
        %vm810 = vmor %vm808, %vm809
        %v811 = vsel %vm810, %v803, %v807
        %v812 = vand.u32 2147483647, %v802
        %vm813 = vcmp.eq.f32.partialorder %v812, 8.507059e+37
        %v814 = vand.u32 %v802, 2147483648
        %v815 = vor.u32 1.1754944e-38, %v814
        %v816 = vsel %vm813, %v815, %v811
        %v817 = vmul.f32 %v793, %v816
        %v818 = vmul.f32 %v794, %v816
        %v819 = vmul.f32 %v795, %v816
        %v820 = vmul.f32 %v796, %v816
        %v821 = vmul.f32 %v797, %v816
        %v822 = vmul.f32 %v798, %v816
        %v823 = vmul.f32 %v799, %v816
        %v824 = vmul.f32 %v800, %v816
        %833 = vset.pattern.permute.xlu0 0
        %834 = vperm.xlu0 %833, %v817
        %v835 = vpop.permute.xlu0 %834
        %836 = vset.pattern.permute.xlu0 0
        %837 = vperm.xlu0 %836, %v818
        %v838 = vpop.permute.xlu0 %837
        %839 = vset.pattern.permute.xlu0 0
        %840 = vperm.xlu0 %839, %v819
        %v841 = vpop.permute.xlu0 %840
        %842 = vset.pattern.permute.xlu0 0
        %843 = vperm.xlu0 %842, %v820
        %v844 = vpop.permute.xlu0 %843
        %845 = vset.pattern.permute.xlu0 0
        %846 = vperm.xlu0 %845, %v821
        %v847 = vpop.permute.xlu0 %846
        %848 = vset.pattern.permute.xlu0 0
        %849 = vperm.xlu0 %848, %v822
        %v850 = vpop.permute.xlu0 %849
        %851 = vset.pattern.permute.xlu0 0
        %852 = vperm.xlu0 %851, %v823
        %v853 = vpop.permute.xlu0 %852
        %854 = vset.pattern.permute.xlu0 0
        %855 = vperm.xlu0 %854, %v824
        %v856 = vpop.permute.xlu0 %855
        %v857 = vlaneseq
        %v858 = vand.u32 %v857, 127
        %v859 = vperm.slane %v835, %v858
        %v860 = vperm.slane %v838, %v858
        %v861 = vperm.slane %v841, %v858
        %v862 = vperm.slane %v844, %v858
        %v863 = vperm.slane %v847, %v858
        %v864 = vperm.slane %v850, %v858
        %v865 = vperm.slane %v853, %v858
        %v866 = vperm.slane %v856, %v858
        %vm867 = vcmask 1041409
        %v868 = vsel %vm867, %v860, %v859
        %vm869 = vcmask 1042434
        %v870 = vsel %vm869, %v861, %v868
        %vm871 = vcmask 1043459
        %v872 = vsel %vm871, %v862, %v870
        %vm873 = vcmask 1044484
        %v874 = vsel %vm873, %v863, %v872
        %vm875 = vcmask 1045509
        %v876 = vsel %vm875, %v864, %v874
        %vm877 = vcmask 1046534
        %v878 = vsel %vm877, %v865, %v876
        %vm879 = vcmask 1047559
        %v880 = vsel %vm879, %v866, %v878
        %vm882 = vcmask 64512
        %v883 = vsel %vm882, %v880, -inf
        %884 = vmax.xlane.f32.xlu0 %v883
        %v885 = vpop.xlane.xlu0 %884
        %v887 = vperm.slane %v885, 0
        %v888 = vperm.slane %v885, 1
        %v889 = vperm.slane %v885, 2
        %v890 = vperm.slane %v885, 3
        %v891 = vperm.slane %v885, 4
        %v892 = vperm.slane %v885, 5
        %v893 = vperm.slane %v885, 6
        %v894 = vperm.slane %v885, 7
        %v903 = vsub.f32 %v817, %v887
        %v904 = vsub.f32 %v818, %v888
        %v905 = vsub.f32 %v819, %v889
        %v906 = vsub.f32 %v820, %v890
        %v907 = vsub.f32 %v821, %v891
        %v908 = vsub.f32 %v822, %v892
        %v909 = vsub.f32 %v823, %v893
        %v910 = vsub.f32 %v824, %v894
        %v911 = vmul.f32 %v903, 1.442695
        %v912 = vpow.pop %v911
        %v913 = vmul.f32 %v904, 1.442695
        %v914 = vpow.pop %v913
        %v915 = vmul.f32 %v905, 1.442695
        %v916 = vpow.pop %v915
        %v917 = vmul.f32 %v906, 1.442695
        %v918 = vpow.pop %v917
        %v919 = vmul.f32 %v907, 1.442695
        %v920 = vpow.pop %v919
        %v921 = vmul.f32 %v908, 1.442695
        %v922 = vpow.pop %v921
        %v923 = vmul.f32 %v909, 1.442695
        %v924 = vpow.pop %v923
        %v925 = vmul.f32 %v910, 1.442695
        %v926 = vpow.pop %v925
        %935 = vset.pattern.permute.xlu0 0
        %936 = vperm.xlu0 %935, %v912
        %v937 = vpop.permute.xlu0 %936
        %938 = vset.pattern.permute.xlu0 0
        %939 = vperm.xlu0 %938, %v914
        %v940 = vpop.permute.xlu0 %939
        %941 = vset.pattern.permute.xlu0 0
        %942 = vperm.xlu0 %941, %v916
        %v943 = vpop.permute.xlu0 %942
        %944 = vset.pattern.permute.xlu0 0
        %945 = vperm.xlu0 %944, %v918
        %v946 = vpop.permute.xlu0 %945
        %947 = vset.pattern.permute.xlu0 0
        %948 = vperm.xlu0 %947, %v920
        %v949 = vpop.permute.xlu0 %948
        %950 = vset.pattern.permute.xlu0 0
        %951 = vperm.xlu0 %950, %v922
        %v952 = vpop.permute.xlu0 %951
        %953 = vset.pattern.permute.xlu0 0
        %954 = vperm.xlu0 %953, %v924
        %v955 = vpop.permute.xlu0 %954
        %956 = vset.pattern.permute.xlu0 0
        %957 = vperm.xlu0 %956, %v926
        %v958 = vpop.permute.xlu0 %957
        %v959 = vperm.slane %v937, %v858
        %v960 = vperm.slane %v940, %v858
        %v961 = vperm.slane %v943, %v858
        %v962 = vperm.slane %v946, %v858
        %v963 = vperm.slane %v949, %v858
        %v964 = vperm.slane %v952, %v858
        %v965 = vperm.slane %v955, %v858
        %v966 = vperm.slane %v958, %v858
        %v967 = vsel %vm867, %v960, %v959
        %v968 = vsel %vm869, %v961, %v967
        %v969 = vsel %vm871, %v962, %v968
        %v970 = vsel %vm873, %v963, %v969
        %v971 = vsel %vm875, %v964, %v970
        %v972 = vsel %vm877, %v965, %v971
        %v973 = vsel %vm879, %v966, %v972
        %v975 = vsel %vm882, %v973, 0.0
        %976 = vadd.xlane.f32.xlu0 %v975
        %v977 = vpop.xlane.xlu0 %976
        %v979 = vperm.slane %v977, 0
        %v980 = vperm.slane %v977, 1
        %v981 = vperm.slane %v977, 2
        %v982 = vperm.slane %v977, 3
        %v983 = vperm.slane %v977, 4
        %v984 = vperm.slane %v977, 5
        %v985 = vperm.slane %v977, 6
        %v986 = vperm.slane %v977, 7
        %v995 = vrcp.pop %v979
        %v996 = vmul.f32 %v979, %v995
        %v997 = vsub.f32 1.0, %v996
        %v998 = vmul.f32 %v995, %v997
        %v999 = vadd.f32 %v995, %v998
        %vm1000 = vweird.f32 %v979
        %vm1001 = vweird.f32 %v995
        %vm1002 = vmor %vm1000, %vm1001
        %v1003 = vsel %vm1002, %v995, %v999
        %v1004 = vand.u32 2147483647, %v979
        %vm1005 = vcmp.eq.f32.partialorder %v1004, 8.507059e+37
        %v1006 = vand.u32 %v979, 2147483648
        %v1007 = vor.u32 1.1754944e-38, %v1006
        %v1008 = vsel %vm1005, %v1007, %v1003
        %v1009 = vmul.f32 %v912, %v1008
        %v1010 = vrcp.pop %v980
        %v1011 = vmul.f32 %v980, %v1010
        %v1012 = vsub.f32 1.0, %v1011
        %v1013 = vmul.f32 %v1010, %v1012
        %v1014 = vadd.f32 %v1010, %v1013
        %vm1015 = vweird.f32 %v980
        %vm1016 = vweird.f32 %v1010
        %vm1017 = vmor %vm1015, %vm1016
        %v1018 = vsel %vm1017, %v1010, %v1014
        %v1019 = vand.u32 2147483647, %v980
        %vm1020 = vcmp.eq.f32.partialorder %v1019, 8.507059e+37
        %v1021 = vand.u32 %v980, 2147483648
        %v1022 = vor.u32 1.1754944e-38, %v1021
        %v1023 = vsel %vm1020, %v1022, %v1018
        %v1024 = vmul.f32 %v914, %v1023
        %v1025 = vrcp.pop %v981
        %v1026 = vmul.f32 %v981, %v1025
        %v1027 = vsub.f32 1.0, %v1026
        %v1028 = vmul.f32 %v1025, %v1027
        %v1029 = vadd.f32 %v1025, %v1028
        %vm1030 = vweird.f32 %v981
        %vm1031 = vweird.f32 %v1025
        %vm1032 = vmor %vm1030, %vm1031
        %v1033 = vsel %vm1032, %v1025, %v1029
        %v1034 = vand.u32 2147483647, %v981
        %vm1035 = vcmp.eq.f32.partialorder %v1034, 8.507059e+37
        %v1036 = vand.u32 %v981, 2147483648
        %v1037 = vor.u32 1.1754944e-38, %v1036
        %v1038 = vsel %vm1035, %v1037, %v1033
        %v1039 = vmul.f32 %v916, %v1038
        %v1040 = vrcp.pop %v982
        %v1041 = vmul.f32 %v982, %v1040
        %v1042 = vsub.f32 1.0, %v1041
        %v1043 = vmul.f32 %v1040, %v1042
        %v1044 = vadd.f32 %v1040, %v1043
        %vm1045 = vweird.f32 %v982
        %vm1046 = vweird.f32 %v1040
        %vm1047 = vmor %vm1045, %vm1046
        %v1048 = vsel %vm1047, %v1040, %v1044
        %v1049 = vand.u32 2147483647, %v982
        %vm1050 = vcmp.eq.f32.partialorder %v1049, 8.507059e+37
        %v1051 = vand.u32 %v982, 2147483648
        %v1052 = vor.u32 1.1754944e-38, %v1051
        %v1053 = vsel %vm1050, %v1052, %v1048
        %v1054 = vmul.f32 %v918, %v1053
        %v1055 = vrcp.pop %v983
        %v1056 = vmul.f32 %v983, %v1055
        %v1057 = vsub.f32 1.0, %v1056
        %v1058 = vmul.f32 %v1055, %v1057
        %v1059 = vadd.f32 %v1055, %v1058
        %vm1060 = vweird.f32 %v983
        %vm1061 = vweird.f32 %v1055
        %vm1062 = vmor %vm1060, %vm1061
        %v1063 = vsel %vm1062, %v1055, %v1059
        %v1064 = vand.u32 2147483647, %v983
        %vm1065 = vcmp.eq.f32.partialorder %v1064, 8.507059e+37
        %v1066 = vand.u32 %v983, 2147483648
        %v1067 = vor.u32 1.1754944e-38, %v1066
        %v1068 = vsel %vm1065, %v1067, %v1063
        %v1069 = vmul.f32 %v920, %v1068
        %v1070 = vrcp.pop %v984
        %v1071 = vmul.f32 %v984, %v1070
        %v1072 = vsub.f32 1.0, %v1071
        %v1073 = vmul.f32 %v1070, %v1072
        %v1074 = vadd.f32 %v1070, %v1073
        %vm1075 = vweird.f32 %v984
        %vm1076 = vweird.f32 %v1070
        %vm1077 = vmor %vm1075, %vm1076
        %v1078 = vsel %vm1077, %v1070, %v1074
        %v1079 = vand.u32 2147483647, %v984
        %vm1080 = vcmp.eq.f32.partialorder %v1079, 8.507059e+37
        %v1081 = vand.u32 %v984, 2147483648
        %v1082 = vor.u32 1.1754944e-38, %v1081
        %v1083 = vsel %vm1080, %v1082, %v1078
        %v1084 = vmul.f32 %v922, %v1083
        %v1085 = vrcp.pop %v985
        %v1086 = vmul.f32 %v985, %v1085
        %v1087 = vsub.f32 1.0, %v1086
        %v1088 = vmul.f32 %v1085, %v1087
        %v1089 = vadd.f32 %v1085, %v1088
        %vm1090 = vweird.f32 %v985
        %vm1091 = vweird.f32 %v1085
        %vm1092 = vmor %vm1090, %vm1091
        %v1093 = vsel %vm1092, %v1085, %v1089
        %v1094 = vand.u32 2147483647, %v985
        %vm1095 = vcmp.eq.f32.partialorder %v1094, 8.507059e+37
        %v1096 = vand.u32 %v985, 2147483648
        %v1097 = vor.u32 1.1754944e-38, %v1096
        %v1098 = vsel %vm1095, %v1097, %v1093
        %v1099 = vmul.f32 %v924, %v1098
        %v1100 = vrcp.pop %v986
        %v1101 = vmul.f32 %v986, %v1100
        %v1102 = vsub.f32 1.0, %v1101
        %v1103 = vmul.f32 %v1100, %v1102
        %v1104 = vadd.f32 %v1100, %v1103
        %vm1105 = vweird.f32 %v986
        %vm1106 = vweird.f32 %v1100
        %vm1107 = vmor %vm1105, %vm1106
        %v1108 = vsel %vm1107, %v1100, %v1104
        %v1109 = vand.u32 2147483647, %v986
        %vm1110 = vcmp.eq.f32.partialorder %v1109, 8.507059e+37
        %v1111 = vand.u32 %v986, 2147483648
        %v1112 = vor.u32 1.1754944e-38, %v1111
        %v1113 = vsel %vm1110, %v1112, %v1108
        %v1114 = vmul.f32 %v926, %v1113
        %v1115 = vstv %s471
        %v1116 = vsub.f32 %v1009, %v1115
        %v1117 = vsub.f32 %v1024, %v1115
        %v1118 = vsub.f32 %v1039, %v1115
        %v1119 = vsub.f32 %v1054, %v1115
        %v1120 = vsub.f32 %v1069, %v1115
        %v1121 = vsub.f32 %v1084, %v1115
        %v1122 = vsub.f32 %v1099, %v1115
        %v1123 = vsub.f32 %v1114, %v1115
        %v1124 = vstv %s472
        %v1125 = vmul.f32 %v1124, %v1116
        %v1126 = vmul.f32 %v1124, %v1117
        %v1127 = vmul.f32 %v1124, %v1118
        %v1128 = vmul.f32 %v1124, %v1119
        %v1129 = vmul.f32 %v1124, %v1120
        %v1130 = vmul.f32 %v1124, %v1121
        %v1131 = vmul.f32 %v1124, %v1122
        %v1132 = vmul.f32 %v1124, %v1123
        %v1133 = vxor.u32 %v1125, 2147483648
        %v1134 = vxor.u32 %v1126, 2147483648
        %v1135 = vxor.u32 %v1127, 2147483648
        %v1136 = vxor.u32 %v1128, 2147483648
        %v1137 = vxor.u32 %v1129, 2147483648
        %v1138 = vxor.u32 %v1130, 2147483648
        %v1139 = vxor.u32 %v1131, 2147483648
        %v1140 = vxor.u32 %v1132, 2147483648
        %v1141 = vmul.f32 %v1133, 1.442695
        %v1142 = vpow.pop %v1141
        %v1143 = vmul.f32 %v1134, 1.442695
        %v1144 = vpow.pop %v1143
        %v1145 = vmul.f32 %v1135, 1.442695
        %v1146 = vpow.pop %v1145
        %v1147 = vmul.f32 %v1136, 1.442695
        %v1148 = vpow.pop %v1147
        %v1149 = vmul.f32 %v1137, 1.442695
        %v1150 = vpow.pop %v1149
        %v1151 = vmul.f32 %v1138, 1.442695
        %v1152 = vpow.pop %v1151
        %v1153 = vmul.f32 %v1139, 1.442695
        %v1154 = vpow.pop %v1153
        %v1155 = vmul.f32 %v1140, 1.442695
        %v1156 = vpow.pop %v1155
        %v1157 = vadd.f32 %v1142, 1.0
        %v1158 = vadd.f32 %v1144, 1.0
        %v1159 = vadd.f32 %v1146, 1.0
        %v1160 = vadd.f32 %v1148, 1.0
        %v1161 = vadd.f32 %v1150, 1.0
        %v1162 = vadd.f32 %v1152, 1.0
        %v1163 = vadd.f32 %v1154, 1.0
        %v1164 = vadd.f32 %v1156, 1.0
        %v1165 = vrcp.pop %v1157
        %v1166 = vmul.f32 %v1157, %v1165
        %v1167 = vsub.f32 1.0, %v1166
        %v1168 = vmul.f32 %v1165, %v1167
        %v1169 = vadd.f32 %v1165, %v1168
        %vm1170 = vweird.f32 %v1157
        %vm1171 = vweird.f32 %v1165
        %vm1172 = vmor %vm1170, %vm1171
        %v1173 = vsel %vm1172, %v1165, %v1169
        %v1174 = vand.u32 2147483647, %v1157
        %vm1175 = vcmp.eq.f32.partialorder %v1174, 8.507059e+37
        %v1176 = vand.u32 %v1157, 2147483648
        %v1177 = vor.u32 1.1754944e-38, %v1176
        %v1178 = vsel %vm1175, %v1177, %v1173
        %v1179 = vmul.f32 1.0, %v1178
        %v1180 = vrcp.pop %v1158
        %v1181 = vmul.f32 %v1158, %v1180
        %v1182 = vsub.f32 1.0, %v1181
        %v1183 = vmul.f32 %v1180, %v1182
        %v1184 = vadd.f32 %v1180, %v1183
        %vm1185 = vweird.f32 %v1158
        %vm1186 = vweird.f32 %v1180
        %vm1187 = vmor %vm1185, %vm1186
        %v1188 = vsel %vm1187, %v1180, %v1184
        %v1189 = vand.u32 2147483647, %v1158
        %vm1190 = vcmp.eq.f32.partialorder %v1189, 8.507059e+37
        %v1191 = vand.u32 %v1158, 2147483648
        %v1192 = vor.u32 1.1754944e-38, %v1191
        %v1193 = vsel %vm1190, %v1192, %v1188
        %v1194 = vmul.f32 1.0, %v1193
        %v1195 = vrcp.pop %v1159
        %v1196 = vmul.f32 %v1159, %v1195
        %v1197 = vsub.f32 1.0, %v1196
        %v1198 = vmul.f32 %v1195, %v1197
        %v1199 = vadd.f32 %v1195, %v1198
        %vm1200 = vweird.f32 %v1159
        %vm1201 = vweird.f32 %v1195
        %vm1202 = vmor %vm1200, %vm1201
        %v1203 = vsel %vm1202, %v1195, %v1199
        %v1204 = vand.u32 2147483647, %v1159
        %vm1205 = vcmp.eq.f32.partialorder %v1204, 8.507059e+37
        %v1206 = vand.u32 %v1159, 2147483648
        %v1207 = vor.u32 1.1754944e-38, %v1206
        %v1208 = vsel %vm1205, %v1207, %v1203
        %v1209 = vmul.f32 1.0, %v1208
        %v1210 = vrcp.pop %v1160
        %v1211 = vmul.f32 %v1160, %v1210
        %v1212 = vsub.f32 1.0, %v1211
        %v1213 = vmul.f32 %v1210, %v1212
        %v1214 = vadd.f32 %v1210, %v1213
        %vm1215 = vweird.f32 %v1160
        %vm1216 = vweird.f32 %v1210
        %vm1217 = vmor %vm1215, %vm1216
        %v1218 = vsel %vm1217, %v1210, %v1214
        %v1219 = vand.u32 2147483647, %v1160
        %vm1220 = vcmp.eq.f32.partialorder %v1219, 8.507059e+37
        %v1221 = vand.u32 %v1160, 2147483648
        %v1222 = vor.u32 1.1754944e-38, %v1221
        %v1223 = vsel %vm1220, %v1222, %v1218
        %v1224 = vmul.f32 1.0, %v1223
        %v1225 = vrcp.pop %v1161
        %v1226 = vmul.f32 %v1161, %v1225
        %v1227 = vsub.f32 1.0, %v1226
        %v1228 = vmul.f32 %v1225, %v1227
        %v1229 = vadd.f32 %v1225, %v1228
        %vm1230 = vweird.f32 %v1161
        %vm1231 = vweird.f32 %v1225
        %vm1232 = vmor %vm1230, %vm1231
        %v1233 = vsel %vm1232, %v1225, %v1229
        %v1234 = vand.u32 2147483647, %v1161
        %vm1235 = vcmp.eq.f32.partialorder %v1234, 8.507059e+37
        %v1236 = vand.u32 %v1161, 2147483648
        %v1237 = vor.u32 1.1754944e-38, %v1236
        %v1238 = vsel %vm1235, %v1237, %v1233
        %v1239 = vmul.f32 1.0, %v1238
        %v1240 = vrcp.pop %v1162
        %v1241 = vmul.f32 %v1162, %v1240
        %v1242 = vsub.f32 1.0, %v1241
        %v1243 = vmul.f32 %v1240, %v1242
        %v1244 = vadd.f32 %v1240, %v1243
        %vm1245 = vweird.f32 %v1162
        %vm1246 = vweird.f32 %v1240
        %vm1247 = vmor %vm1245, %vm1246
        %v1248 = vsel %vm1247, %v1240, %v1244
        %v1249 = vand.u32 2147483647, %v1162
        %vm1250 = vcmp.eq.f32.partialorder %v1249, 8.507059e+37
        %v1251 = vand.u32 %v1162, 2147483648
        %v1252 = vor.u32 1.1754944e-38, %v1251
        %v1253 = vsel %vm1250, %v1252, %v1248
        %v1254 = vmul.f32 1.0, %v1253
        %v1255 = vrcp.pop %v1163
        %v1256 = vmul.f32 %v1163, %v1255
        %v1257 = vsub.f32 1.0, %v1256
        %v1258 = vmul.f32 %v1255, %v1257
        %v1259 = vadd.f32 %v1255, %v1258
        %vm1260 = vweird.f32 %v1163
        %vm1261 = vweird.f32 %v1255
        %vm1262 = vmor %vm1260, %vm1261
        %v1263 = vsel %vm1262, %v1255, %v1259
        %v1264 = vand.u32 2147483647, %v1163
        %vm1265 = vcmp.eq.f32.partialorder %v1264, 8.507059e+37
        %v1266 = vand.u32 %v1163, 2147483648
        %v1267 = vor.u32 1.1754944e-38, %v1266
        %v1268 = vsel %vm1265, %v1267, %v1263
        %v1269 = vmul.f32 1.0, %v1268
        %v1270 = vrcp.pop %v1164
        %v1271 = vmul.f32 %v1164, %v1270
        %v1272 = vsub.f32 1.0, %v1271
        %v1273 = vmul.f32 %v1270, %v1272
        %v1274 = vadd.f32 %v1270, %v1273
        %vm1275 = vweird.f32 %v1164
        %vm1276 = vweird.f32 %v1270
        %vm1277 = vmor %vm1275, %vm1276
        %v1278 = vsel %vm1277, %v1270, %v1274
        %v1279 = vand.u32 2147483647, %v1164
        %vm1280 = vcmp.eq.f32.partialorder %v1279, 8.507059e+37
        %v1281 = vand.u32 %v1164, 2147483648
        %v1282 = vor.u32 1.1754944e-38, %v1281
        %v1283 = vsel %vm1280, %v1282, %v1278
        %v1284 = vmul.f32 1.0, %v1283
        %vm1285 = vcmp.gt.f32.partialorder %v1179, 0.5
        %vm1286 = vcmp.gt.f32.partialorder %v1194, 0.5
        %vm1287 = vcmp.gt.f32.partialorder %v1209, 0.5
        %vm1288 = vcmp.gt.f32.partialorder %v1224, 0.5
        %vm1289 = vcmp.gt.f32.partialorder %v1239, 0.5
        %vm1290 = vcmp.gt.f32.partialorder %v1254, 0.5
        %vm1291 = vcmp.gt.f32.partialorder %v1269, 0.5
        %vm1292 = vcmp.gt.f32.partialorder %v1284, 0.5
        %v1293 = vsel %vm1285, 1, 0
        %v1294 = vsel %vm1286, 1, 0
        %v1295 = vsel %vm1287, 1, 0
        %v1296 = vsel %vm1288, 1, 0
        %v1297 = vsel %vm1289, 1, 0
        %v1298 = vsel %vm1290, 1, 0
        %v1299 = vsel %vm1291, 1, 0
        %v1300 = vsel %vm1292, 1, 0
        %v1301 = vcvt.s32.f32 %v1293
        %v1302 = vcvt.s32.f32 %v1294
        %v1303 = vcvt.s32.f32 %v1295
        %v1304 = vcvt.s32.f32 %v1296
        %v1305 = vcvt.s32.f32 %v1297
        %v1306 = vcvt.s32.f32 %v1298
        %v1307 = vcvt.s32.f32 %v1299
        %v1308 = vcvt.s32.f32 %v1300
        %v1309 = vlaneseq
        %v1310 = vshrl.u32 %v1309, 7
        %vm1311 = vcmp.eq.s32.totalorder %v1310, %v858
        %v1312 = vsel %vm1311, 1, 0
        %v1313 = vcvt.s32.f32 %v1312
        %1322 = vset.pattern.permute.xlu0 0
        %1323 = vperm.xlu0 %1322, %v1301
        %v1324 = vpop.permute.xlu0 %1323
        %1325 = vset.pattern.permute.xlu0 0
        %1326 = vperm.xlu0 %1325, %v1302
        %v1327 = vpop.permute.xlu0 %1326
        %1328 = vset.pattern.permute.xlu0 0
        %1329 = vperm.xlu0 %1328, %v1303
        %v1330 = vpop.permute.xlu0 %1329
        %1331 = vset.pattern.permute.xlu0 0
        %1332 = vperm.xlu0 %1331, %v1304
        %v1333 = vpop.permute.xlu0 %1332
        %1334 = vset.pattern.permute.xlu0 0
        %1335 = vperm.xlu0 %1334, %v1305
        %v1336 = vpop.permute.xlu0 %1335
        %1337 = vset.pattern.permute.xlu0 0
        %1338 = vperm.xlu0 %1337, %v1306
        %v1339 = vpop.permute.xlu0 %1338
        %1340 = vset.pattern.permute.xlu0 0
        %1341 = vperm.xlu0 %1340, %v1307
        %v1342 = vpop.permute.xlu0 %1341
        %1343 = vset.pattern.permute.xlu0 0
        %1344 = vperm.xlu0 %1343, %v1308
        %v1345 = vpop.permute.xlu0 %1344
        %v1346 = vperm.slane %v1324, %v858
        %v1347 = vperm.slane %v1327, %v858
        %v1348 = vperm.slane %v1330, %v858
        %v1349 = vperm.slane %v1333, %v858
        %v1350 = vperm.slane %v1336, %v858
        %v1351 = vperm.slane %v1339, %v858
        %v1352 = vperm.slane %v1342, %v858
        %v1353 = vperm.slane %v1345, %v858
        %v1354 = vsel %vm867, %v1347, %v1346
        %v1355 = vsel %vm869, %v1348, %v1354
        %v1356 = vsel %vm871, %v1349, %v1355
        %v1357 = vsel %vm873, %v1350, %v1356
        %v1358 = vsel %vm875, %v1351, %v1357
        %v1359 = vsel %vm877, %v1352, %v1358
        %v1360 = vsel %vm879, %v1353, %v1359
        %v1362 = vsel %vm882, %v1313, 0
        %v1364 = vsel %vm882, %v1360, 0
        %1366 = vmatpush.xpose.msra.mxu0 0.0
        %1367 = vmatpush.xpose.msra.mxu0 0.0
        %1368 = vmatpush.xpose.msra.mxu0 0.0
        %1369 = vmatpush.xpose.msra.mxu0 0.0
        %1370 = vmatpush.xpose.msra.mxu0 0.0
        %1371 = vmatpush.xpose.msra.mxu0 0.0
        %1372 = vmatpush.xpose.msra.mxu0 0.0
        %1373 = vmatpush.xpose.msra.mxu0 0.0
        %1374 = vmatpush.xpose.msra.mxu0 0.0
        %1375 = vmatpush.xpose.msra.mxu0 0.0
        %1376 = vmatpush.xpose.msra.mxu0 0.0
        %1377 = vmatpush.xpose.msra.mxu0 0.0
        %1378 = vmatpush.xpose.msra.mxu0 0.0
        %1379 = vmatpush.xpose.msra.mxu0 0.0
        %1380 = vmatpush.xpose.msra.mxu0 0.0
        %1381 = vmatpush.xpose.msra.mxu0 %v1364
        %1382 = vmatmul.f32.gmra.mxu0 %v1362
        %v1383 = vpop.f32.mrf.mxu0
        %v1384 = vadd.f32 0.0, %v1383
        %1385 = vdwg.mxu0
        %v1387 = vperm.slane %v1384, 0
        %v1388 = vlaneseq
        %v1389 = vshrl.u32 %v1388, 7
        %1391 = vset.pattern.permute.xlu0 %v1389
        %1392 = vperm.xlu0 %1391, %v1387
        %v1393 = vpop.permute.xlu0 %1392
        %v1394 = vperm.slane %v1384, 1
        %v1395 = vlaneseq
        %v1396 = vshrl.u32 %v1395, 7
        %1398 = vset.pattern.permute.xlu0 %v1396
        %1399 = vperm.xlu0 %1398, %v1394
        %v1400 = vpop.permute.xlu0 %1399
        %v1401 = vperm.slane %v1384, 2
        %v1402 = vlaneseq
        %v1403 = vshrl.u32 %v1402, 7
        %1405 = vset.pattern.permute.xlu0 %v1403
        %1406 = vperm.xlu0 %1405, %v1401
        %v1407 = vpop.permute.xlu0 %1406
        %v1408 = vperm.slane %v1384, 3
        %v1409 = vlaneseq
        %v1410 = vshrl.u32 %v1409, 7
        %1412 = vset.pattern.permute.xlu0 %v1410
        %1413 = vperm.xlu0 %1412, %v1408
        %v1414 = vpop.permute.xlu0 %1413
        %v1415 = vperm.slane %v1384, 4
        %v1416 = vlaneseq
        %v1417 = vshrl.u32 %v1416, 7
        %1419 = vset.pattern.permute.xlu0 %v1417
        %1420 = vperm.xlu0 %1419, %v1415
        %v1421 = vpop.permute.xlu0 %1420
        %v1422 = vperm.slane %v1384, 5
        %v1423 = vlaneseq
        %v1424 = vshrl.u32 %v1423, 7
        %1426 = vset.pattern.permute.xlu0 %v1424
        %1427 = vperm.xlu0 %1426, %v1422
        %v1428 = vpop.permute.xlu0 %1427
        %v1429 = vperm.slane %v1384, 6
        %v1430 = vlaneseq
        %v1431 = vshrl.u32 %v1430, 7
        %1433 = vset.pattern.permute.xlu0 %v1431
        %1434 = vperm.xlu0 %1433, %v1429
        %v1435 = vpop.permute.xlu0 %1434
        %v1436 = vperm.slane %v1384, 7
        %v1437 = vlaneseq
        %v1438 = vshrl.u32 %v1437, 7
        %1440 = vset.pattern.permute.xlu0 %v1438
        %1441 = vperm.xlu0 %1440, %v1436
        %v1442 = vpop.permute.xlu0 %1441
        %v1451 = vadd.f32 %v1301, %v1393
        %v1452 = vadd.f32 %v1302, %v1400
        %v1453 = vadd.f32 %v1303, %v1407
        %v1454 = vadd.f32 %v1304, %v1414
        %v1455 = vadd.f32 %v1305, %v1421
        %v1456 = vadd.f32 %v1306, %v1428
        %v1457 = vadd.f32 %v1307, %v1435
        %v1458 = vadd.f32 %v1308, %v1442
        %v1459 = vmul.f32 %v1451, 0.5
        %v1460 = vmul.f32 %v1452, 0.5
        %v1461 = vmul.f32 %v1453, 0.5
        %v1462 = vmul.f32 %v1454, 0.5
        %v1463 = vmul.f32 %v1455, 0.5
        %v1464 = vmul.f32 %v1456, 0.5
        %v1465 = vmul.f32 %v1457, 0.5
        %v1466 = vmul.f32 %v1458, 0.5
        %1475 = vset.pattern.permute.xlu0 0
        %1476 = vperm.xlu0 %1475, %v1009
        %v1477 = vpop.permute.xlu0 %1476
        %1478 = vset.pattern.permute.xlu0 0
        %1479 = vperm.xlu0 %1478, %v1024
        %v1480 = vpop.permute.xlu0 %1479
        %1481 = vset.pattern.permute.xlu0 0
        %1482 = vperm.xlu0 %1481, %v1039
        %v1483 = vpop.permute.xlu0 %1482
        %1484 = vset.pattern.permute.xlu0 0
        %1485 = vperm.xlu0 %1484, %v1054
        %v1486 = vpop.permute.xlu0 %1485
        %1487 = vset.pattern.permute.xlu0 0
        %1488 = vperm.xlu0 %1487, %v1069
        %v1489 = vpop.permute.xlu0 %1488
        %1490 = vset.pattern.permute.xlu0 0
        %1491 = vperm.xlu0 %1490, %v1084
        %v1492 = vpop.permute.xlu0 %1491
        %1493 = vset.pattern.permute.xlu0 0
        %1494 = vperm.xlu0 %1493, %v1099
        %v1495 = vpop.permute.xlu0 %1494
        %1496 = vset.pattern.permute.xlu0 0
        %1497 = vperm.xlu0 %1496, %v1114
        %v1498 = vpop.permute.xlu0 %1497
        %v1499 = vperm.slane %v1477, %v858
        %v1500 = vperm.slane %v1480, %v858
        %v1501 = vperm.slane %v1483, %v858
        %v1502 = vperm.slane %v1486, %v858
        %v1503 = vperm.slane %v1489, %v858
        %v1504 = vperm.slane %v1492, %v858
        %v1505 = vperm.slane %v1495, %v858
        %v1506 = vperm.slane %v1498, %v858
        %v1507 = vsel %vm867, %v1500, %v1499
        %v1508 = vsel %vm869, %v1501, %v1507
        %v1509 = vsel %vm871, %v1502, %v1508
        %v1510 = vsel %vm873, %v1503, %v1509
        %v1511 = vsel %vm875, %v1504, %v1510
        %v1512 = vsel %vm877, %v1505, %v1511
        %v1513 = vsel %vm879, %v1506, %v1512
        %1523 = vset.pattern.permute.xlu0 0
        %1524 = vperm.xlu0 %1523, %v1459
        %v1525 = vpop.permute.xlu0 %1524
        %1526 = vset.pattern.permute.xlu0 0
        %1527 = vperm.xlu0 %1526, %v1460
        %v1528 = vpop.permute.xlu0 %1527
        %1529 = vset.pattern.permute.xlu0 0
        %1530 = vperm.xlu0 %1529, %v1461
        %v1531 = vpop.permute.xlu0 %1530
        %1532 = vset.pattern.permute.xlu0 0
        %1533 = vperm.xlu0 %1532, %v1462
        %v1534 = vpop.permute.xlu0 %1533
        %1535 = vset.pattern.permute.xlu0 0
        %1536 = vperm.xlu0 %1535, %v1463
        %v1537 = vpop.permute.xlu0 %1536
        %1538 = vset.pattern.permute.xlu0 0
        %1539 = vperm.xlu0 %1538, %v1464
        %v1540 = vpop.permute.xlu0 %1539
        %1541 = vset.pattern.permute.xlu0 0
        %1542 = vperm.xlu0 %1541, %v1465
        %v1543 = vpop.permute.xlu0 %1542
        %1544 = vset.pattern.permute.xlu0 0
        %1545 = vperm.xlu0 %1544, %v1466
        %v1546 = vpop.permute.xlu0 %1545
        %v1547 = vperm.slane %v1525, %v858
        %v1548 = vperm.slane %v1528, %v858
        %v1549 = vperm.slane %v1531, %v858
        %v1550 = vperm.slane %v1534, %v858
        %v1551 = vperm.slane %v1537, %v858
        %v1552 = vperm.slane %v1540, %v858
        %v1553 = vperm.slane %v1543, %v858
        %v1554 = vperm.slane %v1546, %v858
        %v1555 = vsel %vm867, %v1548, %v1547
        %v1556 = vsel %vm869, %v1549, %v1555
        %v1557 = vsel %vm871, %v1550, %v1556
        %v1558 = vsel %vm873, %v1551, %v1557
        %v1559 = vsel %vm875, %v1552, %v1558
        %v1560 = vsel %vm877, %v1553, %v1559
        %v1561 = vsel %vm879, %v1554, %v1560
        %v1563 = vsel %vm1311, %v1513, %v1561
        %v1564 = vsel %vm882, %v1563, 0.0
        %1565 = vadd.xlane.f32.xlu0 %v1564
        %v1566 = vpop.xlane.xlu0 %1565
        %v1567 = vmax.f32 %v1566, 1e-06
        %v1568 = vrot.slane %v1564, 4
        %v1569 = vadd.f32 %v1564, %v1568
        %v1570 = vrot.slane %v1569, 2
        %v1571 = vadd.f32 %v1569, %v1570
        %v1572 = vrot.slane %v1571, 1
        %v1573 = vadd.f32 %v1571, %v1572
        %v1574 = vmax.f32 %v1573, 1e-06
        %v1575 = vrsqrt.pop %v1567
        %v1576 = vmul.f32 %v1575, %v1567
        %v1577 = vmul.f32 %v1576, %v1575
        %v1578 = vmul.f32 0.5, %v1577
        %v1579 = vsub.f32 1.5, %v1578
        %v1580 = vmul.f32 %v1575, %v1579
        %vm1581 = vweird.f32 %v1567
        %vm1582 = vweird.f32 %v1575
        %vm1583 = vmor %vm1581, %vm1582
        %v1584 = vsel %vm1583, %v1575, %v1580
        %v1585 = vmul.f32 %v1584, %v1563
        %v1586 = vrsqrt.pop %v1574
        %v1587 = vmul.f32 %v1586, %v1574
        %v1588 = vmul.f32 %v1587, %v1586
        %v1589 = vmul.f32 0.5, %v1588
        %v1590 = vsub.f32 1.5, %v1589
        %v1591 = vmul.f32 %v1586, %v1590
        %vm1592 = vweird.f32 %v1574
        %vm1593 = vweird.f32 %v1586
        %vm1594 = vmor %vm1592, %vm1593
        %v1595 = vsel %vm1594, %v1586, %v1591
        %v1596 = vmul.f32 %v1585, %v1595
        %vm1597 = vcmp.ne.f32.partialorder %v1596, 0.0
        %v1598 = vsel %vm1597, 0.0, -1e+30
        %v1599 = vld [vmem:[%s463] sm:$0xff]
        %v1600 = vld [vmem:[%s463 + $0x8] sm:$0xff]
        %v1601 = vld [vmem:[%s463 + $0x10] sm:$0xff]
        %v1602 = vld [vmem:[%s463 + $0x18] sm:$0xff]
        %v1603 = vld [vmem:[%s463 + $0x20] sm:$0xff]
        %v1604 = vld [vmem:[%s463 + $0x28] sm:$0xff]
        %v1605 = vld [vmem:[%s463 + $0x30] sm:$0xff]
        %v1606 = vld [vmem:[%s463 + $0x38] sm:$0xff]
        %vm1607 = vcmask 261120
        %v1608 = vsel %vm1607, %v1599, 0.0
        %1609 = vadd.xlane.f32.xlu0 %v1608
        %v1610 = vpop.xlane.xlu0 %1609
        %v1611 = vsel %vm1607, %v1600, 0.0
        %1612 = vadd.xlane.f32.xlu0 %v1611
        %v1613 = vpop.xlane.xlu0 %1612
        %v1614 = vsel %vm1607, %v1601, 0.0
        %1615 = vadd.xlane.f32.xlu0 %v1614
        %v1616 = vpop.xlane.xlu0 %1615
        %v1617 = vsel %vm1607, %v1602, 0.0
        %1618 = vadd.xlane.f32.xlu0 %v1617
        %v1619 = vpop.xlane.xlu0 %1618
        %v1620 = vsel %vm1607, %v1603, 0.0
        %1621 = vadd.xlane.f32.xlu0 %v1620
        %v1622 = vpop.xlane.xlu0 %1621
        %v1623 = vsel %vm1607, %v1604, 0.0
        %1624 = vadd.xlane.f32.xlu0 %v1623
        %v1625 = vpop.xlane.xlu0 %1624
        %v1626 = vsel %vm1607, %v1605, 0.0
        %1627 = vadd.xlane.f32.xlu0 %v1626
        %v1628 = vpop.xlane.xlu0 %1627
        %v1629 = vsel %vm1607, %v1606, 0.0
        %1630 = vadd.xlane.f32.xlu0 %v1629
        %v1631 = vpop.xlane.xlu0 %1630
        %v1632 = vrcp.pop 32.0
        %v1633 = vmul.f32 32.0, %v1632
        %v1634 = vsub.f32 1.0, %v1633
        %v1635 = vmul.f32 %v1632, %v1634
        %v1636 = vadd.f32 %v1632, %v1635
        %vm1637 = vweird.f32 %v1632
        %v1638 = vsel %vm1637, %v1632, %v1636
        %v1639 = vmul.f32 %v1610, %v1638
        %v1640 = vmul.f32 %v1613, %v1638
        %v1641 = vmul.f32 %v1616, %v1638
        %v1642 = vmul.f32 %v1619, %v1638
        %v1643 = vmul.f32 %v1622, %v1638
        %v1644 = vmul.f32 %v1625, %v1638
        %v1645 = vmul.f32 %v1628, %v1638
        %v1646 = vmul.f32 %v1631, %v1638
        %v1647 = vsub.f32 %v1599, %v1639
        %v1648 = vsub.f32 %v1600, %v1640
        %v1649 = vsub.f32 %v1601, %v1641
        %v1650 = vsub.f32 %v1602, %v1642
        %v1651 = vsub.f32 %v1603, %v1643
        %v1652 = vsub.f32 %v1604, %v1644
        %v1653 = vsub.f32 %v1605, %v1645
        %v1654 = vsub.f32 %v1606, %v1646
        %v1655 = vmul.f32 %v1647, %v1647
        %v1656 = vmul.f32 %v1648, %v1648
        %v1657 = vmul.f32 %v1649, %v1649
        %v1658 = vmul.f32 %v1650, %v1650
        %v1659 = vmul.f32 %v1651, %v1651
        %v1660 = vmul.f32 %v1652, %v1652
        %v1661 = vmul.f32 %v1653, %v1653
        %v1662 = vmul.f32 %v1654, %v1654
        %v1663 = vsel %vm1607, %v1655, 0.0
        %1664 = vadd.xlane.f32.xlu0 %v1663
        %v1665 = vpop.xlane.xlu0 %1664
        %v1666 = vsel %vm1607, %v1656, 0.0
        %1667 = vadd.xlane.f32.xlu0 %v1666
        %v1668 = vpop.xlane.xlu0 %1667
        %v1669 = vsel %vm1607, %v1657, 0.0
        %1670 = vadd.xlane.f32.xlu0 %v1669
        %v1671 = vpop.xlane.xlu0 %1670
        %v1672 = vsel %vm1607, %v1658, 0.0
        %1673 = vadd.xlane.f32.xlu0 %v1672
        %v1674 = vpop.xlane.xlu0 %1673
        %v1675 = vsel %vm1607, %v1659, 0.0
        %1676 = vadd.xlane.f32.xlu0 %v1675
        %v1677 = vpop.xlane.xlu0 %1676
        %v1678 = vsel %vm1607, %v1660, 0.0
        %1679 = vadd.xlane.f32.xlu0 %v1678
        %v1680 = vpop.xlane.xlu0 %1679
        %v1681 = vsel %vm1607, %v1661, 0.0
        %1682 = vadd.xlane.f32.xlu0 %v1681
        %v1683 = vpop.xlane.xlu0 %1682
        %v1684 = vsel %vm1607, %v1662, 0.0
        %1685 = vadd.xlane.f32.xlu0 %v1684
        %v1686 = vpop.xlane.xlu0 %1685
        %v1687 = vmul.f32 %v1665, %v1638
        %v1688 = vmul.f32 %v1668, %v1638
        %v1689 = vmul.f32 %v1671, %v1638
        %v1690 = vmul.f32 %v1674, %v1638
        %v1691 = vmul.f32 %v1677, %v1638
        %v1692 = vmul.f32 %v1680, %v1638
        %v1693 = vmul.f32 %v1683, %v1638
        %v1694 = vmul.f32 %v1686, %v1638
        %v1695 = vadd.f32 %v1687, 1e-05
        %v1696 = vadd.f32 %v1688, 1e-05
        %v1697 = vadd.f32 %v1689, 1e-05
        %v1698 = vadd.f32 %v1690, 1e-05
        %v1699 = vadd.f32 %v1691, 1e-05
        %v1700 = vadd.f32 %v1692, 1e-05
        %v1701 = vadd.f32 %v1693, 1e-05
        %v1702 = vadd.f32 %v1694, 1e-05
        %v1703 = vrsqrt.pop %v1695
        %v1704 = vmul.f32 %v1703, %v1695
        %v1705 = vmul.f32 %v1704, %v1703
        %v1706 = vmul.f32 0.5, %v1705
        %v1707 = vsub.f32 1.5, %v1706
        %v1708 = vmul.f32 %v1703, %v1707
        %vm1709 = vweird.f32 %v1695
        %vm1710 = vweird.f32 %v1703
        %vm1711 = vmor %vm1709, %vm1710
        %v1712 = vsel %vm1711, %v1703, %v1708
        %v1713 = vrsqrt.pop %v1696
        %v1714 = vmul.f32 %v1713, %v1696
        %v1715 = vmul.f32 %v1714, %v1713
        %v1716 = vmul.f32 0.5, %v1715
        %v1717 = vsub.f32 1.5, %v1716
        %v1718 = vmul.f32 %v1713, %v1717
        %vm1719 = vweird.f32 %v1696
        %vm1720 = vweird.f32 %v1713
        %vm1721 = vmor %vm1719, %vm1720
        %v1722 = vsel %vm1721, %v1713, %v1718
        %v1723 = vrsqrt.pop %v1697
        %v1724 = vmul.f32 %v1723, %v1697
        %v1725 = vmul.f32 %v1724, %v1723
        %v1726 = vmul.f32 0.5, %v1725
        %v1727 = vsub.f32 1.5, %v1726
        %v1728 = vmul.f32 %v1723, %v1727
        %vm1729 = vweird.f32 %v1697
        %vm1730 = vweird.f32 %v1723
        %vm1731 = vmor %vm1729, %vm1730
        %v1732 = vsel %vm1731, %v1723, %v1728
        %v1733 = vrsqrt.pop %v1698
        %v1734 = vmul.f32 %v1733, %v1698
        %v1735 = vmul.f32 %v1734, %v1733
        %v1736 = vmul.f32 0.5, %v1735
        %v1737 = vsub.f32 1.5, %v1736
        %v1738 = vmul.f32 %v1733, %v1737
        %vm1739 = vweird.f32 %v1698
        %vm1740 = vweird.f32 %v1733
        %vm1741 = vmor %vm1739, %vm1740
        %v1742 = vsel %vm1741, %v1733, %v1738
        %v1743 = vrsqrt.pop %v1699
        %v1744 = vmul.f32 %v1743, %v1699
        %v1745 = vmul.f32 %v1744, %v1743
        %v1746 = vmul.f32 0.5, %v1745
        %v1747 = vsub.f32 1.5, %v1746
        %v1748 = vmul.f32 %v1743, %v1747
        %vm1749 = vweird.f32 %v1699
        %vm1750 = vweird.f32 %v1743
        %vm1751 = vmor %vm1749, %vm1750
        %v1752 = vsel %vm1751, %v1743, %v1748
        %v1753 = vrsqrt.pop %v1700
        %v1754 = vmul.f32 %v1753, %v1700
        %v1755 = vmul.f32 %v1754, %v1753
        %v1756 = vmul.f32 0.5, %v1755
        %v1757 = vsub.f32 1.5, %v1756
        %v1758 = vmul.f32 %v1753, %v1757
        %vm1759 = vweird.f32 %v1700
        %vm1760 = vweird.f32 %v1753
        %vm1761 = vmor %vm1759, %vm1760
        %v1762 = vsel %vm1761, %v1753, %v1758
        %v1763 = vrsqrt.pop %v1701
        %v1764 = vmul.f32 %v1763, %v1701
        %v1765 = vmul.f32 %v1764, %v1763
        %v1766 = vmul.f32 0.5, %v1765
        %v1767 = vsub.f32 1.5, %v1766
        %v1768 = vmul.f32 %v1763, %v1767
        %vm1769 = vweird.f32 %v1701
        %vm1770 = vweird.f32 %v1763
        %vm1771 = vmor %vm1769, %vm1770
        %v1772 = vsel %vm1771, %v1763, %v1768
        %v1773 = vrsqrt.pop %v1702
        %v1774 = vmul.f32 %v1773, %v1702
        %v1775 = vmul.f32 %v1774, %v1773
        %v1776 = vmul.f32 0.5, %v1775
        %v1777 = vsub.f32 1.5, %v1776
        %v1778 = vmul.f32 %v1773, %v1777
        %vm1779 = vweird.f32 %v1702
        %vm1780 = vweird.f32 %v1773
        %vm1781 = vmor %vm1779, %vm1780
        %v1782 = vsel %vm1781, %v1773, %v1778
        %v1783 = vmul.f32 %v1647, %v1712
        %v1784 = vmul.f32 %v1648, %v1722
        %v1785 = vmul.f32 %v1649, %v1732
        %v1786 = vmul.f32 %v1650, %v1742
        %v1787 = vmul.f32 %v1651, %v1752
        %v1788 = vmul.f32 %v1652, %v1762
        %v1789 = vmul.f32 %v1653, %v1772
        %v1790 = vmul.f32 %v1654, %v1782
        %v1791 = vld [vmem:[#allocation8] sm:$0x1]
        %v1792 = vperm.slane %v1791, 0
        %v1793 = vmul.f32 %v1783, %v1792
        %v1794 = vmul.f32 %v1784, %v1792
        %v1795 = vmul.f32 %v1785, %v1792
        %v1796 = vmul.f32 %v1786, %v1792
        %v1797 = vmul.f32 %v1787, %v1792
        %v1798 = vmul.f32 %v1788, %v1792
        %v1799 = vmul.f32 %v1789, %v1792
        %v1800 = vmul.f32 %v1790, %v1792
        %v1801 = vld [vmem:[#allocation8 + $0x1] sm:$0x1]
        %v1802 = vperm.slane %v1801, 0
        %v1803 = vadd.f32 %v1793, %v1802
        %v1804 = vadd.f32 %v1794, %v1802
        %v1805 = vadd.f32 %v1795, %v1802
        %v1806 = vadd.f32 %v1796, %v1802
        %v1807 = vadd.f32 %v1797, %v1802
        %v1808 = vadd.f32 %v1798, %v1802
        %v1809 = vadd.f32 %v1799, %v1802
        %v1810 = vadd.f32 %v1800, %v1802
        %v1811 = vld [vmem:[%s5] sm:$0xff]
        %v1812 = vld [vmem:[%s5 + $0x28] sm:$0xff]
        %v1813 = vld [vmem:[%s5 + $0x50] sm:$0xff]
        %v1814 = vld [vmem:[%s5 + $0x78] sm:$0xff]
        %v1815 = vld [vmem:[%s6] sm:$0x1]
        %v1817 = vperm.slane %v1815, 0
        %v1820 = vsel %vm1607, %v1803, 0
        %v1823 = vsel %vm1607, %v1804, 0
        %v1826 = vsel %vm1607, %v1805, 0
        %v1829 = vsel %vm1607, %v1806, 0
        %v1832 = vsel %vm1607, %v1807, 0
        %v1835 = vsel %vm1607, %v1808, 0
        %v1838 = vsel %vm1607, %v1809, 0
        %v1841 = vsel %vm1607, %v1810, 0
        %1843 = vmatpush.msra.mxu0 0.0
        %1844 = vmatpush.msra.mxu0 0.0
        %1845 = vmatpush.msra.mxu0 0.0
        %1846 = vmatpush.msra.mxu0 0.0
        %1847 = vmatpush.msra.mxu0 0.0
        %1848 = vmatpush.msra.mxu0 0.0
        %1849 = vmatpush.msra.mxu0 0.0
        %1850 = vmatpush.msra.mxu0 0.0
        %1851 = vmatpush.msra.mxu0 0.0
        %1852 = vmatpush.msra.mxu0 0.0
        %1853 = vmatpush.msra.mxu0 0.0
        %1854 = vmatpush.msra.mxu0 0.0
        %1855 = vmatpush.msra.mxu0 %v1814
        %1856 = vmatpush.msra.mxu0 %v1813
        %1857 = vmatpush.msra.mxu0 %v1812
        %1858 = vmatpush.msra.mxu0 %v1811
        %1859 = vmatmul.f32.gmra.mxu0 %v1820
        %v1860 = vpop.f32.mrf.mxu0
        %v1861 = vadd.f32 %v1817, %v1860
        %1862 = vmatmul.f32.gmra.mxu0 %v1823
        %v1863 = vpop.f32.mrf.mxu0
        %v1864 = vadd.f32 %v1817, %v1863
        %1865 = vmatmul.f32.gmra.mxu0 %v1826
        %v1866 = vpop.f32.mrf.mxu0
        %v1867 = vadd.f32 %v1817, %v1866
        %1868 = vmatmul.f32.gmra.mxu0 %v1829
        %v1869 = vpop.f32.mrf.mxu0
        %v1870 = vadd.f32 %v1817, %v1869
        %1871 = vmatmul.f32.gmra.mxu0 %v1832
        %v1872 = vpop.f32.mrf.mxu0
        %v1873 = vadd.f32 %v1817, %v1872
        %1874 = vmatmul.f32.gmra.mxu0 %v1835
        %v1875 = vpop.f32.mrf.mxu0
        %v1876 = vadd.f32 %v1817, %v1875
        %1877 = vmatmul.f32.gmra.mxu0 %v1838
        %v1878 = vpop.f32.mrf.mxu0
        %v1879 = vadd.f32 %v1817, %v1878
        %1880 = vmatmul.f32.gmra.mxu0 %v1841
        %v1881 = vpop.f32.mrf.mxu0
        %v1882 = vadd.f32 %v1817, %v1881
        %1883 = vdwg.mxu0
        %v1884 = vld [vmem:[#allocation6] sm:$0x1]
        %1886 = vset.pattern.permute.xlu0 96
        %1887 = vperm.xlu0 %1886, %v1861
        %v1888 = vpop.permute.xlu0 %1887
        %1891 = vset.pattern.permute.xlu0 96
        %1892 = vperm.xlu0 %1891, %v1864
        %v1893 = vpop.permute.xlu0 %1892
        %1896 = vset.pattern.permute.xlu0 96
        %1897 = vperm.xlu0 %1896, %v1867
        %v1898 = vpop.permute.xlu0 %1897
        %1901 = vset.pattern.permute.xlu0 96
        %1902 = vperm.xlu0 %1901, %v1870
        %v1903 = vpop.permute.xlu0 %1902
        %1906 = vset.pattern.permute.xlu0 96
        %1907 = vperm.xlu0 %1906, %v1873
        %v1908 = vpop.permute.xlu0 %1907
        %1911 = vset.pattern.permute.xlu0 96
        %1912 = vperm.xlu0 %1911, %v1876
        %v1913 = vpop.permute.xlu0 %1912
        %1916 = vset.pattern.permute.xlu0 96
        %1917 = vperm.xlu0 %1916, %v1879
        %v1918 = vpop.permute.xlu0 %1917
        %1921 = vset.pattern.permute.xlu0 96
        %1922 = vperm.xlu0 %1921, %v1882
        %v1923 = vpop.permute.xlu0 %1922
        %v1925 = vmul.f32 %v1596, %v1888
        %v1926 = vmul.f32 %v1596, %v1893
        %v1927 = vmul.f32 %v1596, %v1898
        %v1928 = vmul.f32 %v1596, %v1903
        %v1929 = vmul.f32 %v1596, %v1908
        %v1930 = vmul.f32 %v1596, %v1913
        %v1931 = vmul.f32 %v1596, %v1918
        %v1932 = vmul.f32 %v1596, %v1923
        %1933 = vrot.lane.b32.xlu0 %v1861, 96
        %v1934 = vpop.permute.xlu0 %1933
        %v1935 = vsel %vm1607, %v1861, 0
        %v1937 = vsel %vm1607, %v1934, 0
        %1939 = vmatpush.xpose.msra.mxu0 0.0
        %1940 = vmatpush.xpose.msra.mxu0 0.0
        %1941 = vmatpush.xpose.msra.mxu0 0.0
        %1942 = vmatpush.xpose.msra.mxu0 0.0
        %1943 = vmatpush.xpose.msra.mxu0 0.0
        %1944 = vmatpush.xpose.msra.mxu0 0.0
        %1945 = vmatpush.xpose.msra.mxu0 0.0
        %1946 = vmatpush.xpose.msra.mxu0 0.0
        %1947 = vmatpush.xpose.msra.mxu0 0.0
        %1948 = vmatpush.xpose.msra.mxu0 0.0
        %1949 = vmatpush.xpose.msra.mxu0 0.0
        %1950 = vmatpush.xpose.msra.mxu0 0.0
        %1951 = vmatpush.xpose.msra.mxu0 0.0
        %1952 = vmatpush.xpose.msra.mxu0 0.0
        %1953 = vmatpush.xpose.msra.mxu0 0.0
        %1954 = vmatpush.xpose.msra.mxu0 %v1937
        %1955 = vmatmul.f32.gmra.mxu0 %v1935
        %v1956 = vpop.f32.mrf.mxu0
        %v1957 = vadd.f32 %v1925, %v1956
        %1958 = vdwg.mxu0
        %1959 = vrot.lane.b32.xlu0 %v1864, 96
        %v1960 = vpop.permute.xlu0 %1959
        %v1961 = vsel %vm1607, %v1864, 0
        %v1963 = vsel %vm1607, %v1960, 0
        %1965 = vmatpush.xpose.msra.mxu0 0.0
        %1966 = vmatpush.xpose.msra.mxu0 0.0
        %1967 = vmatpush.xpose.msra.mxu0 0.0
        %1968 = vmatpush.xpose.msra.mxu0 0.0
        %1969 = vmatpush.xpose.msra.mxu0 0.0
        %1970 = vmatpush.xpose.msra.mxu0 0.0
        %1971 = vmatpush.xpose.msra.mxu0 0.0
        %1972 = vmatpush.xpose.msra.mxu0 0.0
        %1973 = vmatpush.xpose.msra.mxu0 0.0
        %1974 = vmatpush.xpose.msra.mxu0 0.0
        %1975 = vmatpush.xpose.msra.mxu0 0.0
        %1976 = vmatpush.xpose.msra.mxu0 0.0
        %1977 = vmatpush.xpose.msra.mxu0 0.0
        %1978 = vmatpush.xpose.msra.mxu0 0.0
        %1979 = vmatpush.xpose.msra.mxu0 0.0
        %1980 = vmatpush.xpose.msra.mxu0 %v1963
        %1981 = vmatmul.f32.gmra.mxu0 %v1961
        %v1982 = vpop.f32.mrf.mxu0
        %v1983 = vadd.f32 %v1926, %v1982
        %1984 = vdwg.mxu0
        %1985 = vrot.lane.b32.xlu0 %v1867, 96
        %v1986 = vpop.permute.xlu0 %1985
        %v1987 = vsel %vm1607, %v1867, 0
        %v1989 = vsel %vm1607, %v1986, 0
        %1991 = vmatpush.xpose.msra.mxu0 0.0
        %1992 = vmatpush.xpose.msra.mxu0 0.0
        %1993 = vmatpush.xpose.msra.mxu0 0.0
        %1994 = vmatpush.xpose.msra.mxu0 0.0
        %1995 = vmatpush.xpose.msra.mxu0 0.0
        %1996 = vmatpush.xpose.msra.mxu0 0.0
        %1997 = vmatpush.xpose.msra.mxu0 0.0
        %1998 = vmatpush.xpose.msra.mxu0 0.0
        %1999 = vmatpush.xpose.msra.mxu0 0.0
        %2000 = vmatpush.xpose.msra.mxu0 0.0
        %2001 = vmatpush.xpose.msra.mxu0 0.0
        %2002 = vmatpush.xpose.msra.mxu0 0.0
        %2003 = vmatpush.xpose.msra.mxu0 0.0
        %2004 = vmatpush.xpose.msra.mxu0 0.0
        %2005 = vmatpush.xpose.msra.mxu0 0.0
        %2006 = vmatpush.xpose.msra.mxu0 %v1989
        %2007 = vmatmul.f32.gmra.mxu0 %v1987
        %v2008 = vpop.f32.mrf.mxu0
        %v2009 = vadd.f32 %v1927, %v2008
        %2010 = vdwg.mxu0
        %2011 = vrot.lane.b32.xlu0 %v1870, 96
        %v2012 = vpop.permute.xlu0 %2011
        %v2013 = vsel %vm1607, %v1870, 0
        %v2015 = vsel %vm1607, %v2012, 0
        %2017 = vmatpush.xpose.msra.mxu0 0.0
        %2018 = vmatpush.xpose.msra.mxu0 0.0
        %2019 = vmatpush.xpose.msra.mxu0 0.0
        %2020 = vmatpush.xpose.msra.mxu0 0.0
        %2021 = vmatpush.xpose.msra.mxu0 0.0
        %2022 = vmatpush.xpose.msra.mxu0 0.0
        %2023 = vmatpush.xpose.msra.mxu0 0.0
        %2024 = vmatpush.xpose.msra.mxu0 0.0
        %2025 = vmatpush.xpose.msra.mxu0 0.0
        %2026 = vmatpush.xpose.msra.mxu0 0.0
        %2027 = vmatpush.xpose.msra.mxu0 0.0
        %2028 = vmatpush.xpose.msra.mxu0 0.0
        %2029 = vmatpush.xpose.msra.mxu0 0.0
        %2030 = vmatpush.xpose.msra.mxu0 0.0
        %2031 = vmatpush.xpose.msra.mxu0 0.0
        %2032 = vmatpush.xpose.msra.mxu0 %v2015
        %2033 = vmatmul.f32.gmra.mxu0 %v2013
        %v2034 = vpop.f32.mrf.mxu0
        %v2035 = vadd.f32 %v1928, %v2034
        %2036 = vdwg.mxu0
        %2037 = vrot.lane.b32.xlu0 %v1873, 96
        %v2038 = vpop.permute.xlu0 %2037
        %v2039 = vsel %vm1607, %v1873, 0
        %v2041 = vsel %vm1607, %v2038, 0
        %2043 = vmatpush.xpose.msra.mxu0 0.0
        %2044 = vmatpush.xpose.msra.mxu0 0.0
        %2045 = vmatpush.xpose.msra.mxu0 0.0
        %2046 = vmatpush.xpose.msra.mxu0 0.0
        %2047 = vmatpush.xpose.msra.mxu0 0.0
        %2048 = vmatpush.xpose.msra.mxu0 0.0
        %2049 = vmatpush.xpose.msra.mxu0 0.0
        %2050 = vmatpush.xpose.msra.mxu0 0.0
        %2051 = vmatpush.xpose.msra.mxu0 0.0
        %2052 = vmatpush.xpose.msra.mxu0 0.0
        %2053 = vmatpush.xpose.msra.mxu0 0.0
        %2054 = vmatpush.xpose.msra.mxu0 0.0
        %2055 = vmatpush.xpose.msra.mxu0 0.0
        %2056 = vmatpush.xpose.msra.mxu0 0.0
        %2057 = vmatpush.xpose.msra.mxu0 0.0
        %2058 = vmatpush.xpose.msra.mxu0 %v2041
        %2059 = vmatmul.f32.gmra.mxu0 %v2039
        %v2060 = vpop.f32.mrf.mxu0
        %v2061 = vadd.f32 %v1929, %v2060
        %2062 = vdwg.mxu0
        %2063 = vrot.lane.b32.xlu0 %v1876, 96
        %v2064 = vpop.permute.xlu0 %2063
        %v2065 = vsel %vm1607, %v1876, 0
        %v2067 = vsel %vm1607, %v2064, 0
        %2069 = vmatpush.xpose.msra.mxu0 0.0
        %2070 = vmatpush.xpose.msra.mxu0 0.0
        %2071 = vmatpush.xpose.msra.mxu0 0.0
        %2072 = vmatpush.xpose.msra.mxu0 0.0
        %2073 = vmatpush.xpose.msra.mxu0 0.0
        %2074 = vmatpush.xpose.msra.mxu0 0.0
        %2075 = vmatpush.xpose.msra.mxu0 0.0
        %2076 = vmatpush.xpose.msra.mxu0 0.0
        %2077 = vmatpush.xpose.msra.mxu0 0.0
        %2078 = vmatpush.xpose.msra.mxu0 0.0
        %2079 = vmatpush.xpose.msra.mxu0 0.0
        %2080 = vmatpush.xpose.msra.mxu0 0.0
        %2081 = vmatpush.xpose.msra.mxu0 0.0
        %2082 = vmatpush.xpose.msra.mxu0 0.0
        %2083 = vmatpush.xpose.msra.mxu0 0.0
        %2084 = vmatpush.xpose.msra.mxu0 %v2067
        %2085 = vmatmul.f32.gmra.mxu0 %v2065
        %v2086 = vpop.f32.mrf.mxu0
        %v2087 = vadd.f32 %v1930, %v2086
        %2088 = vdwg.mxu0
        %2089 = vrot.lane.b32.xlu0 %v1879, 96
        %v2090 = vpop.permute.xlu0 %2089
        %v2091 = vsel %vm1607, %v1879, 0
        %v2093 = vsel %vm1607, %v2090, 0
        %2095 = vmatpush.xpose.msra.mxu0 0.0
        %2096 = vmatpush.xpose.msra.mxu0 0.0
        %2097 = vmatpush.xpose.msra.mxu0 0.0
        %2098 = vmatpush.xpose.msra.mxu0 0.0
        %2099 = vmatpush.xpose.msra.mxu0 0.0
        %2100 = vmatpush.xpose.msra.mxu0 0.0
        %2101 = vmatpush.xpose.msra.mxu0 0.0
        %2102 = vmatpush.xpose.msra.mxu0 0.0
        %2103 = vmatpush.xpose.msra.mxu0 0.0
        %2104 = vmatpush.xpose.msra.mxu0 0.0
        %2105 = vmatpush.xpose.msra.mxu0 0.0
        %2106 = vmatpush.xpose.msra.mxu0 0.0
        %2107 = vmatpush.xpose.msra.mxu0 0.0
        %2108 = vmatpush.xpose.msra.mxu0 0.0
        %2109 = vmatpush.xpose.msra.mxu0 0.0
        %2110 = vmatpush.xpose.msra.mxu0 %v2093
        %2111 = vmatmul.f32.gmra.mxu0 %v2091
        %v2112 = vpop.f32.mrf.mxu0
        %v2113 = vadd.f32 %v1931, %v2112
        %2114 = vdwg.mxu0
        %2115 = vrot.lane.b32.xlu0 %v1882, 96
        %v2116 = vpop.permute.xlu0 %2115
        %v2117 = vsel %vm1607, %v1882, 0
        %v2119 = vsel %vm1607, %v2116, 0
        %2121 = vmatpush.xpose.msra.mxu0 0.0
        %2122 = vmatpush.xpose.msra.mxu0 0.0
        %2123 = vmatpush.xpose.msra.mxu0 0.0
        %2124 = vmatpush.xpose.msra.mxu0 0.0
        %2125 = vmatpush.xpose.msra.mxu0 0.0
        %2126 = vmatpush.xpose.msra.mxu0 0.0
        %2127 = vmatpush.xpose.msra.mxu0 0.0
        %2128 = vmatpush.xpose.msra.mxu0 0.0
        %2129 = vmatpush.xpose.msra.mxu0 0.0
        %2130 = vmatpush.xpose.msra.mxu0 0.0
        %2131 = vmatpush.xpose.msra.mxu0 0.0
        %2132 = vmatpush.xpose.msra.mxu0 0.0
        %2133 = vmatpush.xpose.msra.mxu0 0.0
        %2134 = vmatpush.xpose.msra.mxu0 0.0
        %2135 = vmatpush.xpose.msra.mxu0 0.0
        %2136 = vmatpush.xpose.msra.mxu0 %v2119
        %2137 = vmatmul.f32.gmra.mxu0 %v2117
        %v2138 = vpop.f32.mrf.mxu0
        %v2139 = vadd.f32 %v1932, %v2138
        %2140 = vdwg.mxu0
        %v2141 = vmul.f32 %v1957, 0.17677669
        %v2142 = vmul.f32 %v1983, 0.17677669
        %v2143 = vmul.f32 %v2009, 0.17677669
        %v2144 = vmul.f32 %v2035, 0.17677669
        %v2145 = vmul.f32 %v2061, 0.17677669
        %v2146 = vmul.f32 %v2087, 0.17677669
        %v2147 = vmul.f32 %v2113, 0.17677669
        %v2148 = vmul.f32 %v2139, 0.17677669
        %v2149 = vadd.f32 %v2141, %v1598
        %v2150 = vadd.f32 %v2142, %v1598
        %v2151 = vadd.f32 %v2143, %v1598
        %v2152 = vadd.f32 %v2144, %v1598
        %v2153 = vadd.f32 %v2145, %v1598
        %v2154 = vadd.f32 %v2146, %v1598
        %v2155 = vadd.f32 %v2147, %v1598
        %v2156 = vadd.f32 %v2148, %v1598
        %v2157 = vsel %vm882, %v2149, -inf
        %2158 = vmax.xlane.f32.xlu0 %v2157
        %v2159 = vpop.xlane.xlu0 %2158
        %v2160 = vsel %vm882, %v2150, -inf
        %2161 = vmax.xlane.f32.xlu0 %v2160
        %v2162 = vpop.xlane.xlu0 %2161
        %v2163 = vsel %vm882, %v2151, -inf
        %2164 = vmax.xlane.f32.xlu0 %v2163
        %v2165 = vpop.xlane.xlu0 %2164
        %v2166 = vsel %vm882, %v2152, -inf
        %2167 = vmax.xlane.f32.xlu0 %v2166
        %v2168 = vpop.xlane.xlu0 %2167
        %v2169 = vsel %vm882, %v2153, -inf
        %2170 = vmax.xlane.f32.xlu0 %v2169
        %v2171 = vpop.xlane.xlu0 %2170
        %v2172 = vsel %vm882, %v2154, -inf
        %2173 = vmax.xlane.f32.xlu0 %v2172
        %v2174 = vpop.xlane.xlu0 %2173
        %v2175 = vsel %vm882, %v2155, -inf
        %2176 = vmax.xlane.f32.xlu0 %v2175
        %v2177 = vpop.xlane.xlu0 %2176
        %v2178 = vsel %vm882, %v2156, -inf
        %2179 = vmax.xlane.f32.xlu0 %v2178
        %v2180 = vpop.xlane.xlu0 %2179
        %v2181 = vsub.f32 %v2149, %v2159
        %v2182 = vsub.f32 %v2150, %v2162
        %v2183 = vsub.f32 %v2151, %v2165
        %v2184 = vsub.f32 %v2152, %v2168
        %v2185 = vsub.f32 %v2153, %v2171
        %v2186 = vsub.f32 %v2154, %v2174
        %v2187 = vsub.f32 %v2155, %v2177
        %v2188 = vsub.f32 %v2156, %v2180
        %v2189 = vmul.f32 %v2181, 1.442695
        %v2190 = vpow.pop %v2189
        %v2191 = vmul.f32 %v2182, 1.442695
        %v2192 = vpow.pop %v2191
        %v2193 = vmul.f32 %v2183, 1.442695
        %v2194 = vpow.pop %v2193
        %v2195 = vmul.f32 %v2184, 1.442695
        %v2196 = vpow.pop %v2195
        %v2197 = vmul.f32 %v2185, 1.442695
        %v2198 = vpow.pop %v2197
        %v2199 = vmul.f32 %v2186, 1.442695
        %v2200 = vpow.pop %v2199
        %v2201 = vmul.f32 %v2187, 1.442695
        %v2202 = vpow.pop %v2201
        %v2203 = vmul.f32 %v2188, 1.442695
        %v2204 = vpow.pop %v2203
        %v2205 = vsel %vm882, %v2190, 0.0
        %2206 = vadd.xlane.f32.xlu0 %v2205
        %v2207 = vpop.xlane.xlu0 %2206
        %v2208 = vsel %vm882, %v2192, 0.0
        %2209 = vadd.xlane.f32.xlu0 %v2208
        %v2210 = vpop.xlane.xlu0 %2209
        %v2211 = vsel %vm882, %v2194, 0.0
        %2212 = vadd.xlane.f32.xlu0 %v2211
        %v2213 = vpop.xlane.xlu0 %2212
        %v2214 = vsel %vm882, %v2196, 0.0
        %2215 = vadd.xlane.f32.xlu0 %v2214
        %v2216 = vpop.xlane.xlu0 %2215
        %v2217 = vsel %vm882, %v2198, 0.0
        %2218 = vadd.xlane.f32.xlu0 %v2217
        %v2219 = vpop.xlane.xlu0 %2218
        %v2220 = vsel %vm882, %v2200, 0.0
        %2221 = vadd.xlane.f32.xlu0 %v2220
        %v2222 = vpop.xlane.xlu0 %2221
        %v2223 = vsel %vm882, %v2202, 0.0
        %2224 = vadd.xlane.f32.xlu0 %v2223
        %v2225 = vpop.xlane.xlu0 %2224
        %v2226 = vsel %vm882, %v2204, 0.0
        %2227 = vadd.xlane.f32.xlu0 %v2226
        %v2228 = vpop.xlane.xlu0 %2227
        %v2229 = vrcp.pop %v2207
        %v2230 = vmul.f32 %v2207, %v2229
        %v2231 = vsub.f32 1.0, %v2230
        %v2232 = vmul.f32 %v2229, %v2231
        %v2233 = vadd.f32 %v2229, %v2232
        %vm2234 = vweird.f32 %v2207
        %vm2235 = vweird.f32 %v2229
        %vm2236 = vmor %vm2234, %vm2235
        %v2237 = vsel %vm2236, %v2229, %v2233
        %v2238 = vand.u32 2147483647, %v2207
        %vm2239 = vcmp.eq.f32.partialorder %v2238, 8.507059e+37
        %v2240 = vand.u32 %v2207, 2147483648
        %v2241 = vor.u32 1.1754944e-38, %v2240
        %v2242 = vsel %vm2239, %v2241, %v2237
        %v2243 = vmul.f32 %v2190, %v2242
        %v2244 = vrcp.pop %v2210
        %v2245 = vmul.f32 %v2210, %v2244
        %v2246 = vsub.f32 1.0, %v2245
        %v2247 = vmul.f32 %v2244, %v2246
        %v2248 = vadd.f32 %v2244, %v2247
        %vm2249 = vweird.f32 %v2210
        %vm2250 = vweird.f32 %v2244
        %vm2251 = vmor %vm2249, %vm2250
        %v2252 = vsel %vm2251, %v2244, %v2248
        %v2253 = vand.u32 2147483647, %v2210
        %vm2254 = vcmp.eq.f32.partialorder %v2253, 8.507059e+37
        %v2255 = vand.u32 %v2210, 2147483648
        %v2256 = vor.u32 1.1754944e-38, %v2255
        %v2257 = vsel %vm2254, %v2256, %v2252
        %v2258 = vmul.f32 %v2192, %v2257
        %v2259 = vrcp.pop %v2213
        %v2260 = vmul.f32 %v2213, %v2259
        %v2261 = vsub.f32 1.0, %v2260
        %v2262 = vmul.f32 %v2259, %v2261
        %v2263 = vadd.f32 %v2259, %v2262
        %vm2264 = vweird.f32 %v2213
        %vm2265 = vweird.f32 %v2259
        %vm2266 = vmor %vm2264, %vm2265
        %v2267 = vsel %vm2266, %v2259, %v2263
        %v2268 = vand.u32 2147483647, %v2213
        %vm2269 = vcmp.eq.f32.partialorder %v2268, 8.507059e+37
        %v2270 = vand.u32 %v2213, 2147483648
        %v2271 = vor.u32 1.1754944e-38, %v2270
        %v2272 = vsel %vm2269, %v2271, %v2267
        %v2273 = vmul.f32 %v2194, %v2272
        %v2274 = vrcp.pop %v2216
        %v2275 = vmul.f32 %v2216, %v2274
        %v2276 = vsub.f32 1.0, %v2275
        %v2277 = vmul.f32 %v2274, %v2276
        %v2278 = vadd.f32 %v2274, %v2277
        %vm2279 = vweird.f32 %v2216
        %vm2280 = vweird.f32 %v2274
        %vm2281 = vmor %vm2279, %vm2280
        %v2282 = vsel %vm2281, %v2274, %v2278
        %v2283 = vand.u32 2147483647, %v2216
        %vm2284 = vcmp.eq.f32.partialorder %v2283, 8.507059e+37
        %v2285 = vand.u32 %v2216, 2147483648
        %v2286 = vor.u32 1.1754944e-38, %v2285
        %v2287 = vsel %vm2284, %v2286, %v2282
        %v2288 = vmul.f32 %v2196, %v2287
        %v2289 = vrcp.pop %v2219
        %v2290 = vmul.f32 %v2219, %v2289
        %v2291 = vsub.f32 1.0, %v2290
        %v2292 = vmul.f32 %v2289, %v2291
        %v2293 = vadd.f32 %v2289, %v2292
        %vm2294 = vweird.f32 %v2219
        %vm2295 = vweird.f32 %v2289
        %vm2296 = vmor %vm2294, %vm2295
        %v2297 = vsel %vm2296, %v2289, %v2293
        %v2298 = vand.u32 2147483647, %v2219
        %vm2299 = vcmp.eq.f32.partialorder %v2298, 8.507059e+37
        %v2300 = vand.u32 %v2219, 2147483648
        %v2301 = vor.u32 1.1754944e-38, %v2300
        %v2302 = vsel %vm2299, %v2301, %v2297
        %v2303 = vmul.f32 %v2198, %v2302
        %v2304 = vrcp.pop %v2222
        %v2305 = vmul.f32 %v2222, %v2304
        %v2306 = vsub.f32 1.0, %v2305
        %v2307 = vmul.f32 %v2304, %v2306
        %v2308 = vadd.f32 %v2304, %v2307
        %vm2309 = vweird.f32 %v2222
        %vm2310 = vweird.f32 %v2304
        %vm2311 = vmor %vm2309, %vm2310
        %v2312 = vsel %vm2311, %v2304, %v2308
        %v2313 = vand.u32 2147483647, %v2222
        %vm2314 = vcmp.eq.f32.partialorder %v2313, 8.507059e+37
        %v2315 = vand.u32 %v2222, 2147483648
        %v2316 = vor.u32 1.1754944e-38, %v2315
        %v2317 = vsel %vm2314, %v2316, %v2312
        %v2318 = vmul.f32 %v2200, %v2317
        %v2319 = vrcp.pop %v2225
        %v2320 = vmul.f32 %v2225, %v2319
        %v2321 = vsub.f32 1.0, %v2320
        %v2322 = vmul.f32 %v2319, %v2321
        %v2323 = vadd.f32 %v2319, %v2322
        %vm2324 = vweird.f32 %v2225
        %vm2325 = vweird.f32 %v2319
        %vm2326 = vmor %vm2324, %vm2325
        %v2327 = vsel %vm2326, %v2319, %v2323
        %v2328 = vand.u32 2147483647, %v2225
        %vm2329 = vcmp.eq.f32.partialorder %v2328, 8.507059e+37
        %v2330 = vand.u32 %v2225, 2147483648
        %v2331 = vor.u32 1.1754944e-38, %v2330
        %v2332 = vsel %vm2329, %v2331, %v2327
        %v2333 = vmul.f32 %v2202, %v2332
        %v2334 = vrcp.pop %v2228
        %v2335 = vmul.f32 %v2228, %v2334
        %v2336 = vsub.f32 1.0, %v2335
        %v2337 = vmul.f32 %v2334, %v2336
        %v2338 = vadd.f32 %v2334, %v2337
        %vm2339 = vweird.f32 %v2228
        %vm2340 = vweird.f32 %v2334
        %vm2341 = vmor %vm2339, %vm2340
        %v2342 = vsel %vm2341, %v2334, %v2338
        %v2343 = vand.u32 2147483647, %v2228
        %vm2344 = vcmp.eq.f32.partialorder %v2343, 8.507059e+37
        %v2345 = vand.u32 %v2228, 2147483648
        %v2346 = vor.u32 1.1754944e-38, %v2345
        %v2347 = vsel %vm2344, %v2346, %v2342
        %v2348 = vmul.f32 %v2204, %v2347
        %v2349 = vmul.f32 %v2243, %v1596
        %v2350 = vmul.f32 %v2258, %v1596
        %v2351 = vmul.f32 %v2273, %v1596
        %v2352 = vmul.f32 %v2288, %v1596
        %v2353 = vmul.f32 %v2303, %v1596
        %v2354 = vmul.f32 %v2318, %v1596
        %v2355 = vmul.f32 %v2333, %v1596
        %v2356 = vmul.f32 %v2348, %v1596
        %v2357 = vsel %vm882, %v2349, 0.0
        %2358 = vadd.xlane.f32.xlu0 %v2357
        %v2359 = vpop.xlane.xlu0 %2358
        %v2360 = vsel %vm882, %v2350, 0.0
        %2361 = vadd.xlane.f32.xlu0 %v2360
        %v2362 = vpop.xlane.xlu0 %2361
        %v2363 = vsel %vm882, %v2351, 0.0
        %2364 = vadd.xlane.f32.xlu0 %v2363
        %v2365 = vpop.xlane.xlu0 %2364
        %v2366 = vsel %vm882, %v2352, 0.0
        %2367 = vadd.xlane.f32.xlu0 %v2366
        %v2368 = vpop.xlane.xlu0 %2367
        %v2369 = vsel %vm882, %v2353, 0.0
        %2370 = vadd.xlane.f32.xlu0 %v2369
        %v2371 = vpop.xlane.xlu0 %2370
        %v2372 = vsel %vm882, %v2354, 0.0
        %2373 = vadd.xlane.f32.xlu0 %v2372
        %v2374 = vpop.xlane.xlu0 %2373
        %v2375 = vsel %vm882, %v2355, 0.0
        %2376 = vadd.xlane.f32.xlu0 %v2375
        %v2377 = vpop.xlane.xlu0 %2376
        %v2378 = vsel %vm882, %v2356, 0.0
        %2379 = vadd.xlane.f32.xlu0 %v2378
        %v2380 = vpop.xlane.xlu0 %2379
        %v2382 = vperm.slane %v1884, 0
        %v2384 = vmul.f32 %v2359, %v2382
        %v2385 = vmul.f32 %v2362, %v2382
        %v2386 = vmul.f32 %v2365, %v2382
        %v2387 = vmul.f32 %v2368, %v2382
        %v2388 = vmul.f32 %v2371, %v2382
        %v2389 = vmul.f32 %v2374, %v2382
        %v2390 = vmul.f32 %v2377, %v2382
        %v2391 = vmul.f32 %v2380, %v2382
        %2392 = vrot.lane.b32.xlu0 %v1861, 64
        %v2393 = vpop.permute.xlu0 %2392
        %v2396 = vsel %vm882, %v2243, 0
        %2398 = vmatpush.msra.mxu0 0.0
        %2399 = vmatpush.msra.mxu0 0.0
        %2400 = vmatpush.msra.mxu0 0.0
        %2401 = vmatpush.msra.mxu0 0.0
        %2402 = vmatpush.msra.mxu0 0.0
        %2403 = vmatpush.msra.mxu0 0.0
        %2404 = vmatpush.msra.mxu0 0.0
        %2405 = vmatpush.msra.mxu0 0.0
        %2406 = vmatpush.msra.mxu0 0.0
        %2407 = vmatpush.msra.mxu0 0.0
        %2408 = vmatpush.msra.mxu0 0.0
        %2409 = vmatpush.msra.mxu0 0.0
        %2410 = vmatpush.msra.mxu0 0.0
        %2411 = vmatpush.msra.mxu0 0.0
        %2412 = vmatpush.msra.mxu0 0.0
        %2413 = vmatpush.msra.mxu0 %v2393
        %2414 = vmatmul.f32.gmra.mxu0 %v2396
        %v2415 = vpop.f32.mrf.mxu0
        %v2416 = vadd.f32 %v2384, %v2415
        %2417 = vdwg.mxu0
        %2418 = vrot.lane.b32.xlu0 %v1864, 64
        %v2419 = vpop.permute.xlu0 %2418
        %v2422 = vsel %vm882, %v2258, 0
        %2424 = vmatpush.msra.mxu0 0.0
        %2425 = vmatpush.msra.mxu0 0.0
        %2426 = vmatpush.msra.mxu0 0.0
        %2427 = vmatpush.msra.mxu0 0.0
        %2428 = vmatpush.msra.mxu0 0.0
        %2429 = vmatpush.msra.mxu0 0.0
        %2430 = vmatpush.msra.mxu0 0.0
        %2431 = vmatpush.msra.mxu0 0.0
        %2432 = vmatpush.msra.mxu0 0.0
        %2433 = vmatpush.msra.mxu0 0.0
        %2434 = vmatpush.msra.mxu0 0.0
        %2435 = vmatpush.msra.mxu0 0.0
        %2436 = vmatpush.msra.mxu0 0.0
        %2437 = vmatpush.msra.mxu0 0.0
        %2438 = vmatpush.msra.mxu0 0.0
        %2439 = vmatpush.msra.mxu0 %v2419
        %2440 = vmatmul.f32.gmra.mxu0 %v2422
        %v2441 = vpop.f32.mrf.mxu0
        %v2442 = vadd.f32 %v2385, %v2441
        %2443 = vdwg.mxu0
        %2444 = vrot.lane.b32.xlu0 %v1867, 64
        %v2445 = vpop.permute.xlu0 %2444
        %v2448 = vsel %vm882, %v2273, 0
        %2450 = vmatpush.msra.mxu0 0.0
        %2451 = vmatpush.msra.mxu0 0.0
        %2452 = vmatpush.msra.mxu0 0.0
        %2453 = vmatpush.msra.mxu0 0.0
        %2454 = vmatpush.msra.mxu0 0.0
        %2455 = vmatpush.msra.mxu0 0.0
        %2456 = vmatpush.msra.mxu0 0.0
        %2457 = vmatpush.msra.mxu0 0.0
        %2458 = vmatpush.msra.mxu0 0.0
        %2459 = vmatpush.msra.mxu0 0.0
        %2460 = vmatpush.msra.mxu0 0.0
        %2461 = vmatpush.msra.mxu0 0.0
        %2462 = vmatpush.msra.mxu0 0.0
        %2463 = vmatpush.msra.mxu0 0.0
        %2464 = vmatpush.msra.mxu0 0.0
        %2465 = vmatpush.msra.mxu0 %v2445
        %2466 = vmatmul.f32.gmra.mxu0 %v2448
        %v2467 = vpop.f32.mrf.mxu0
        %v2468 = vadd.f32 %v2386, %v2467
        %2469 = vdwg.mxu0
        %2470 = vrot.lane.b32.xlu0 %v1870, 64
        %v2471 = vpop.permute.xlu0 %2470
        %v2474 = vsel %vm882, %v2288, 0
        %2476 = vmatpush.msra.mxu0 0.0
        %2477 = vmatpush.msra.mxu0 0.0
        %2478 = vmatpush.msra.mxu0 0.0
        %2479 = vmatpush.msra.mxu0 0.0
        %2480 = vmatpush.msra.mxu0 0.0
        %2481 = vmatpush.msra.mxu0 0.0
        %2482 = vmatpush.msra.mxu0 0.0
        %2483 = vmatpush.msra.mxu0 0.0
        %2484 = vmatpush.msra.mxu0 0.0
        %2485 = vmatpush.msra.mxu0 0.0
        %2486 = vmatpush.msra.mxu0 0.0
        %2487 = vmatpush.msra.mxu0 0.0
        %2488 = vmatpush.msra.mxu0 0.0
        %2489 = vmatpush.msra.mxu0 0.0
        %2490 = vmatpush.msra.mxu0 0.0
        %2491 = vmatpush.msra.mxu0 %v2471
        %2492 = vmatmul.f32.gmra.mxu0 %v2474
        %v2493 = vpop.f32.mrf.mxu0
        %v2494 = vadd.f32 %v2387, %v2493
        %2495 = vdwg.mxu0
        %2496 = vrot.lane.b32.xlu0 %v1873, 64
        %v2497 = vpop.permute.xlu0 %2496
        %v2500 = vsel %vm882, %v2303, 0
        %2502 = vmatpush.msra.mxu0 0.0
        %2503 = vmatpush.msra.mxu0 0.0
        %2504 = vmatpush.msra.mxu0 0.0
        %2505 = vmatpush.msra.mxu0 0.0
        %2506 = vmatpush.msra.mxu0 0.0
        %2507 = vmatpush.msra.mxu0 0.0
        %2508 = vmatpush.msra.mxu0 0.0
        %2509 = vmatpush.msra.mxu0 0.0
        %2510 = vmatpush.msra.mxu0 0.0
        %2511 = vmatpush.msra.mxu0 0.0
        %2512 = vmatpush.msra.mxu0 0.0
        %2513 = vmatpush.msra.mxu0 0.0
        %2514 = vmatpush.msra.mxu0 0.0
        %2515 = vmatpush.msra.mxu0 0.0
        %2516 = vmatpush.msra.mxu0 0.0
        %2517 = vmatpush.msra.mxu0 %v2497
        %2518 = vmatmul.f32.gmra.mxu0 %v2500
        %v2519 = vpop.f32.mrf.mxu0
        %v2520 = vadd.f32 %v2388, %v2519
        %2521 = vdwg.mxu0
        %2522 = vrot.lane.b32.xlu0 %v1876, 64
        %v2523 = vpop.permute.xlu0 %2522
        %v2526 = vsel %vm882, %v2318, 0
        %2528 = vmatpush.msra.mxu0 0.0
        %2529 = vmatpush.msra.mxu0 0.0
        %2530 = vmatpush.msra.mxu0 0.0
        %2531 = vmatpush.msra.mxu0 0.0
        %2532 = vmatpush.msra.mxu0 0.0
        %2533 = vmatpush.msra.mxu0 0.0
        %2534 = vmatpush.msra.mxu0 0.0
        %2535 = vmatpush.msra.mxu0 0.0
        %2536 = vmatpush.msra.mxu0 0.0
        %2537 = vmatpush.msra.mxu0 0.0
        %2538 = vmatpush.msra.mxu0 0.0
        %2539 = vmatpush.msra.mxu0 0.0
        %2540 = vmatpush.msra.mxu0 0.0
        %2541 = vmatpush.msra.mxu0 0.0
        %2542 = vmatpush.msra.mxu0 0.0
        %2543 = vmatpush.msra.mxu0 %v2523
        %2544 = vmatmul.f32.gmra.mxu0 %v2526
        %v2545 = vpop.f32.mrf.mxu0
        %v2546 = vadd.f32 %v2389, %v2545
        %2547 = vdwg.mxu0
        %2548 = vrot.lane.b32.xlu0 %v1879, 64
        %v2549 = vpop.permute.xlu0 %2548
        %v2552 = vsel %vm882, %v2333, 0
        %2554 = vmatpush.msra.mxu0 0.0
        %2555 = vmatpush.msra.mxu0 0.0
        %2556 = vmatpush.msra.mxu0 0.0
        %2557 = vmatpush.msra.mxu0 0.0
        %2558 = vmatpush.msra.mxu0 0.0
        %2559 = vmatpush.msra.mxu0 0.0
        %2560 = vmatpush.msra.mxu0 0.0
        %2561 = vmatpush.msra.mxu0 0.0
        %2562 = vmatpush.msra.mxu0 0.0
        %2563 = vmatpush.msra.mxu0 0.0
        %2564 = vmatpush.msra.mxu0 0.0
        %2565 = vmatpush.msra.mxu0 0.0
        %2566 = vmatpush.msra.mxu0 0.0
        %2567 = vmatpush.msra.mxu0 0.0
        %2568 = vmatpush.msra.mxu0 0.0
        %2569 = vmatpush.msra.mxu0 %v2549
        %2570 = vmatmul.f32.gmra.mxu0 %v2552
        %v2571 = vpop.f32.mrf.mxu0
        %v2572 = vadd.f32 %v2390, %v2571
        %2573 = vdwg.mxu0
        %2574 = vrot.lane.b32.xlu0 %v1882, 64
        %v2575 = vpop.permute.xlu0 %2574
        %v2578 = vsel %vm882, %v2348, 0
        %2580 = vmatpush.msra.mxu0 0.0
        %2581 = vmatpush.msra.mxu0 0.0
        %2582 = vmatpush.msra.mxu0 0.0
        %2583 = vmatpush.msra.mxu0 0.0
        %2584 = vmatpush.msra.mxu0 0.0
        %2585 = vmatpush.msra.mxu0 0.0
        %2586 = vmatpush.msra.mxu0 0.0
        %2587 = vmatpush.msra.mxu0 0.0
        %2588 = vmatpush.msra.mxu0 0.0
        %2589 = vmatpush.msra.mxu0 0.0
        %2590 = vmatpush.msra.mxu0 0.0
        %2591 = vmatpush.msra.mxu0 0.0
        %2592 = vmatpush.msra.mxu0 0.0
        %2593 = vmatpush.msra.mxu0 0.0
        %2594 = vmatpush.msra.mxu0 0.0
        %2595 = vmatpush.msra.mxu0 %v2575
        %2596 = vmatmul.f32.gmra.mxu0 %v2578
        %v2597 = vpop.f32.mrf.mxu0
        %v2598 = vadd.f32 %v2391, %v2597
        %2599 = vdwg.mxu0
        %v2600 = vadd.f32 %v2416, 0.0
        %v2601 = vadd.f32 %v2442, 0.0
        %v2602 = vadd.f32 %v2468, 0.0
        %v2603 = vadd.f32 %v2494, 0.0
        %v2604 = vadd.f32 %v2520, 0.0
        %v2605 = vadd.f32 %v2546, 0.0
        %v2606 = vadd.f32 %v2572, 0.0
        %v2607 = vadd.f32 %v2598, 0.0
        %v2608 = vld [vmem:[%s5 + $0x8] sm:$0xff]
        %v2609 = vld [vmem:[%s5 + $0x30] sm:$0xff]
        %v2610 = vld [vmem:[%s5 + $0x58] sm:$0xff]
        %v2611 = vld [vmem:[%s5 + $0x80] sm:$0xff]
        %v2612 = vld [vmem:[%s6 + $0x1] sm:$0x1]
        %v2614 = vperm.slane %v2612, 0
        %2616 = vmatpush.msra.mxu0 0.0
        %2617 = vmatpush.msra.mxu0 0.0
        %2618 = vmatpush.msra.mxu0 0.0
        %2619 = vmatpush.msra.mxu0 0.0
        %2620 = vmatpush.msra.mxu0 0.0
        %2621 = vmatpush.msra.mxu0 0.0
        %2622 = vmatpush.msra.mxu0 0.0
        %2623 = vmatpush.msra.mxu0 0.0
        %2624 = vmatpush.msra.mxu0 0.0
        %2625 = vmatpush.msra.mxu0 0.0
        %2626 = vmatpush.msra.mxu0 0.0
        %2627 = vmatpush.msra.mxu0 0.0
        %2628 = vmatpush.msra.mxu0 %v2611
        %2629 = vmatpush.msra.mxu0 %v2610
        %2630 = vmatpush.msra.mxu0 %v2609
        %2631 = vmatpush.msra.mxu0 %v2608
        %2632 = vmatmul.f32.gmra.mxu0 %v1820
        %v2633 = vpop.f32.mrf.mxu0
        %v2634 = vadd.f32 %v2614, %v2633
        %2635 = vmatmul.f32.gmra.mxu0 %v1823
        %v2636 = vpop.f32.mrf.mxu0
        %v2637 = vadd.f32 %v2614, %v2636
        %2638 = vmatmul.f32.gmra.mxu0 %v1826
        %v2639 = vpop.f32.mrf.mxu0
        %v2640 = vadd.f32 %v2614, %v2639
        %2641 = vmatmul.f32.gmra.mxu0 %v1829
        %v2642 = vpop.f32.mrf.mxu0
        %v2643 = vadd.f32 %v2614, %v2642
        %2644 = vmatmul.f32.gmra.mxu0 %v1832
        %v2645 = vpop.f32.mrf.mxu0
        %v2646 = vadd.f32 %v2614, %v2645
        %2647 = vmatmul.f32.gmra.mxu0 %v1835
        %v2648 = vpop.f32.mrf.mxu0
        %v2649 = vadd.f32 %v2614, %v2648
        %2650 = vmatmul.f32.gmra.mxu0 %v1838
        %v2651 = vpop.f32.mrf.mxu0
        %v2652 = vadd.f32 %v2614, %v2651
        %2653 = vmatmul.f32.gmra.mxu0 %v1841
        %v2654 = vpop.f32.mrf.mxu0
        %v2655 = vadd.f32 %v2614, %v2654
        %2656 = vdwg.mxu0
        %v2657 = vld [vmem:[#allocation6] sm:$0x1]
        %2659 = vset.pattern.permute.xlu0 96
        %2660 = vperm.xlu0 %2659, %v2634
        %v2661 = vpop.permute.xlu0 %2660
        %2664 = vset.pattern.permute.xlu0 96
        %2665 = vperm.xlu0 %2664, %v2637
        %v2666 = vpop.permute.xlu0 %2665
        %2669 = vset.pattern.permute.xlu0 96
        %2670 = vperm.xlu0 %2669, %v2640
        %v2671 = vpop.permute.xlu0 %2670
        %2674 = vset.pattern.permute.xlu0 96
        %2675 = vperm.xlu0 %2674, %v2643
        %v2676 = vpop.permute.xlu0 %2675
        %2679 = vset.pattern.permute.xlu0 96
        %2680 = vperm.xlu0 %2679, %v2646
        %v2681 = vpop.permute.xlu0 %2680
        %2684 = vset.pattern.permute.xlu0 96
        %2685 = vperm.xlu0 %2684, %v2649
        %v2686 = vpop.permute.xlu0 %2685
        %2689 = vset.pattern.permute.xlu0 96
        %2690 = vperm.xlu0 %2689, %v2652
        %v2691 = vpop.permute.xlu0 %2690
        %2694 = vset.pattern.permute.xlu0 96
        %2695 = vperm.xlu0 %2694, %v2655
        %v2696 = vpop.permute.xlu0 %2695
        %v2698 = vmul.f32 %v1596, %v2661
        %v2699 = vmul.f32 %v1596, %v2666
        %v2700 = vmul.f32 %v1596, %v2671
        %v2701 = vmul.f32 %v1596, %v2676
        %v2702 = vmul.f32 %v1596, %v2681
        %v2703 = vmul.f32 %v1596, %v2686
        %v2704 = vmul.f32 %v1596, %v2691
        %v2705 = vmul.f32 %v1596, %v2696
        %2706 = vrot.lane.b32.xlu0 %v2634, 96
        %v2707 = vpop.permute.xlu0 %2706
        %v2708 = vsel %vm1607, %v2634, 0
        %v2710 = vsel %vm1607, %v2707, 0
        %2712 = vmatpush.xpose.msra.mxu0 0.0
        %2713 = vmatpush.xpose.msra.mxu0 0.0
        %2714 = vmatpush.xpose.msra.mxu0 0.0
        %2715 = vmatpush.xpose.msra.mxu0 0.0
        %2716 = vmatpush.xpose.msra.mxu0 0.0
        %2717 = vmatpush.xpose.msra.mxu0 0.0
        %2718 = vmatpush.xpose.msra.mxu0 0.0
        %2719 = vmatpush.xpose.msra.mxu0 0.0
        %2720 = vmatpush.xpose.msra.mxu0 0.0
        %2721 = vmatpush.xpose.msra.mxu0 0.0
        %2722 = vmatpush.xpose.msra.mxu0 0.0
        %2723 = vmatpush.xpose.msra.mxu0 0.0
        %2724 = vmatpush.xpose.msra.mxu0 0.0
        %2725 = vmatpush.xpose.msra.mxu0 0.0
        %2726 = vmatpush.xpose.msra.mxu0 0.0
        %2727 = vmatpush.xpose.msra.mxu0 %v2710
        %2728 = vmatmul.f32.gmra.mxu0 %v2708
        %v2729 = vpop.f32.mrf.mxu0
        %v2730 = vadd.f32 %v2698, %v2729
        %2731 = vdwg.mxu0
        %2732 = vrot.lane.b32.xlu0 %v2637, 96
        %v2733 = vpop.permute.xlu0 %2732
        %v2734 = vsel %vm1607, %v2637, 0
        %v2736 = vsel %vm1607, %v2733, 0
        %2738 = vmatpush.xpose.msra.mxu0 0.0
        %2739 = vmatpush.xpose.msra.mxu0 0.0
        %2740 = vmatpush.xpose.msra.mxu0 0.0
        %2741 = vmatpush.xpose.msra.mxu0 0.0
        %2742 = vmatpush.xpose.msra.mxu0 0.0
        %2743 = vmatpush.xpose.msra.mxu0 0.0
        %2744 = vmatpush.xpose.msra.mxu0 0.0
        %2745 = vmatpush.xpose.msra.mxu0 0.0
        %2746 = vmatpush.xpose.msra.mxu0 0.0
        %2747 = vmatpush.xpose.msra.mxu0 0.0
        %2748 = vmatpush.xpose.msra.mxu0 0.0
        %2749 = vmatpush.xpose.msra.mxu0 0.0
        %2750 = vmatpush.xpose.msra.mxu0 0.0
        %2751 = vmatpush.xpose.msra.mxu0 0.0
        %2752 = vmatpush.xpose.msra.mxu0 0.0
        %2753 = vmatpush.xpose.msra.mxu0 %v2736
        %2754 = vmatmul.f32.gmra.mxu0 %v2734
        %v2755 = vpop.f32.mrf.mxu0
        %v2756 = vadd.f32 %v2699, %v2755
        %2757 = vdwg.mxu0
        %2758 = vrot.lane.b32.xlu0 %v2640, 96
        %v2759 = vpop.permute.xlu0 %2758
        %v2760 = vsel %vm1607, %v2640, 0
        %v2762 = vsel %vm1607, %v2759, 0
        %2764 = vmatpush.xpose.msra.mxu0 0.0
        %2765 = vmatpush.xpose.msra.mxu0 0.0
        %2766 = vmatpush.xpose.msra.mxu0 0.0
        %2767 = vmatpush.xpose.msra.mxu0 0.0
        %2768 = vmatpush.xpose.msra.mxu0 0.0
        %2769 = vmatpush.xpose.msra.mxu0 0.0
        %2770 = vmatpush.xpose.msra.mxu0 0.0
        %2771 = vmatpush.xpose.msra.mxu0 0.0
        %2772 = vmatpush.xpose.msra.mxu0 0.0
        %2773 = vmatpush.xpose.msra.mxu0 0.0
        %2774 = vmatpush.xpose.msra.mxu0 0.0
        %2775 = vmatpush.xpose.msra.mxu0 0.0
        %2776 = vmatpush.xpose.msra.mxu0 0.0
        %2777 = vmatpush.xpose.msra.mxu0 0.0
        %2778 = vmatpush.xpose.msra.mxu0 0.0
        %2779 = vmatpush.xpose.msra.mxu0 %v2762
        %2780 = vmatmul.f32.gmra.mxu0 %v2760
        %v2781 = vpop.f32.mrf.mxu0
        %v2782 = vadd.f32 %v2700, %v2781
        %2783 = vdwg.mxu0
        %2784 = vrot.lane.b32.xlu0 %v2643, 96
        %v2785 = vpop.permute.xlu0 %2784
        %v2786 = vsel %vm1607, %v2643, 0
        %v2788 = vsel %vm1607, %v2785, 0
        %2790 = vmatpush.xpose.msra.mxu0 0.0
        %2791 = vmatpush.xpose.msra.mxu0 0.0
        %2792 = vmatpush.xpose.msra.mxu0 0.0
        %2793 = vmatpush.xpose.msra.mxu0 0.0
        %2794 = vmatpush.xpose.msra.mxu0 0.0
        %2795 = vmatpush.xpose.msra.mxu0 0.0
        %2796 = vmatpush.xpose.msra.mxu0 0.0
        %2797 = vmatpush.xpose.msra.mxu0 0.0
        %2798 = vmatpush.xpose.msra.mxu0 0.0
        %2799 = vmatpush.xpose.msra.mxu0 0.0
        %2800 = vmatpush.xpose.msra.mxu0 0.0
        %2801 = vmatpush.xpose.msra.mxu0 0.0
        %2802 = vmatpush.xpose.msra.mxu0 0.0
        %2803 = vmatpush.xpose.msra.mxu0 0.0
        %2804 = vmatpush.xpose.msra.mxu0 0.0
        %2805 = vmatpush.xpose.msra.mxu0 %v2788
        %2806 = vmatmul.f32.gmra.mxu0 %v2786
        %v2807 = vpop.f32.mrf.mxu0
        %v2808 = vadd.f32 %v2701, %v2807
        %2809 = vdwg.mxu0
        %2810 = vrot.lane.b32.xlu0 %v2646, 96
        %v2811 = vpop.permute.xlu0 %2810
        %v2812 = vsel %vm1607, %v2646, 0
        %v2814 = vsel %vm1607, %v2811, 0
        %2816 = vmatpush.xpose.msra.mxu0 0.0
        %2817 = vmatpush.xpose.msra.mxu0 0.0
        %2818 = vmatpush.xpose.msra.mxu0 0.0
        %2819 = vmatpush.xpose.msra.mxu0 0.0
        %2820 = vmatpush.xpose.msra.mxu0 0.0
        %2821 = vmatpush.xpose.msra.mxu0 0.0
        %2822 = vmatpush.xpose.msra.mxu0 0.0
        %2823 = vmatpush.xpose.msra.mxu0 0.0
        %2824 = vmatpush.xpose.msra.mxu0 0.0
        %2825 = vmatpush.xpose.msra.mxu0 0.0
        %2826 = vmatpush.xpose.msra.mxu0 0.0
        %2827 = vmatpush.xpose.msra.mxu0 0.0
        %2828 = vmatpush.xpose.msra.mxu0 0.0
        %2829 = vmatpush.xpose.msra.mxu0 0.0
        %2830 = vmatpush.xpose.msra.mxu0 0.0
        %2831 = vmatpush.xpose.msra.mxu0 %v2814
        %2832 = vmatmul.f32.gmra.mxu0 %v2812
        %v2833 = vpop.f32.mrf.mxu0
        %v2834 = vadd.f32 %v2702, %v2833
        %2835 = vdwg.mxu0
        %2836 = vrot.lane.b32.xlu0 %v2649, 96
        %v2837 = vpop.permute.xlu0 %2836
        %v2838 = vsel %vm1607, %v2649, 0
        %v2840 = vsel %vm1607, %v2837, 0
        %2842 = vmatpush.xpose.msra.mxu0 0.0
        %2843 = vmatpush.xpose.msra.mxu0 0.0
        %2844 = vmatpush.xpose.msra.mxu0 0.0
        %2845 = vmatpush.xpose.msra.mxu0 0.0
        %2846 = vmatpush.xpose.msra.mxu0 0.0
        %2847 = vmatpush.xpose.msra.mxu0 0.0
        %2848 = vmatpush.xpose.msra.mxu0 0.0
        %2849 = vmatpush.xpose.msra.mxu0 0.0
        %2850 = vmatpush.xpose.msra.mxu0 0.0
        %2851 = vmatpush.xpose.msra.mxu0 0.0
        %2852 = vmatpush.xpose.msra.mxu0 0.0
        %2853 = vmatpush.xpose.msra.mxu0 0.0
        %2854 = vmatpush.xpose.msra.mxu0 0.0
        %2855 = vmatpush.xpose.msra.mxu0 0.0
        %2856 = vmatpush.xpose.msra.mxu0 0.0
        %2857 = vmatpush.xpose.msra.mxu0 %v2840
        %2858 = vmatmul.f32.gmra.mxu0 %v2838
        %v2859 = vpop.f32.mrf.mxu0
        %v2860 = vadd.f32 %v2703, %v2859
        %2861 = vdwg.mxu0
        %2862 = vrot.lane.b32.xlu0 %v2652, 96
        %v2863 = vpop.permute.xlu0 %2862
        %v2864 = vsel %vm1607, %v2652, 0
        %v2866 = vsel %vm1607, %v2863, 0
        %2868 = vmatpush.xpose.msra.mxu0 0.0
        %2869 = vmatpush.xpose.msra.mxu0 0.0
        %2870 = vmatpush.xpose.msra.mxu0 0.0
        %2871 = vmatpush.xpose.msra.mxu0 0.0
        %2872 = vmatpush.xpose.msra.mxu0 0.0
        %2873 = vmatpush.xpose.msra.mxu0 0.0
        %2874 = vmatpush.xpose.msra.mxu0 0.0
        %2875 = vmatpush.xpose.msra.mxu0 0.0
        %2876 = vmatpush.xpose.msra.mxu0 0.0
        %2877 = vmatpush.xpose.msra.mxu0 0.0
        %2878 = vmatpush.xpose.msra.mxu0 0.0
        %2879 = vmatpush.xpose.msra.mxu0 0.0
        %2880 = vmatpush.xpose.msra.mxu0 0.0
        %2881 = vmatpush.xpose.msra.mxu0 0.0
        %2882 = vmatpush.xpose.msra.mxu0 0.0
        %2883 = vmatpush.xpose.msra.mxu0 %v2866
        %2884 = vmatmul.f32.gmra.mxu0 %v2864
        %v2885 = vpop.f32.mrf.mxu0
        %v2886 = vadd.f32 %v2704, %v2885
        %2887 = vdwg.mxu0
        %2888 = vrot.lane.b32.xlu0 %v2655, 96
        %v2889 = vpop.permute.xlu0 %2888
        %v2890 = vsel %vm1607, %v2655, 0
        %v2892 = vsel %vm1607, %v2889, 0
        %2894 = vmatpush.xpose.msra.mxu0 0.0
        %2895 = vmatpush.xpose.msra.mxu0 0.0
        %2896 = vmatpush.xpose.msra.mxu0 0.0
        %2897 = vmatpush.xpose.msra.mxu0 0.0
        %2898 = vmatpush.xpose.msra.mxu0 0.0
        %2899 = vmatpush.xpose.msra.mxu0 0.0
        %2900 = vmatpush.xpose.msra.mxu0 0.0
        %2901 = vmatpush.xpose.msra.mxu0 0.0
        %2902 = vmatpush.xpose.msra.mxu0 0.0
        %2903 = vmatpush.xpose.msra.mxu0 0.0
        %2904 = vmatpush.xpose.msra.mxu0 0.0
        %2905 = vmatpush.xpose.msra.mxu0 0.0
        %2906 = vmatpush.xpose.msra.mxu0 0.0
        %2907 = vmatpush.xpose.msra.mxu0 0.0
        %2908 = vmatpush.xpose.msra.mxu0 0.0
        %2909 = vmatpush.xpose.msra.mxu0 %v2892
        %2910 = vmatmul.f32.gmra.mxu0 %v2890
        %v2911 = vpop.f32.mrf.mxu0
        %v2912 = vadd.f32 %v2705, %v2911
        %2913 = vdwg.mxu0
        %v2914 = vmul.f32 %v2730, 0.17677669
        %v2915 = vmul.f32 %v2756, 0.17677669
        %v2916 = vmul.f32 %v2782, 0.17677669
        %v2917 = vmul.f32 %v2808, 0.17677669
        %v2918 = vmul.f32 %v2834, 0.17677669
        %v2919 = vmul.f32 %v2860, 0.17677669
        %v2920 = vmul.f32 %v2886, 0.17677669
        %v2921 = vmul.f32 %v2912, 0.17677669
        %v2922 = vadd.f32 %v2914, %v1598
        %v2923 = vadd.f32 %v2915, %v1598
        %v2924 = vadd.f32 %v2916, %v1598
        %v2925 = vadd.f32 %v2917, %v1598
        %v2926 = vadd.f32 %v2918, %v1598
        %v2927 = vadd.f32 %v2919, %v1598
        %v2928 = vadd.f32 %v2920, %v1598
        %v2929 = vadd.f32 %v2921, %v1598
        %v2930 = vsel %vm882, %v2922, -inf
        %2931 = vmax.xlane.f32.xlu0 %v2930
        %v2932 = vpop.xlane.xlu0 %2931
        %v2933 = vsel %vm882, %v2923, -inf
        %2934 = vmax.xlane.f32.xlu0 %v2933
        %v2935 = vpop.xlane.xlu0 %2934
        %v2936 = vsel %vm882, %v2924, -inf
        %2937 = vmax.xlane.f32.xlu0 %v2936
        %v2938 = vpop.xlane.xlu0 %2937
        %v2939 = vsel %vm882, %v2925, -inf
        %2940 = vmax.xlane.f32.xlu0 %v2939
        %v2941 = vpop.xlane.xlu0 %2940
        %v2942 = vsel %vm882, %v2926, -inf
        %2943 = vmax.xlane.f32.xlu0 %v2942
        %v2944 = vpop.xlane.xlu0 %2943
        %v2945 = vsel %vm882, %v2927, -inf
        %2946 = vmax.xlane.f32.xlu0 %v2945
        %v2947 = vpop.xlane.xlu0 %2946
        %v2948 = vsel %vm882, %v2928, -inf
        %2949 = vmax.xlane.f32.xlu0 %v2948
        %v2950 = vpop.xlane.xlu0 %2949
        %v2951 = vsel %vm882, %v2929, -inf
        %2952 = vmax.xlane.f32.xlu0 %v2951
        %v2953 = vpop.xlane.xlu0 %2952
        %v2954 = vsub.f32 %v2922, %v2932
        %v2955 = vsub.f32 %v2923, %v2935
        %v2956 = vsub.f32 %v2924, %v2938
        %v2957 = vsub.f32 %v2925, %v2941
        %v2958 = vsub.f32 %v2926, %v2944
        %v2959 = vsub.f32 %v2927, %v2947
        %v2960 = vsub.f32 %v2928, %v2950
        %v2961 = vsub.f32 %v2929, %v2953
        %v2962 = vmul.f32 %v2954, 1.442695
        %v2963 = vpow.pop %v2962
        %v2964 = vmul.f32 %v2955, 1.442695
        %v2965 = vpow.pop %v2964
        %v2966 = vmul.f32 %v2956, 1.442695
        %v2967 = vpow.pop %v2966
        %v2968 = vmul.f32 %v2957, 1.442695
        %v2969 = vpow.pop %v2968
        %v2970 = vmul.f32 %v2958, 1.442695
        %v2971 = vpow.pop %v2970
        %v2972 = vmul.f32 %v2959, 1.442695
        %v2973 = vpow.pop %v2972
        %v2974 = vmul.f32 %v2960, 1.442695
        %v2975 = vpow.pop %v2974
        %v2976 = vmul.f32 %v2961, 1.442695
        %v2977 = vpow.pop %v2976
        %v2978 = vsel %vm882, %v2963, 0.0
        %2979 = vadd.xlane.f32.xlu0 %v2978
        %v2980 = vpop.xlane.xlu0 %2979
        %v2981 = vsel %vm882, %v2965, 0.0
        %2982 = vadd.xlane.f32.xlu0 %v2981
        %v2983 = vpop.xlane.xlu0 %2982
        %v2984 = vsel %vm882, %v2967, 0.0
        %2985 = vadd.xlane.f32.xlu0 %v2984
        %v2986 = vpop.xlane.xlu0 %2985
        %v2987 = vsel %vm882, %v2969, 0.0
        %2988 = vadd.xlane.f32.xlu0 %v2987
        %v2989 = vpop.xlane.xlu0 %2988
        %v2990 = vsel %vm882, %v2971, 0.0
        %2991 = vadd.xlane.f32.xlu0 %v2990
        %v2992 = vpop.xlane.xlu0 %2991
        %v2993 = vsel %vm882, %v2973, 0.0
        %2994 = vadd.xlane.f32.xlu0 %v2993
        %v2995 = vpop.xlane.xlu0 %2994
        %v2996 = vsel %vm882, %v2975, 0.0
        %2997 = vadd.xlane.f32.xlu0 %v2996
        %v2998 = vpop.xlane.xlu0 %2997
        %v2999 = vsel %vm882, %v2977, 0.0
        %3000 = vadd.xlane.f32.xlu0 %v2999
        %v3001 = vpop.xlane.xlu0 %3000
        %v3002 = vrcp.pop %v2980
        %v3003 = vmul.f32 %v2980, %v3002
        %v3004 = vsub.f32 1.0, %v3003
        %v3005 = vmul.f32 %v3002, %v3004
        %v3006 = vadd.f32 %v3002, %v3005
        %vm3007 = vweird.f32 %v2980
        %vm3008 = vweird.f32 %v3002
        %vm3009 = vmor %vm3007, %vm3008
        %v3010 = vsel %vm3009, %v3002, %v3006
        %v3011 = vand.u32 2147483647, %v2980
        %vm3012 = vcmp.eq.f32.partialorder %v3011, 8.507059e+37
        %v3013 = vand.u32 %v2980, 2147483648
        %v3014 = vor.u32 1.1754944e-38, %v3013
        %v3015 = vsel %vm3012, %v3014, %v3010
        %v3016 = vmul.f32 %v2963, %v3015
        %v3017 = vrcp.pop %v2983
        %v3018 = vmul.f32 %v2983, %v3017
        %v3019 = vsub.f32 1.0, %v3018
        %v3020 = vmul.f32 %v3017, %v3019
        %v3021 = vadd.f32 %v3017, %v3020
        %vm3022 = vweird.f32 %v2983
        %vm3023 = vweird.f32 %v3017
        %vm3024 = vmor %vm3022, %vm3023
        %v3025 = vsel %vm3024, %v3017, %v3021
        %v3026 = vand.u32 2147483647, %v2983
        %vm3027 = vcmp.eq.f32.partialorder %v3026, 8.507059e+37
        %v3028 = vand.u32 %v2983, 2147483648
        %v3029 = vor.u32 1.1754944e-38, %v3028
        %v3030 = vsel %vm3027, %v3029, %v3025
        %v3031 = vmul.f32 %v2965, %v3030
        %v3032 = vrcp.pop %v2986
        %v3033 = vmul.f32 %v2986, %v3032
        %v3034 = vsub.f32 1.0, %v3033
        %v3035 = vmul.f32 %v3032, %v3034
        %v3036 = vadd.f32 %v3032, %v3035
        %vm3037 = vweird.f32 %v2986
        %vm3038 = vweird.f32 %v3032
        %vm3039 = vmor %vm3037, %vm3038
        %v3040 = vsel %vm3039, %v3032, %v3036
        %v3041 = vand.u32 2147483647, %v2986
        %vm3042 = vcmp.eq.f32.partialorder %v3041, 8.507059e+37
        %v3043 = vand.u32 %v2986, 2147483648
        %v3044 = vor.u32 1.1754944e-38, %v3043
        %v3045 = vsel %vm3042, %v3044, %v3040
        %v3046 = vmul.f32 %v2967, %v3045
        %v3047 = vrcp.pop %v2989
        %v3048 = vmul.f32 %v2989, %v3047
        %v3049 = vsub.f32 1.0, %v3048
        %v3050 = vmul.f32 %v3047, %v3049
        %v3051 = vadd.f32 %v3047, %v3050
        %vm3052 = vweird.f32 %v2989
        %vm3053 = vweird.f32 %v3047
        %vm3054 = vmor %vm3052, %vm3053
        %v3055 = vsel %vm3054, %v3047, %v3051
        %v3056 = vand.u32 2147483647, %v2989
        %vm3057 = vcmp.eq.f32.partialorder %v3056, 8.507059e+37
        %v3058 = vand.u32 %v2989, 2147483648
        %v3059 = vor.u32 1.1754944e-38, %v3058
        %v3060 = vsel %vm3057, %v3059, %v3055
        %v3061 = vmul.f32 %v2969, %v3060
        %v3062 = vrcp.pop %v2992
        %v3063 = vmul.f32 %v2992, %v3062
        %v3064 = vsub.f32 1.0, %v3063
        %v3065 = vmul.f32 %v3062, %v3064
        %v3066 = vadd.f32 %v3062, %v3065
        %vm3067 = vweird.f32 %v2992
        %vm3068 = vweird.f32 %v3062
        %vm3069 = vmor %vm3067, %vm3068
        %v3070 = vsel %vm3069, %v3062, %v3066
        %v3071 = vand.u32 2147483647, %v2992
        %vm3072 = vcmp.eq.f32.partialorder %v3071, 8.507059e+37
        %v3073 = vand.u32 %v2992, 2147483648
        %v3074 = vor.u32 1.1754944e-38, %v3073
        %v3075 = vsel %vm3072, %v3074, %v3070
        %v3076 = vmul.f32 %v2971, %v3075
        %v3077 = vrcp.pop %v2995
        %v3078 = vmul.f32 %v2995, %v3077
        %v3079 = vsub.f32 1.0, %v3078
        %v3080 = vmul.f32 %v3077, %v3079
        %v3081 = vadd.f32 %v3077, %v3080
        %vm3082 = vweird.f32 %v2995
        %vm3083 = vweird.f32 %v3077
        %vm3084 = vmor %vm3082, %vm3083
        %v3085 = vsel %vm3084, %v3077, %v3081
        %v3086 = vand.u32 2147483647, %v2995
        %vm3087 = vcmp.eq.f32.partialorder %v3086, 8.507059e+37
        %v3088 = vand.u32 %v2995, 2147483648
        %v3089 = vor.u32 1.1754944e-38, %v3088
        %v3090 = vsel %vm3087, %v3089, %v3085
        %v3091 = vmul.f32 %v2973, %v3090
        %v3092 = vrcp.pop %v2998
        %v3093 = vmul.f32 %v2998, %v3092
        %v3094 = vsub.f32 1.0, %v3093
        %v3095 = vmul.f32 %v3092, %v3094
        %v3096 = vadd.f32 %v3092, %v3095
        %vm3097 = vweird.f32 %v2998
        %vm3098 = vweird.f32 %v3092
        %vm3099 = vmor %vm3097, %vm3098
        %v3100 = vsel %vm3099, %v3092, %v3096
        %v3101 = vand.u32 2147483647, %v2998
        %vm3102 = vcmp.eq.f32.partialorder %v3101, 8.507059e+37
        %v3103 = vand.u32 %v2998, 2147483648
        %v3104 = vor.u32 1.1754944e-38, %v3103
        %v3105 = vsel %vm3102, %v3104, %v3100
        %v3106 = vmul.f32 %v2975, %v3105
        %v3107 = vrcp.pop %v3001
        %v3108 = vmul.f32 %v3001, %v3107
        %v3109 = vsub.f32 1.0, %v3108
        %v3110 = vmul.f32 %v3107, %v3109
        %v3111 = vadd.f32 %v3107, %v3110
        %vm3112 = vweird.f32 %v3001
        %vm3113 = vweird.f32 %v3107
        %vm3114 = vmor %vm3112, %vm3113
        %v3115 = vsel %vm3114, %v3107, %v3111
        %v3116 = vand.u32 2147483647, %v3001
        %vm3117 = vcmp.eq.f32.partialorder %v3116, 8.507059e+37
        %v3118 = vand.u32 %v3001, 2147483648
        %v3119 = vor.u32 1.1754944e-38, %v3118
        %v3120 = vsel %vm3117, %v3119, %v3115
        %v3121 = vmul.f32 %v2977, %v3120
        %v3122 = vmul.f32 %v3016, %v1596
        %v3123 = vmul.f32 %v3031, %v1596
        %v3124 = vmul.f32 %v3046, %v1596
        %v3125 = vmul.f32 %v3061, %v1596
        %v3126 = vmul.f32 %v3076, %v1596
        %v3127 = vmul.f32 %v3091, %v1596
        %v3128 = vmul.f32 %v3106, %v1596
        %v3129 = vmul.f32 %v3121, %v1596
        %v3130 = vsel %vm882, %v3122, 0.0
        %3131 = vadd.xlane.f32.xlu0 %v3130
        %v3132 = vpop.xlane.xlu0 %3131
        %v3133 = vsel %vm882, %v3123, 0.0
        %3134 = vadd.xlane.f32.xlu0 %v3133
        %v3135 = vpop.xlane.xlu0 %3134
        %v3136 = vsel %vm882, %v3124, 0.0
        %3137 = vadd.xlane.f32.xlu0 %v3136
        %v3138 = vpop.xlane.xlu0 %3137
        %v3139 = vsel %vm882, %v3125, 0.0
        %3140 = vadd.xlane.f32.xlu0 %v3139
        %v3141 = vpop.xlane.xlu0 %3140
        %v3142 = vsel %vm882, %v3126, 0.0
        %3143 = vadd.xlane.f32.xlu0 %v3142
        %v3144 = vpop.xlane.xlu0 %3143
        %v3145 = vsel %vm882, %v3127, 0.0
        %3146 = vadd.xlane.f32.xlu0 %v3145
        %v3147 = vpop.xlane.xlu0 %3146
        %v3148 = vsel %vm882, %v3128, 0.0
        %3149 = vadd.xlane.f32.xlu0 %v3148
        %v3150 = vpop.xlane.xlu0 %3149
        %v3151 = vsel %vm882, %v3129, 0.0
        %3152 = vadd.xlane.f32.xlu0 %v3151
        %v3153 = vpop.xlane.xlu0 %3152
        %v3155 = vperm.slane %v2657, 0
        %v3157 = vmul.f32 %v3132, %v3155
        %v3158 = vmul.f32 %v3135, %v3155
        %v3159 = vmul.f32 %v3138, %v3155
        %v3160 = vmul.f32 %v3141, %v3155
        %v3161 = vmul.f32 %v3144, %v3155
        %v3162 = vmul.f32 %v3147, %v3155
        %v3163 = vmul.f32 %v3150, %v3155
        %v3164 = vmul.f32 %v3153, %v3155
        %3165 = vrot.lane.b32.xlu0 %v2634, 64
        %v3166 = vpop.permute.xlu0 %3165
        %3169 = vrot.lane.b32.xlu0 %v3157, 96
        %v3170 = vpop.permute.xlu0 %3169
        %v3173 = vsel %vm882, %v3016, 0
        %3175 = vmatpush.msra.mxu0 0.0
        %3176 = vmatpush.msra.mxu0 0.0
        %3177 = vmatpush.msra.mxu0 0.0
        %3178 = vmatpush.msra.mxu0 0.0
        %3179 = vmatpush.msra.mxu0 0.0
        %3180 = vmatpush.msra.mxu0 0.0
        %3181 = vmatpush.msra.mxu0 0.0
        %3182 = vmatpush.msra.mxu0 0.0
        %3183 = vmatpush.msra.mxu0 0.0
        %3184 = vmatpush.msra.mxu0 0.0
        %3185 = vmatpush.msra.mxu0 0.0
        %3186 = vmatpush.msra.mxu0 0.0
        %3187 = vmatpush.msra.mxu0 0.0
        %3188 = vmatpush.msra.mxu0 0.0
        %3189 = vmatpush.msra.mxu0 0.0
        %3190 = vmatpush.msra.mxu0 %v3166
        %3191 = vmatmul.f32.gmra.mxu0 %v3173
        %v3192 = vpop.f32.mrf.mxu0
        %v3193 = vadd.f32 %v3170, %v3192
        %3194 = vdwg.mxu0
        %3195 = vrot.lane.b32.xlu0 %v2637, 64
        %v3196 = vpop.permute.xlu0 %3195
        %3199 = vrot.lane.b32.xlu0 %v3158, 96
        %v3200 = vpop.permute.xlu0 %3199
        %v3203 = vsel %vm882, %v3031, 0
        %3205 = vmatpush.msra.mxu0 0.0
        %3206 = vmatpush.msra.mxu0 0.0
        %3207 = vmatpush.msra.mxu0 0.0
        %3208 = vmatpush.msra.mxu0 0.0
        %3209 = vmatpush.msra.mxu0 0.0
        %3210 = vmatpush.msra.mxu0 0.0
        %3211 = vmatpush.msra.mxu0 0.0
        %3212 = vmatpush.msra.mxu0 0.0
        %3213 = vmatpush.msra.mxu0 0.0
        %3214 = vmatpush.msra.mxu0 0.0
        %3215 = vmatpush.msra.mxu0 0.0
        %3216 = vmatpush.msra.mxu0 0.0
        %3217 = vmatpush.msra.mxu0 0.0
        %3218 = vmatpush.msra.mxu0 0.0
        %3219 = vmatpush.msra.mxu0 0.0
        %3220 = vmatpush.msra.mxu0 %v3196
        %3221 = vmatmul.f32.gmra.mxu0 %v3203
        %v3222 = vpop.f32.mrf.mxu0
        %v3223 = vadd.f32 %v3200, %v3222
        %3224 = vdwg.mxu0
        %3225 = vrot.lane.b32.xlu0 %v2640, 64
        %v3226 = vpop.permute.xlu0 %3225
        %3229 = vrot.lane.b32.xlu0 %v3159, 96
        %v3230 = vpop.permute.xlu0 %3229
        %v3233 = vsel %vm882, %v3046, 0
        %3235 = vmatpush.msra.mxu0 0.0
        %3236 = vmatpush.msra.mxu0 0.0
        %3237 = vmatpush.msra.mxu0 0.0
        %3238 = vmatpush.msra.mxu0 0.0
        %3239 = vmatpush.msra.mxu0 0.0
        %3240 = vmatpush.msra.mxu0 0.0
        %3241 = vmatpush.msra.mxu0 0.0
        %3242 = vmatpush.msra.mxu0 0.0
        %3243 = vmatpush.msra.mxu0 0.0
        %3244 = vmatpush.msra.mxu0 0.0
        %3245 = vmatpush.msra.mxu0 0.0
        %3246 = vmatpush.msra.mxu0 0.0
        %3247 = vmatpush.msra.mxu0 0.0
        %3248 = vmatpush.msra.mxu0 0.0
        %3249 = vmatpush.msra.mxu0 0.0
        %3250 = vmatpush.msra.mxu0 %v3226
        %3251 = vmatmul.f32.gmra.mxu0 %v3233
        %v3252 = vpop.f32.mrf.mxu0
        %v3253 = vadd.f32 %v3230, %v3252
        %3254 = vdwg.mxu0
        %3255 = vrot.lane.b32.xlu0 %v2643, 64
        %v3256 = vpop.permute.xlu0 %3255
        %3259 = vrot.lane.b32.xlu0 %v3160, 96
        %v3260 = vpop.permute.xlu0 %3259
        %v3263 = vsel %vm882, %v3061, 0
        %3265 = vmatpush.msra.mxu0 0.0
        %3266 = vmatpush.msra.mxu0 0.0
        %3267 = vmatpush.msra.mxu0 0.0
        %3268 = vmatpush.msra.mxu0 0.0
        %3269 = vmatpush.msra.mxu0 0.0
        %3270 = vmatpush.msra.mxu0 0.0
        %3271 = vmatpush.msra.mxu0 0.0
        %3272 = vmatpush.msra.mxu0 0.0
        %3273 = vmatpush.msra.mxu0 0.0
        %3274 = vmatpush.msra.mxu0 0.0
        %3275 = vmatpush.msra.mxu0 0.0
        %3276 = vmatpush.msra.mxu0 0.0
        %3277 = vmatpush.msra.mxu0 0.0
        %3278 = vmatpush.msra.mxu0 0.0
        %3279 = vmatpush.msra.mxu0 0.0
        %3280 = vmatpush.msra.mxu0 %v3256
        %3281 = vmatmul.f32.gmra.mxu0 %v3263
        %v3282 = vpop.f32.mrf.mxu0
        %v3283 = vadd.f32 %v3260, %v3282
        %3284 = vdwg.mxu0
        %3285 = vrot.lane.b32.xlu0 %v2646, 64
        %v3286 = vpop.permute.xlu0 %3285
        %3289 = vrot.lane.b32.xlu0 %v3161, 96
        %v3290 = vpop.permute.xlu0 %3289
        %v3293 = vsel %vm882, %v3076, 0
        %3295 = vmatpush.msra.mxu0 0.0
        %3296 = vmatpush.msra.mxu0 0.0
        %3297 = vmatpush.msra.mxu0 0.0
        %3298 = vmatpush.msra.mxu0 0.0
        %3299 = vmatpush.msra.mxu0 0.0
        %3300 = vmatpush.msra.mxu0 0.0
        %3301 = vmatpush.msra.mxu0 0.0
        %3302 = vmatpush.msra.mxu0 0.0
        %3303 = vmatpush.msra.mxu0 0.0
        %3304 = vmatpush.msra.mxu0 0.0
        %3305 = vmatpush.msra.mxu0 0.0
        %3306 = vmatpush.msra.mxu0 0.0
        %3307 = vmatpush.msra.mxu0 0.0
        %3308 = vmatpush.msra.mxu0 0.0
        %3309 = vmatpush.msra.mxu0 0.0
        %3310 = vmatpush.msra.mxu0 %v3286
        %3311 = vmatmul.f32.gmra.mxu0 %v3293
        %v3312 = vpop.f32.mrf.mxu0
        %v3313 = vadd.f32 %v3290, %v3312
        %3314 = vdwg.mxu0
        %3315 = vrot.lane.b32.xlu0 %v2649, 64
        %v3316 = vpop.permute.xlu0 %3315
        %3319 = vrot.lane.b32.xlu0 %v3162, 96
        %v3320 = vpop.permute.xlu0 %3319
        %v3323 = vsel %vm882, %v3091, 0
        %3325 = vmatpush.msra.mxu0 0.0
        %3326 = vmatpush.msra.mxu0 0.0
        %3327 = vmatpush.msra.mxu0 0.0
        %3328 = vmatpush.msra.mxu0 0.0
        %3329 = vmatpush.msra.mxu0 0.0
        %3330 = vmatpush.msra.mxu0 0.0
        %3331 = vmatpush.msra.mxu0 0.0
        %3332 = vmatpush.msra.mxu0 0.0
        %3333 = vmatpush.msra.mxu0 0.0
        %3334 = vmatpush.msra.mxu0 0.0
        %3335 = vmatpush.msra.mxu0 0.0
        %3336 = vmatpush.msra.mxu0 0.0
        %3337 = vmatpush.msra.mxu0 0.0
        %3338 = vmatpush.msra.mxu0 0.0
        %3339 = vmatpush.msra.mxu0 0.0
        %3340 = vmatpush.msra.mxu0 %v3316
        %3341 = vmatmul.f32.gmra.mxu0 %v3323
        %v3342 = vpop.f32.mrf.mxu0
        %v3343 = vadd.f32 %v3320, %v3342
        %3344 = vdwg.mxu0
        %3345 = vrot.lane.b32.xlu0 %v2652, 64
        %v3346 = vpop.permute.xlu0 %3345
        %3349 = vrot.lane.b32.xlu0 %v3163, 96
        %v3350 = vpop.permute.xlu0 %3349
        %v3353 = vsel %vm882, %v3106, 0
        %3355 = vmatpush.msra.mxu0 0.0
        %3356 = vmatpush.msra.mxu0 0.0
        %3357 = vmatpush.msra.mxu0 0.0
        %3358 = vmatpush.msra.mxu0 0.0
        %3359 = vmatpush.msra.mxu0 0.0
        %3360 = vmatpush.msra.mxu0 0.0
        %3361 = vmatpush.msra.mxu0 0.0
        %3362 = vmatpush.msra.mxu0 0.0
        %3363 = vmatpush.msra.mxu0 0.0
        %3364 = vmatpush.msra.mxu0 0.0
        %3365 = vmatpush.msra.mxu0 0.0
        %3366 = vmatpush.msra.mxu0 0.0
        %3367 = vmatpush.msra.mxu0 0.0
        %3368 = vmatpush.msra.mxu0 0.0
        %3369 = vmatpush.msra.mxu0 0.0
        %3370 = vmatpush.msra.mxu0 %v3346
        %3371 = vmatmul.f32.gmra.mxu0 %v3353
        %v3372 = vpop.f32.mrf.mxu0
        %v3373 = vadd.f32 %v3350, %v3372
        %3374 = vdwg.mxu0
        %3375 = vrot.lane.b32.xlu0 %v2655, 64
        %v3376 = vpop.permute.xlu0 %3375
        %3379 = vrot.lane.b32.xlu0 %v3164, 96
        %v3380 = vpop.permute.xlu0 %3379
        %v3383 = vsel %vm882, %v3121, 0
        %3385 = vmatpush.msra.mxu0 0.0
        %3386 = vmatpush.msra.mxu0 0.0
        %3387 = vmatpush.msra.mxu0 0.0
        %3388 = vmatpush.msra.mxu0 0.0
        %3389 = vmatpush.msra.mxu0 0.0
        %3390 = vmatpush.msra.mxu0 0.0
        %3391 = vmatpush.msra.mxu0 0.0
        %3392 = vmatpush.msra.mxu0 0.0
        %3393 = vmatpush.msra.mxu0 0.0
        %3394 = vmatpush.msra.mxu0 0.0
        %3395 = vmatpush.msra.mxu0 0.0
        %3396 = vmatpush.msra.mxu0 0.0
        %3397 = vmatpush.msra.mxu0 0.0
        %3398 = vmatpush.msra.mxu0 0.0
        %3399 = vmatpush.msra.mxu0 0.0
        %3400 = vmatpush.msra.mxu0 %v3376
        %3401 = vmatmul.f32.gmra.mxu0 %v3383
        %v3402 = vpop.f32.mrf.mxu0
        %v3403 = vadd.f32 %v3380, %v3402
        %3404 = vdwg.mxu0
        %v3405 = vadd.f32 %v2600, %v3193
        %v3406 = vadd.f32 %v2601, %v3223
        %v3407 = vadd.f32 %v2602, %v3253
        %v3408 = vadd.f32 %v2603, %v3283
        %v3409 = vadd.f32 %v2604, %v3313
        %v3410 = vadd.f32 %v2605, %v3343
        %v3411 = vadd.f32 %v2606, %v3373
        %v3412 = vadd.f32 %v2607, %v3403
        %v3413 = vld [vmem:[%s5 + $0x10] sm:$0xff]
        %v3414 = vld [vmem:[%s5 + $0x38] sm:$0xff]
        %v3415 = vld [vmem:[%s5 + $0x60] sm:$0xff]
        %v3416 = vld [vmem:[%s5 + $0x88] sm:$0xff]
        %v3417 = vld [vmem:[%s6 + $0x2] sm:$0x1]
        %v3419 = vperm.slane %v3417, 0
        %3421 = vmatpush.msra.mxu0 0.0
        %3422 = vmatpush.msra.mxu0 0.0
        %3423 = vmatpush.msra.mxu0 0.0
        %3424 = vmatpush.msra.mxu0 0.0
        %3425 = vmatpush.msra.mxu0 0.0
        %3426 = vmatpush.msra.mxu0 0.0
        %3427 = vmatpush.msra.mxu0 0.0
        %3428 = vmatpush.msra.mxu0 0.0
        %3429 = vmatpush.msra.mxu0 0.0
        %3430 = vmatpush.msra.mxu0 0.0
        %3431 = vmatpush.msra.mxu0 0.0
        %3432 = vmatpush.msra.mxu0 0.0
        %3433 = vmatpush.msra.mxu0 %v3416
        %3434 = vmatpush.msra.mxu0 %v3415
        %3435 = vmatpush.msra.mxu0 %v3414
        %3436 = vmatpush.msra.mxu0 %v3413
        %3437 = vmatmul.f32.gmra.mxu0 %v1820
        %v3438 = vpop.f32.mrf.mxu0
        %v3439 = vadd.f32 %v3419, %v3438
        %3440 = vmatmul.f32.gmra.mxu0 %v1823
        %v3441 = vpop.f32.mrf.mxu0
        %v3442 = vadd.f32 %v3419, %v3441
        %3443 = vmatmul.f32.gmra.mxu0 %v1826
        %v3444 = vpop.f32.mrf.mxu0
        %v3445 = vadd.f32 %v3419, %v3444
        %3446 = vmatmul.f32.gmra.mxu0 %v1829
        %v3447 = vpop.f32.mrf.mxu0
        %v3448 = vadd.f32 %v3419, %v3447
        %3449 = vmatmul.f32.gmra.mxu0 %v1832
        %v3450 = vpop.f32.mrf.mxu0
        %v3451 = vadd.f32 %v3419, %v3450
        %3452 = vmatmul.f32.gmra.mxu0 %v1835
        %v3453 = vpop.f32.mrf.mxu0
        %v3454 = vadd.f32 %v3419, %v3453
        %3455 = vmatmul.f32.gmra.mxu0 %v1838
        %v3456 = vpop.f32.mrf.mxu0
        %v3457 = vadd.f32 %v3419, %v3456
        %3458 = vmatmul.f32.gmra.mxu0 %v1841
        %v3459 = vpop.f32.mrf.mxu0
        %v3460 = vadd.f32 %v3419, %v3459
        %3461 = vdwg.mxu0
        %v3462 = vld [vmem:[#allocation6] sm:$0x1]
        %3464 = vset.pattern.permute.xlu0 96
        %3465 = vperm.xlu0 %3464, %v3439
        %v3466 = vpop.permute.xlu0 %3465
        %3469 = vset.pattern.permute.xlu0 96
        %3470 = vperm.xlu0 %3469, %v3442
        %v3471 = vpop.permute.xlu0 %3470
        %3474 = vset.pattern.permute.xlu0 96
        %3475 = vperm.xlu0 %3474, %v3445
        %v3476 = vpop.permute.xlu0 %3475
        %3479 = vset.pattern.permute.xlu0 96
        %3480 = vperm.xlu0 %3479, %v3448
        %v3481 = vpop.permute.xlu0 %3480
        %3484 = vset.pattern.permute.xlu0 96
        %3485 = vperm.xlu0 %3484, %v3451
        %v3486 = vpop.permute.xlu0 %3485
        %3489 = vset.pattern.permute.xlu0 96
        %3490 = vperm.xlu0 %3489, %v3454
        %v3491 = vpop.permute.xlu0 %3490
        %3494 = vset.pattern.permute.xlu0 96
        %3495 = vperm.xlu0 %3494, %v3457
        %v3496 = vpop.permute.xlu0 %3495
        %3499 = vset.pattern.permute.xlu0 96
        %3500 = vperm.xlu0 %3499, %v3460
        %v3501 = vpop.permute.xlu0 %3500
        %v3503 = vmul.f32 %v1596, %v3466
        %v3504 = vmul.f32 %v1596, %v3471
        %v3505 = vmul.f32 %v1596, %v3476
        %v3506 = vmul.f32 %v1596, %v3481
        %v3507 = vmul.f32 %v1596, %v3486
        %v3508 = vmul.f32 %v1596, %v3491
        %v3509 = vmul.f32 %v1596, %v3496
        %v3510 = vmul.f32 %v1596, %v3501
        %3511 = vrot.lane.b32.xlu0 %v3439, 96
        %v3512 = vpop.permute.xlu0 %3511
        %v3513 = vsel %vm1607, %v3439, 0
        %v3515 = vsel %vm1607, %v3512, 0
        %3517 = vmatpush.xpose.msra.mxu0 0.0
        %3518 = vmatpush.xpose.msra.mxu0 0.0
        %3519 = vmatpush.xpose.msra.mxu0 0.0
        %3520 = vmatpush.xpose.msra.mxu0 0.0
        %3521 = vmatpush.xpose.msra.mxu0 0.0
        %3522 = vmatpush.xpose.msra.mxu0 0.0
        %3523 = vmatpush.xpose.msra.mxu0 0.0
        %3524 = vmatpush.xpose.msra.mxu0 0.0
        %3525 = vmatpush.xpose.msra.mxu0 0.0
        %3526 = vmatpush.xpose.msra.mxu0 0.0
        %3527 = vmatpush.xpose.msra.mxu0 0.0
        %3528 = vmatpush.xpose.msra.mxu0 0.0
        %3529 = vmatpush.xpose.msra.mxu0 0.0
        %3530 = vmatpush.xpose.msra.mxu0 0.0
        %3531 = vmatpush.xpose.msra.mxu0 0.0
        %3532 = vmatpush.xpose.msra.mxu0 %v3515
        %3533 = vmatmul.f32.gmra.mxu0 %v3513
        %v3534 = vpop.f32.mrf.mxu0
        %v3535 = vadd.f32 %v3503, %v3534
        %3536 = vdwg.mxu0
        %3537 = vrot.lane.b32.xlu0 %v3442, 96
        %v3538 = vpop.permute.xlu0 %3537
        %v3539 = vsel %vm1607, %v3442, 0
        %v3541 = vsel %vm1607, %v3538, 0
        %3543 = vmatpush.xpose.msra.mxu0 0.0
        %3544 = vmatpush.xpose.msra.mxu0 0.0
        %3545 = vmatpush.xpose.msra.mxu0 0.0
        %3546 = vmatpush.xpose.msra.mxu0 0.0
        %3547 = vmatpush.xpose.msra.mxu0 0.0
        %3548 = vmatpush.xpose.msra.mxu0 0.0
        %3549 = vmatpush.xpose.msra.mxu0 0.0
        %3550 = vmatpush.xpose.msra.mxu0 0.0
        %3551 = vmatpush.xpose.msra.mxu0 0.0
        %3552 = vmatpush.xpose.msra.mxu0 0.0
        %3553 = vmatpush.xpose.msra.mxu0 0.0
        %3554 = vmatpush.xpose.msra.mxu0 0.0
        %3555 = vmatpush.xpose.msra.mxu0 0.0
        %3556 = vmatpush.xpose.msra.mxu0 0.0
        %3557 = vmatpush.xpose.msra.mxu0 0.0
        %3558 = vmatpush.xpose.msra.mxu0 %v3541
        %3559 = vmatmul.f32.gmra.mxu0 %v3539
        %v3560 = vpop.f32.mrf.mxu0
        %v3561 = vadd.f32 %v3504, %v3560
        %3562 = vdwg.mxu0
        %3563 = vrot.lane.b32.xlu0 %v3445, 96
        %v3564 = vpop.permute.xlu0 %3563
        %v3565 = vsel %vm1607, %v3445, 0
        %v3567 = vsel %vm1607, %v3564, 0
        %3569 = vmatpush.xpose.msra.mxu0 0.0
        %3570 = vmatpush.xpose.msra.mxu0 0.0
        %3571 = vmatpush.xpose.msra.mxu0 0.0
        %3572 = vmatpush.xpose.msra.mxu0 0.0
        %3573 = vmatpush.xpose.msra.mxu0 0.0
        %3574 = vmatpush.xpose.msra.mxu0 0.0
        %3575 = vmatpush.xpose.msra.mxu0 0.0
        %3576 = vmatpush.xpose.msra.mxu0 0.0
        %3577 = vmatpush.xpose.msra.mxu0 0.0
        %3578 = vmatpush.xpose.msra.mxu0 0.0
        %3579 = vmatpush.xpose.msra.mxu0 0.0
        %3580 = vmatpush.xpose.msra.mxu0 0.0
        %3581 = vmatpush.xpose.msra.mxu0 0.0
        %3582 = vmatpush.xpose.msra.mxu0 0.0
        %3583 = vmatpush.xpose.msra.mxu0 0.0
        %3584 = vmatpush.xpose.msra.mxu0 %v3567
        %3585 = vmatmul.f32.gmra.mxu0 %v3565
        %v3586 = vpop.f32.mrf.mxu0
        %v3587 = vadd.f32 %v3505, %v3586
        %3588 = vdwg.mxu0
        %3589 = vrot.lane.b32.xlu0 %v3448, 96
        %v3590 = vpop.permute.xlu0 %3589
        %v3591 = vsel %vm1607, %v3448, 0
        %v3593 = vsel %vm1607, %v3590, 0
        %3595 = vmatpush.xpose.msra.mxu0 0.0
        %3596 = vmatpush.xpose.msra.mxu0 0.0
        %3597 = vmatpush.xpose.msra.mxu0 0.0
        %3598 = vmatpush.xpose.msra.mxu0 0.0
        %3599 = vmatpush.xpose.msra.mxu0 0.0
        %3600 = vmatpush.xpose.msra.mxu0 0.0
        %3601 = vmatpush.xpose.msra.mxu0 0.0
        %3602 = vmatpush.xpose.msra.mxu0 0.0
        %3603 = vmatpush.xpose.msra.mxu0 0.0
        %3604 = vmatpush.xpose.msra.mxu0 0.0
        %3605 = vmatpush.xpose.msra.mxu0 0.0
        %3606 = vmatpush.xpose.msra.mxu0 0.0
        %3607 = vmatpush.xpose.msra.mxu0 0.0
        %3608 = vmatpush.xpose.msra.mxu0 0.0
        %3609 = vmatpush.xpose.msra.mxu0 0.0
        %3610 = vmatpush.xpose.msra.mxu0 %v3593
        %3611 = vmatmul.f32.gmra.mxu0 %v3591
        %v3612 = vpop.f32.mrf.mxu0
        %v3613 = vadd.f32 %v3506, %v3612
        %3614 = vdwg.mxu0
        %3615 = vrot.lane.b32.xlu0 %v3451, 96
        %v3616 = vpop.permute.xlu0 %3615
        %v3617 = vsel %vm1607, %v3451, 0
        %v3619 = vsel %vm1607, %v3616, 0
        %3621 = vmatpush.xpose.msra.mxu0 0.0
        %3622 = vmatpush.xpose.msra.mxu0 0.0
        %3623 = vmatpush.xpose.msra.mxu0 0.0
        %3624 = vmatpush.xpose.msra.mxu0 0.0
        %3625 = vmatpush.xpose.msra.mxu0 0.0
        %3626 = vmatpush.xpose.msra.mxu0 0.0
        %3627 = vmatpush.xpose.msra.mxu0 0.0
        %3628 = vmatpush.xpose.msra.mxu0 0.0
        %3629 = vmatpush.xpose.msra.mxu0 0.0
        %3630 = vmatpush.xpose.msra.mxu0 0.0
        %3631 = vmatpush.xpose.msra.mxu0 0.0
        %3632 = vmatpush.xpose.msra.mxu0 0.0
        %3633 = vmatpush.xpose.msra.mxu0 0.0
        %3634 = vmatpush.xpose.msra.mxu0 0.0
        %3635 = vmatpush.xpose.msra.mxu0 0.0
        %3636 = vmatpush.xpose.msra.mxu0 %v3619
        %3637 = vmatmul.f32.gmra.mxu0 %v3617
        %v3638 = vpop.f32.mrf.mxu0
        %v3639 = vadd.f32 %v3507, %v3638
        %3640 = vdwg.mxu0
        %3641 = vrot.lane.b32.xlu0 %v3454, 96
        %v3642 = vpop.permute.xlu0 %3641
        %v3643 = vsel %vm1607, %v3454, 0
        %v3645 = vsel %vm1607, %v3642, 0
        %3647 = vmatpush.xpose.msra.mxu0 0.0
        %3648 = vmatpush.xpose.msra.mxu0 0.0
        %3649 = vmatpush.xpose.msra.mxu0 0.0
        %3650 = vmatpush.xpose.msra.mxu0 0.0
        %3651 = vmatpush.xpose.msra.mxu0 0.0
        %3652 = vmatpush.xpose.msra.mxu0 0.0
        %3653 = vmatpush.xpose.msra.mxu0 0.0
        %3654 = vmatpush.xpose.msra.mxu0 0.0
        %3655 = vmatpush.xpose.msra.mxu0 0.0
        %3656 = vmatpush.xpose.msra.mxu0 0.0
        %3657 = vmatpush.xpose.msra.mxu0 0.0
        %3658 = vmatpush.xpose.msra.mxu0 0.0
        %3659 = vmatpush.xpose.msra.mxu0 0.0
        %3660 = vmatpush.xpose.msra.mxu0 0.0
        %3661 = vmatpush.xpose.msra.mxu0 0.0
        %3662 = vmatpush.xpose.msra.mxu0 %v3645
        %3663 = vmatmul.f32.gmra.mxu0 %v3643
        %v3664 = vpop.f32.mrf.mxu0
        %v3665 = vadd.f32 %v3508, %v3664
        %3666 = vdwg.mxu0
        %3667 = vrot.lane.b32.xlu0 %v3457, 96
        %v3668 = vpop.permute.xlu0 %3667
        %v3669 = vsel %vm1607, %v3457, 0
        %v3671 = vsel %vm1607, %v3668, 0
        %3673 = vmatpush.xpose.msra.mxu0 0.0
        %3674 = vmatpush.xpose.msra.mxu0 0.0
        %3675 = vmatpush.xpose.msra.mxu0 0.0
        %3676 = vmatpush.xpose.msra.mxu0 0.0
        %3677 = vmatpush.xpose.msra.mxu0 0.0
        %3678 = vmatpush.xpose.msra.mxu0 0.0
        %3679 = vmatpush.xpose.msra.mxu0 0.0
        %3680 = vmatpush.xpose.msra.mxu0 0.0
        %3681 = vmatpush.xpose.msra.mxu0 0.0
        %3682 = vmatpush.xpose.msra.mxu0 0.0
        %3683 = vmatpush.xpose.msra.mxu0 0.0
        %3684 = vmatpush.xpose.msra.mxu0 0.0
        %3685 = vmatpush.xpose.msra.mxu0 0.0
        %3686 = vmatpush.xpose.msra.mxu0 0.0
        %3687 = vmatpush.xpose.msra.mxu0 0.0
        %3688 = vmatpush.xpose.msra.mxu0 %v3671
        %3689 = vmatmul.f32.gmra.mxu0 %v3669
        %v3690 = vpop.f32.mrf.mxu0
        %v3691 = vadd.f32 %v3509, %v3690
        %3692 = vdwg.mxu0
        %3693 = vrot.lane.b32.xlu0 %v3460, 96
        %v3694 = vpop.permute.xlu0 %3693
        %v3695 = vsel %vm1607, %v3460, 0
        %v3697 = vsel %vm1607, %v3694, 0
        %3699 = vmatpush.xpose.msra.mxu0 0.0
        %3700 = vmatpush.xpose.msra.mxu0 0.0
        %3701 = vmatpush.xpose.msra.mxu0 0.0
        %3702 = vmatpush.xpose.msra.mxu0 0.0
        %3703 = vmatpush.xpose.msra.mxu0 0.0
        %3704 = vmatpush.xpose.msra.mxu0 0.0
        %3705 = vmatpush.xpose.msra.mxu0 0.0
        %3706 = vmatpush.xpose.msra.mxu0 0.0
        %3707 = vmatpush.xpose.msra.mxu0 0.0
        %3708 = vmatpush.xpose.msra.mxu0 0.0
        %3709 = vmatpush.xpose.msra.mxu0 0.0
        %3710 = vmatpush.xpose.msra.mxu0 0.0
        %3711 = vmatpush.xpose.msra.mxu0 0.0
        %3712 = vmatpush.xpose.msra.mxu0 0.0
        %3713 = vmatpush.xpose.msra.mxu0 0.0
        %3714 = vmatpush.xpose.msra.mxu0 %v3697
        %3715 = vmatmul.f32.gmra.mxu0 %v3695
        %v3716 = vpop.f32.mrf.mxu0
        %v3717 = vadd.f32 %v3510, %v3716
        %3718 = vdwg.mxu0
        %v3719 = vmul.f32 %v3535, 0.17677669
        %v3720 = vmul.f32 %v3561, 0.17677669
        %v3721 = vmul.f32 %v3587, 0.17677669
        %v3722 = vmul.f32 %v3613, 0.17677669
        %v3723 = vmul.f32 %v3639, 0.17677669
        %v3724 = vmul.f32 %v3665, 0.17677669
        %v3725 = vmul.f32 %v3691, 0.17677669
        %v3726 = vmul.f32 %v3717, 0.17677669
        %v3727 = vadd.f32 %v3719, %v1598
        %v3728 = vadd.f32 %v3720, %v1598
        %v3729 = vadd.f32 %v3721, %v1598
        %v3730 = vadd.f32 %v3722, %v1598
        %v3731 = vadd.f32 %v3723, %v1598
        %v3732 = vadd.f32 %v3724, %v1598
        %v3733 = vadd.f32 %v3725, %v1598
        %v3734 = vadd.f32 %v3726, %v1598
        %v3735 = vsel %vm882, %v3727, -inf
        %3736 = vmax.xlane.f32.xlu0 %v3735
        %v3737 = vpop.xlane.xlu0 %3736
        %v3738 = vsel %vm882, %v3728, -inf
        %3739 = vmax.xlane.f32.xlu0 %v3738
        %v3740 = vpop.xlane.xlu0 %3739
        %v3741 = vsel %vm882, %v3729, -inf
        %3742 = vmax.xlane.f32.xlu0 %v3741
        %v3743 = vpop.xlane.xlu0 %3742
        %v3744 = vsel %vm882, %v3730, -inf
        %3745 = vmax.xlane.f32.xlu0 %v3744
        %v3746 = vpop.xlane.xlu0 %3745
        %v3747 = vsel %vm882, %v3731, -inf
        %3748 = vmax.xlane.f32.xlu0 %v3747
        %v3749 = vpop.xlane.xlu0 %3748
        %v3750 = vsel %vm882, %v3732, -inf
        %3751 = vmax.xlane.f32.xlu0 %v3750
        %v3752 = vpop.xlane.xlu0 %3751
        %v3753 = vsel %vm882, %v3733, -inf
        %3754 = vmax.xlane.f32.xlu0 %v3753
        %v3755 = vpop.xlane.xlu0 %3754
        %v3756 = vsel %vm882, %v3734, -inf
        %3757 = vmax.xlane.f32.xlu0 %v3756
        %v3758 = vpop.xlane.xlu0 %3757
        %v3759 = vsub.f32 %v3727, %v3737
        %v3760 = vsub.f32 %v3728, %v3740
        %v3761 = vsub.f32 %v3729, %v3743
        %v3762 = vsub.f32 %v3730, %v3746
        %v3763 = vsub.f32 %v3731, %v3749
        %v3764 = vsub.f32 %v3732, %v3752
        %v3765 = vsub.f32 %v3733, %v3755
        %v3766 = vsub.f32 %v3734, %v3758
        %v3767 = vmul.f32 %v3759, 1.442695
        %v3768 = vpow.pop %v3767
        %v3769 = vmul.f32 %v3760, 1.442695
        %v3770 = vpow.pop %v3769
        %v3771 = vmul.f32 %v3761, 1.442695
        %v3772 = vpow.pop %v3771
        %v3773 = vmul.f32 %v3762, 1.442695
        %v3774 = vpow.pop %v3773
        %v3775 = vmul.f32 %v3763, 1.442695
        %v3776 = vpow.pop %v3775
        %v3777 = vmul.f32 %v3764, 1.442695
        %v3778 = vpow.pop %v3777
        %v3779 = vmul.f32 %v3765, 1.442695
        %v3780 = vpow.pop %v3779
        %v3781 = vmul.f32 %v3766, 1.442695
        %v3782 = vpow.pop %v3781
        %v3783 = vsel %vm882, %v3768, 0.0
        %3784 = vadd.xlane.f32.xlu0 %v3783
        %v3785 = vpop.xlane.xlu0 %3784
        %v3786 = vsel %vm882, %v3770, 0.0
        %3787 = vadd.xlane.f32.xlu0 %v3786
        %v3788 = vpop.xlane.xlu0 %3787
        %v3789 = vsel %vm882, %v3772, 0.0
        %3790 = vadd.xlane.f32.xlu0 %v3789
        %v3791 = vpop.xlane.xlu0 %3790
        %v3792 = vsel %vm882, %v3774, 0.0
        %3793 = vadd.xlane.f32.xlu0 %v3792
        %v3794 = vpop.xlane.xlu0 %3793
        %v3795 = vsel %vm882, %v3776, 0.0
        %3796 = vadd.xlane.f32.xlu0 %v3795
        %v3797 = vpop.xlane.xlu0 %3796
        %v3798 = vsel %vm882, %v3778, 0.0
        %3799 = vadd.xlane.f32.xlu0 %v3798
        %v3800 = vpop.xlane.xlu0 %3799
        %v3801 = vsel %vm882, %v3780, 0.0
        %3802 = vadd.xlane.f32.xlu0 %v3801
        %v3803 = vpop.xlane.xlu0 %3802
        %v3804 = vsel %vm882, %v3782, 0.0
        %3805 = vadd.xlane.f32.xlu0 %v3804
        %v3806 = vpop.xlane.xlu0 %3805
        %v3807 = vrcp.pop %v3785
        %v3808 = vmul.f32 %v3785, %v3807
        %v3809 = vsub.f32 1.0, %v3808
        %v3810 = vmul.f32 %v3807, %v3809
        %v3811 = vadd.f32 %v3807, %v3810
        %vm3812 = vweird.f32 %v3785
        %vm3813 = vweird.f32 %v3807
        %vm3814 = vmor %vm3812, %vm3813
        %v3815 = vsel %vm3814, %v3807, %v3811
        %v3816 = vand.u32 2147483647, %v3785
        %vm3817 = vcmp.eq.f32.partialorder %v3816, 8.507059e+37
        %v3818 = vand.u32 %v3785, 2147483648
        %v3819 = vor.u32 1.1754944e-38, %v3818
        %v3820 = vsel %vm3817, %v3819, %v3815
        %v3821 = vmul.f32 %v3768, %v3820
        %v3822 = vrcp.pop %v3788
        %v3823 = vmul.f32 %v3788, %v3822
        %v3824 = vsub.f32 1.0, %v3823
        %v3825 = vmul.f32 %v3822, %v3824
        %v3826 = vadd.f32 %v3822, %v3825
        %vm3827 = vweird.f32 %v3788
        %vm3828 = vweird.f32 %v3822
        %vm3829 = vmor %vm3827, %vm3828
        %v3830 = vsel %vm3829, %v3822, %v3826
        %v3831 = vand.u32 2147483647, %v3788
        %vm3832 = vcmp.eq.f32.partialorder %v3831, 8.507059e+37
        %v3833 = vand.u32 %v3788, 2147483648
        %v3834 = vor.u32 1.1754944e-38, %v3833
        %v3835 = vsel %vm3832, %v3834, %v3830
        %v3836 = vmul.f32 %v3770, %v3835
        %v3837 = vrcp.pop %v3791
        %v3838 = vmul.f32 %v3791, %v3837
        %v3839 = vsub.f32 1.0, %v3838
        %v3840 = vmul.f32 %v3837, %v3839
        %v3841 = vadd.f32 %v3837, %v3840
        %vm3842 = vweird.f32 %v3791
        %vm3843 = vweird.f32 %v3837
        %vm3844 = vmor %vm3842, %vm3843
        %v3845 = vsel %vm3844, %v3837, %v3841
        %v3846 = vand.u32 2147483647, %v3791
        %vm3847 = vcmp.eq.f32.partialorder %v3846, 8.507059e+37
        %v3848 = vand.u32 %v3791, 2147483648
        %v3849 = vor.u32 1.1754944e-38, %v3848
        %v3850 = vsel %vm3847, %v3849, %v3845
        %v3851 = vmul.f32 %v3772, %v3850
        %v3852 = vrcp.pop %v3794
        %v3853 = vmul.f32 %v3794, %v3852
        %v3854 = vsub.f32 1.0, %v3853
        %v3855 = vmul.f32 %v3852, %v3854
        %v3856 = vadd.f32 %v3852, %v3855
        %vm3857 = vweird.f32 %v3794
        %vm3858 = vweird.f32 %v3852
        %vm3859 = vmor %vm3857, %vm3858
        %v3860 = vsel %vm3859, %v3852, %v3856
        %v3861 = vand.u32 2147483647, %v3794
        %vm3862 = vcmp.eq.f32.partialorder %v3861, 8.507059e+37
        %v3863 = vand.u32 %v3794, 2147483648
        %v3864 = vor.u32 1.1754944e-38, %v3863
        %v3865 = vsel %vm3862, %v3864, %v3860
        %v3866 = vmul.f32 %v3774, %v3865
        %v3867 = vrcp.pop %v3797
        %v3868 = vmul.f32 %v3797, %v3867
        %v3869 = vsub.f32 1.0, %v3868
        %v3870 = vmul.f32 %v3867, %v3869
        %v3871 = vadd.f32 %v3867, %v3870
        %vm3872 = vweird.f32 %v3797
        %vm3873 = vweird.f32 %v3867
        %vm3874 = vmor %vm3872, %vm3873
        %v3875 = vsel %vm3874, %v3867, %v3871
        %v3876 = vand.u32 2147483647, %v3797
        %vm3877 = vcmp.eq.f32.partialorder %v3876, 8.507059e+37
        %v3878 = vand.u32 %v3797, 2147483648
        %v3879 = vor.u32 1.1754944e-38, %v3878
        %v3880 = vsel %vm3877, %v3879, %v3875
        %v3881 = vmul.f32 %v3776, %v3880
        %v3882 = vrcp.pop %v3800
        %v3883 = vmul.f32 %v3800, %v3882
        %v3884 = vsub.f32 1.0, %v3883
        %v3885 = vmul.f32 %v3882, %v3884
        %v3886 = vadd.f32 %v3882, %v3885
        %vm3887 = vweird.f32 %v3800
        %vm3888 = vweird.f32 %v3882
        %vm3889 = vmor %vm3887, %vm3888
        %v3890 = vsel %vm3889, %v3882, %v3886
        %v3891 = vand.u32 2147483647, %v3800
        %vm3892 = vcmp.eq.f32.partialorder %v3891, 8.507059e+37
        %v3893 = vand.u32 %v3800, 2147483648
        %v3894 = vor.u32 1.1754944e-38, %v3893
        %v3895 = vsel %vm3892, %v3894, %v3890
        %v3896 = vmul.f32 %v3778, %v3895
        %v3897 = vrcp.pop %v3803
        %v3898 = vmul.f32 %v3803, %v3897
        %v3899 = vsub.f32 1.0, %v3898
        %v3900 = vmul.f32 %v3897, %v3899
        %v3901 = vadd.f32 %v3897, %v3900
        %vm3902 = vweird.f32 %v3803
        %vm3903 = vweird.f32 %v3897
        %vm3904 = vmor %vm3902, %vm3903
        %v3905 = vsel %vm3904, %v3897, %v3901
        %v3906 = vand.u32 2147483647, %v3803
        %vm3907 = vcmp.eq.f32.partialorder %v3906, 8.507059e+37
        %v3908 = vand.u32 %v3803, 2147483648
        %v3909 = vor.u32 1.1754944e-38, %v3908
        %v3910 = vsel %vm3907, %v3909, %v3905
        %v3911 = vmul.f32 %v3780, %v3910
        %v3912 = vrcp.pop %v3806
        %v3913 = vmul.f32 %v3806, %v3912
        %v3914 = vsub.f32 1.0, %v3913
        %v3915 = vmul.f32 %v3912, %v3914
        %v3916 = vadd.f32 %v3912, %v3915
        %vm3917 = vweird.f32 %v3806
        %vm3918 = vweird.f32 %v3912
        %vm3919 = vmor %vm3917, %vm3918
        %v3920 = vsel %vm3919, %v3912, %v3916
        %v3921 = vand.u32 2147483647, %v3806
        %vm3922 = vcmp.eq.f32.partialorder %v3921, 8.507059e+37
        %v3923 = vand.u32 %v3806, 2147483648
        %v3924 = vor.u32 1.1754944e-38, %v3923
        %v3925 = vsel %vm3922, %v3924, %v3920
        %v3926 = vmul.f32 %v3782, %v3925
        %v3927 = vmul.f32 %v3821, %v1596
        %v3928 = vmul.f32 %v3836, %v1596
        %v3929 = vmul.f32 %v3851, %v1596
        %v3930 = vmul.f32 %v3866, %v1596
        %v3931 = vmul.f32 %v3881, %v1596
        %v3932 = vmul.f32 %v3896, %v1596
        %v3933 = vmul.f32 %v3911, %v1596
        %v3934 = vmul.f32 %v3926, %v1596
        %v3935 = vsel %vm882, %v3927, 0.0
        %3936 = vadd.xlane.f32.xlu0 %v3935
        %v3937 = vpop.xlane.xlu0 %3936
        %v3938 = vsel %vm882, %v3928, 0.0
        %3939 = vadd.xlane.f32.xlu0 %v3938
        %v3940 = vpop.xlane.xlu0 %3939
        %v3941 = vsel %vm882, %v3929, 0.0
        %3942 = vadd.xlane.f32.xlu0 %v3941
        %v3943 = vpop.xlane.xlu0 %3942
        %v3944 = vsel %vm882, %v3930, 0.0
        %3945 = vadd.xlane.f32.xlu0 %v3944
        %v3946 = vpop.xlane.xlu0 %3945
        %v3947 = vsel %vm882, %v3931, 0.0
        %3948 = vadd.xlane.f32.xlu0 %v3947
        %v3949 = vpop.xlane.xlu0 %3948
        %v3950 = vsel %vm882, %v3932, 0.0
        %3951 = vadd.xlane.f32.xlu0 %v3950
        %v3952 = vpop.xlane.xlu0 %3951
        %v3953 = vsel %vm882, %v3933, 0.0
        %3954 = vadd.xlane.f32.xlu0 %v3953
        %v3955 = vpop.xlane.xlu0 %3954
        %v3956 = vsel %vm882, %v3934, 0.0
        %3957 = vadd.xlane.f32.xlu0 %v3956
        %v3958 = vpop.xlane.xlu0 %3957
        %v3960 = vperm.slane %v3462, 0
        %v3962 = vmul.f32 %v3937, %v3960
        %v3963 = vmul.f32 %v3940, %v3960
        %v3964 = vmul.f32 %v3943, %v3960
        %v3965 = vmul.f32 %v3946, %v3960
        %v3966 = vmul.f32 %v3949, %v3960
        %v3967 = vmul.f32 %v3952, %v3960
        %v3968 = vmul.f32 %v3955, %v3960
        %v3969 = vmul.f32 %v3958, %v3960
        %3970 = vrot.lane.b32.xlu0 %v3439, 64
        %v3971 = vpop.permute.xlu0 %3970
        %3974 = vrot.lane.b32.xlu0 %v3962, 64
        %v3975 = vpop.permute.xlu0 %3974
        %v3978 = vsel %vm882, %v3821, 0
        %3980 = vmatpush.msra.mxu0 0.0
        %3981 = vmatpush.msra.mxu0 0.0
        %3982 = vmatpush.msra.mxu0 0.0
        %3983 = vmatpush.msra.mxu0 0.0
        %3984 = vmatpush.msra.mxu0 0.0
        %3985 = vmatpush.msra.mxu0 0.0
        %3986 = vmatpush.msra.mxu0 0.0
        %3987 = vmatpush.msra.mxu0 0.0
        %3988 = vmatpush.msra.mxu0 0.0
        %3989 = vmatpush.msra.mxu0 0.0
        %3990 = vmatpush.msra.mxu0 0.0
        %3991 = vmatpush.msra.mxu0 0.0
        %3992 = vmatpush.msra.mxu0 0.0
        %3993 = vmatpush.msra.mxu0 0.0
        %3994 = vmatpush.msra.mxu0 0.0
        %3995 = vmatpush.msra.mxu0 %v3971
        %3996 = vmatmul.f32.gmra.mxu0 %v3978
        %v3997 = vpop.f32.mrf.mxu0
        %v3998 = vadd.f32 %v3975, %v3997
        %3999 = vdwg.mxu0
        %4000 = vrot.lane.b32.xlu0 %v3442, 64
        %v4001 = vpop.permute.xlu0 %4000
        %4004 = vrot.lane.b32.xlu0 %v3963, 64
        %v4005 = vpop.permute.xlu0 %4004
        %v4008 = vsel %vm882, %v3836, 0
        %4010 = vmatpush.msra.mxu0 0.0
        %4011 = vmatpush.msra.mxu0 0.0
        %4012 = vmatpush.msra.mxu0 0.0
        %4013 = vmatpush.msra.mxu0 0.0
        %4014 = vmatpush.msra.mxu0 0.0
        %4015 = vmatpush.msra.mxu0 0.0
        %4016 = vmatpush.msra.mxu0 0.0
        %4017 = vmatpush.msra.mxu0 0.0
        %4018 = vmatpush.msra.mxu0 0.0
        %4019 = vmatpush.msra.mxu0 0.0
        %4020 = vmatpush.msra.mxu0 0.0
        %4021 = vmatpush.msra.mxu0 0.0
        %4022 = vmatpush.msra.mxu0 0.0
        %4023 = vmatpush.msra.mxu0 0.0
        %4024 = vmatpush.msra.mxu0 0.0
        %4025 = vmatpush.msra.mxu0 %v4001
        %4026 = vmatmul.f32.gmra.mxu0 %v4008
        %v4027 = vpop.f32.mrf.mxu0
        %v4028 = vadd.f32 %v4005, %v4027
        %4029 = vdwg.mxu0
        %4030 = vrot.lane.b32.xlu0 %v3445, 64
        %v4031 = vpop.permute.xlu0 %4030
        %4034 = vrot.lane.b32.xlu0 %v3964, 64
        %v4035 = vpop.permute.xlu0 %4034
        %v4038 = vsel %vm882, %v3851, 0
        %4040 = vmatpush.msra.mxu0 0.0
        %4041 = vmatpush.msra.mxu0 0.0
        %4042 = vmatpush.msra.mxu0 0.0
        %4043 = vmatpush.msra.mxu0 0.0
        %4044 = vmatpush.msra.mxu0 0.0
        %4045 = vmatpush.msra.mxu0 0.0
        %4046 = vmatpush.msra.mxu0 0.0
        %4047 = vmatpush.msra.mxu0 0.0
        %4048 = vmatpush.msra.mxu0 0.0
        %4049 = vmatpush.msra.mxu0 0.0
        %4050 = vmatpush.msra.mxu0 0.0
        %4051 = vmatpush.msra.mxu0 0.0
        %4052 = vmatpush.msra.mxu0 0.0
        %4053 = vmatpush.msra.mxu0 0.0
        %4054 = vmatpush.msra.mxu0 0.0
        %4055 = vmatpush.msra.mxu0 %v4031
        %4056 = vmatmul.f32.gmra.mxu0 %v4038
        %v4057 = vpop.f32.mrf.mxu0
        %v4058 = vadd.f32 %v4035, %v4057
        %4059 = vdwg.mxu0
        %4060 = vrot.lane.b32.xlu0 %v3448, 64
        %v4061 = vpop.permute.xlu0 %4060
        %4064 = vrot.lane.b32.xlu0 %v3965, 64
        %v4065 = vpop.permute.xlu0 %4064
        %v4068 = vsel %vm882, %v3866, 0
        %4070 = vmatpush.msra.mxu0 0.0
        %4071 = vmatpush.msra.mxu0 0.0
        %4072 = vmatpush.msra.mxu0 0.0
        %4073 = vmatpush.msra.mxu0 0.0
        %4074 = vmatpush.msra.mxu0 0.0
        %4075 = vmatpush.msra.mxu0 0.0
        %4076 = vmatpush.msra.mxu0 0.0
        %4077 = vmatpush.msra.mxu0 0.0
        %4078 = vmatpush.msra.mxu0 0.0
        %4079 = vmatpush.msra.mxu0 0.0
        %4080 = vmatpush.msra.mxu0 0.0
        %4081 = vmatpush.msra.mxu0 0.0
        %4082 = vmatpush.msra.mxu0 0.0
        %4083 = vmatpush.msra.mxu0 0.0
        %4084 = vmatpush.msra.mxu0 0.0
        %4085 = vmatpush.msra.mxu0 %v4061
        %4086 = vmatmul.f32.gmra.mxu0 %v4068
        %v4087 = vpop.f32.mrf.mxu0
        %v4088 = vadd.f32 %v4065, %v4087
        %4089 = vdwg.mxu0
        %4090 = vrot.lane.b32.xlu0 %v3451, 64
        %v4091 = vpop.permute.xlu0 %4090
        %4094 = vrot.lane.b32.xlu0 %v3966, 64
        %v4095 = vpop.permute.xlu0 %4094
        %v4098 = vsel %vm882, %v3881, 0
        %4100 = vmatpush.msra.mxu0 0.0
        %4101 = vmatpush.msra.mxu0 0.0
        %4102 = vmatpush.msra.mxu0 0.0
        %4103 = vmatpush.msra.mxu0 0.0
        %4104 = vmatpush.msra.mxu0 0.0
        %4105 = vmatpush.msra.mxu0 0.0
        %4106 = vmatpush.msra.mxu0 0.0
        %4107 = vmatpush.msra.mxu0 0.0
        %4108 = vmatpush.msra.mxu0 0.0
        %4109 = vmatpush.msra.mxu0 0.0
        %4110 = vmatpush.msra.mxu0 0.0
        %4111 = vmatpush.msra.mxu0 0.0
        %4112 = vmatpush.msra.mxu0 0.0
        %4113 = vmatpush.msra.mxu0 0.0
        %4114 = vmatpush.msra.mxu0 0.0
        %4115 = vmatpush.msra.mxu0 %v4091
        %4116 = vmatmul.f32.gmra.mxu0 %v4098
        %v4117 = vpop.f32.mrf.mxu0
        %v4118 = vadd.f32 %v4095, %v4117
        %4119 = vdwg.mxu0
        %4120 = vrot.lane.b32.xlu0 %v3454, 64
        %v4121 = vpop.permute.xlu0 %4120
        %4124 = vrot.lane.b32.xlu0 %v3967, 64
        %v4125 = vpop.permute.xlu0 %4124
        %v4128 = vsel %vm882, %v3896, 0
        %4130 = vmatpush.msra.mxu0 0.0
        %4131 = vmatpush.msra.mxu0 0.0
        %4132 = vmatpush.msra.mxu0 0.0
        %4133 = vmatpush.msra.mxu0 0.0
        %4134 = vmatpush.msra.mxu0 0.0
        %4135 = vmatpush.msra.mxu0 0.0
        %4136 = vmatpush.msra.mxu0 0.0
        %4137 = vmatpush.msra.mxu0 0.0
        %4138 = vmatpush.msra.mxu0 0.0
        %4139 = vmatpush.msra.mxu0 0.0
        %4140 = vmatpush.msra.mxu0 0.0
        %4141 = vmatpush.msra.mxu0 0.0
        %4142 = vmatpush.msra.mxu0 0.0
        %4143 = vmatpush.msra.mxu0 0.0
        %4144 = vmatpush.msra.mxu0 0.0
        %4145 = vmatpush.msra.mxu0 %v4121
        %4146 = vmatmul.f32.gmra.mxu0 %v4128
        %v4147 = vpop.f32.mrf.mxu0
        %v4148 = vadd.f32 %v4125, %v4147
        %4149 = vdwg.mxu0
        %4150 = vrot.lane.b32.xlu0 %v3457, 64
        %v4151 = vpop.permute.xlu0 %4150
        %4154 = vrot.lane.b32.xlu0 %v3968, 64
        %v4155 = vpop.permute.xlu0 %4154
        %v4158 = vsel %vm882, %v3911, 0
        %4160 = vmatpush.msra.mxu0 0.0
        %4161 = vmatpush.msra.mxu0 0.0
        %4162 = vmatpush.msra.mxu0 0.0
        %4163 = vmatpush.msra.mxu0 0.0
        %4164 = vmatpush.msra.mxu0 0.0
        %4165 = vmatpush.msra.mxu0 0.0
        %4166 = vmatpush.msra.mxu0 0.0
        %4167 = vmatpush.msra.mxu0 0.0
        %4168 = vmatpush.msra.mxu0 0.0
        %4169 = vmatpush.msra.mxu0 0.0
        %4170 = vmatpush.msra.mxu0 0.0
        %4171 = vmatpush.msra.mxu0 0.0
        %4172 = vmatpush.msra.mxu0 0.0
        %4173 = vmatpush.msra.mxu0 0.0
        %4174 = vmatpush.msra.mxu0 0.0
        %4175 = vmatpush.msra.mxu0 %v4151
        %4176 = vmatmul.f32.gmra.mxu0 %v4158
        %v4177 = vpop.f32.mrf.mxu0
        %v4178 = vadd.f32 %v4155, %v4177
        %4179 = vdwg.mxu0
        %4180 = vrot.lane.b32.xlu0 %v3460, 64
        %v4181 = vpop.permute.xlu0 %4180
        %4184 = vrot.lane.b32.xlu0 %v3969, 64
        %v4185 = vpop.permute.xlu0 %4184
        %v4188 = vsel %vm882, %v3926, 0
        %4190 = vmatpush.msra.mxu0 0.0
        %4191 = vmatpush.msra.mxu0 0.0
        %4192 = vmatpush.msra.mxu0 0.0
        %4193 = vmatpush.msra.mxu0 0.0
        %4194 = vmatpush.msra.mxu0 0.0
        %4195 = vmatpush.msra.mxu0 0.0
        %4196 = vmatpush.msra.mxu0 0.0
        %4197 = vmatpush.msra.mxu0 0.0
        %4198 = vmatpush.msra.mxu0 0.0
        %4199 = vmatpush.msra.mxu0 0.0
        %4200 = vmatpush.msra.mxu0 0.0
        %4201 = vmatpush.msra.mxu0 0.0
        %4202 = vmatpush.msra.mxu0 0.0
        %4203 = vmatpush.msra.mxu0 0.0
        %4204 = vmatpush.msra.mxu0 0.0
        %4205 = vmatpush.msra.mxu0 %v4181
        %4206 = vmatmul.f32.gmra.mxu0 %v4188
        %v4207 = vpop.f32.mrf.mxu0
        %v4208 = vadd.f32 %v4185, %v4207
        %4209 = vdwg.mxu0
        %v4210 = vadd.f32 %v3405, %v3998
        %v4211 = vadd.f32 %v3406, %v4028
        %v4212 = vadd.f32 %v3407, %v4058
        %v4213 = vadd.f32 %v3408, %v4088
        %v4214 = vadd.f32 %v3409, %v4118
        %v4215 = vadd.f32 %v3410, %v4148
        %v4216 = vadd.f32 %v3411, %v4178
        %v4217 = vadd.f32 %v3412, %v4208
        %v4218 = vld [vmem:[%s5 + $0x18] sm:$0xff]
        %v4219 = vld [vmem:[%s5 + $0x40] sm:$0xff]
        %v4220 = vld [vmem:[%s5 + $0x68] sm:$0xff]
        %v4221 = vld [vmem:[%s5 + $0x90] sm:$0xff]
        %v4222 = vld [vmem:[%s6 + $0x3] sm:$0x1]
        %v4224 = vperm.slane %v4222, 0
        %4226 = vmatpush.msra.mxu0 0.0
        %4227 = vmatpush.msra.mxu0 0.0
        %4228 = vmatpush.msra.mxu0 0.0
        %4229 = vmatpush.msra.mxu0 0.0
        %4230 = vmatpush.msra.mxu0 0.0
        %4231 = vmatpush.msra.mxu0 0.0
        %4232 = vmatpush.msra.mxu0 0.0
        %4233 = vmatpush.msra.mxu0 0.0
        %4234 = vmatpush.msra.mxu0 0.0
        %4235 = vmatpush.msra.mxu0 0.0
        %4236 = vmatpush.msra.mxu0 0.0
        %4237 = vmatpush.msra.mxu0 0.0
        %4238 = vmatpush.msra.mxu0 %v4221
        %4239 = vmatpush.msra.mxu0 %v4220
        %4240 = vmatpush.msra.mxu0 %v4219
        %4241 = vmatpush.msra.mxu0 %v4218
        %4242 = vmatmul.f32.gmra.mxu0 %v1820
        %v4243 = vpop.f32.mrf.mxu0
        %v4244 = vadd.f32 %v4224, %v4243
        %4245 = vmatmul.f32.gmra.mxu0 %v1823
        %v4246 = vpop.f32.mrf.mxu0
        %v4247 = vadd.f32 %v4224, %v4246
        %4248 = vmatmul.f32.gmra.mxu0 %v1826
        %v4249 = vpop.f32.mrf.mxu0
        %v4250 = vadd.f32 %v4224, %v4249
        %4251 = vmatmul.f32.gmra.mxu0 %v1829
        %v4252 = vpop.f32.mrf.mxu0
        %v4253 = vadd.f32 %v4224, %v4252
        %4254 = vmatmul.f32.gmra.mxu0 %v1832
        %v4255 = vpop.f32.mrf.mxu0
        %v4256 = vadd.f32 %v4224, %v4255
        %4257 = vmatmul.f32.gmra.mxu0 %v1835
        %v4258 = vpop.f32.mrf.mxu0
        %v4259 = vadd.f32 %v4224, %v4258
        %4260 = vmatmul.f32.gmra.mxu0 %v1838
        %v4261 = vpop.f32.mrf.mxu0
        %v4262 = vadd.f32 %v4224, %v4261
        %4263 = vmatmul.f32.gmra.mxu0 %v1841
        %v4264 = vpop.f32.mrf.mxu0
        %v4265 = vadd.f32 %v4224, %v4264
        %4266 = vdwg.mxu0
        %v4267 = vld [vmem:[#allocation6] sm:$0x1]
        %4269 = vset.pattern.permute.xlu0 96
        %4270 = vperm.xlu0 %4269, %v4244
        %v4271 = vpop.permute.xlu0 %4270
        %4274 = vset.pattern.permute.xlu0 96
        %4275 = vperm.xlu0 %4274, %v4247
        %v4276 = vpop.permute.xlu0 %4275
        %4279 = vset.pattern.permute.xlu0 96
        %4280 = vperm.xlu0 %4279, %v4250
        %v4281 = vpop.permute.xlu0 %4280
        %4284 = vset.pattern.permute.xlu0 96
        %4285 = vperm.xlu0 %4284, %v4253
        %v4286 = vpop.permute.xlu0 %4285
        %4289 = vset.pattern.permute.xlu0 96
        %4290 = vperm.xlu0 %4289, %v4256
        %v4291 = vpop.permute.xlu0 %4290
        %4294 = vset.pattern.permute.xlu0 96
        %4295 = vperm.xlu0 %4294, %v4259
        %v4296 = vpop.permute.xlu0 %4295
        %4299 = vset.pattern.permute.xlu0 96
        %4300 = vperm.xlu0 %4299, %v4262
        %v4301 = vpop.permute.xlu0 %4300
        %4304 = vset.pattern.permute.xlu0 96
        %4305 = vperm.xlu0 %4304, %v4265
        %v4306 = vpop.permute.xlu0 %4305
        %v4308 = vmul.f32 %v1596, %v4271
        %v4309 = vmul.f32 %v1596, %v4276
        %v4310 = vmul.f32 %v1596, %v4281
        %v4311 = vmul.f32 %v1596, %v4286
        %v4312 = vmul.f32 %v1596, %v4291
        %v4313 = vmul.f32 %v1596, %v4296
        %v4314 = vmul.f32 %v1596, %v4301
        %v4315 = vmul.f32 %v1596, %v4306
        %4316 = vrot.lane.b32.xlu0 %v4244, 96
        %v4317 = vpop.permute.xlu0 %4316
        %v4318 = vsel %vm1607, %v4244, 0
        %v4320 = vsel %vm1607, %v4317, 0
        %4322 = vmatpush.xpose.msra.mxu0 0.0
        %4323 = vmatpush.xpose.msra.mxu0 0.0
        %4324 = vmatpush.xpose.msra.mxu0 0.0
        %4325 = vmatpush.xpose.msra.mxu0 0.0
        %4326 = vmatpush.xpose.msra.mxu0 0.0
        %4327 = vmatpush.xpose.msra.mxu0 0.0
        %4328 = vmatpush.xpose.msra.mxu0 0.0
        %4329 = vmatpush.xpose.msra.mxu0 0.0
        %4330 = vmatpush.xpose.msra.mxu0 0.0
        %4331 = vmatpush.xpose.msra.mxu0 0.0
        %4332 = vmatpush.xpose.msra.mxu0 0.0
        %4333 = vmatpush.xpose.msra.mxu0 0.0
        %4334 = vmatpush.xpose.msra.mxu0 0.0
        %4335 = vmatpush.xpose.msra.mxu0 0.0
        %4336 = vmatpush.xpose.msra.mxu0 0.0
        %4337 = vmatpush.xpose.msra.mxu0 %v4320
        %4338 = vmatmul.f32.gmra.mxu0 %v4318
        %v4339 = vpop.f32.mrf.mxu0
        %v4340 = vadd.f32 %v4308, %v4339
        %4341 = vdwg.mxu0
        %4342 = vrot.lane.b32.xlu0 %v4247, 96
        %v4343 = vpop.permute.xlu0 %4342
        %v4344 = vsel %vm1607, %v4247, 0
        %v4346 = vsel %vm1607, %v4343, 0
        %4348 = vmatpush.xpose.msra.mxu0 0.0
        %4349 = vmatpush.xpose.msra.mxu0 0.0
        %4350 = vmatpush.xpose.msra.mxu0 0.0
        %4351 = vmatpush.xpose.msra.mxu0 0.0
        %4352 = vmatpush.xpose.msra.mxu0 0.0
        %4353 = vmatpush.xpose.msra.mxu0 0.0
        %4354 = vmatpush.xpose.msra.mxu0 0.0
        %4355 = vmatpush.xpose.msra.mxu0 0.0
        %4356 = vmatpush.xpose.msra.mxu0 0.0
        %4357 = vmatpush.xpose.msra.mxu0 0.0
        %4358 = vmatpush.xpose.msra.mxu0 0.0
        %4359 = vmatpush.xpose.msra.mxu0 0.0
        %4360 = vmatpush.xpose.msra.mxu0 0.0
        %4361 = vmatpush.xpose.msra.mxu0 0.0
        %4362 = vmatpush.xpose.msra.mxu0 0.0
        %4363 = vmatpush.xpose.msra.mxu0 %v4346
        %4364 = vmatmul.f32.gmra.mxu0 %v4344
        %v4365 = vpop.f32.mrf.mxu0
        %v4366 = vadd.f32 %v4309, %v4365
        %4367 = vdwg.mxu0
        %4368 = vrot.lane.b32.xlu0 %v4250, 96
        %v4369 = vpop.permute.xlu0 %4368
        %v4370 = vsel %vm1607, %v4250, 0
        %v4372 = vsel %vm1607, %v4369, 0
        %4374 = vmatpush.xpose.msra.mxu0 0.0
        %4375 = vmatpush.xpose.msra.mxu0 0.0
        %4376 = vmatpush.xpose.msra.mxu0 0.0
        %4377 = vmatpush.xpose.msra.mxu0 0.0
        %4378 = vmatpush.xpose.msra.mxu0 0.0
        %4379 = vmatpush.xpose.msra.mxu0 0.0
        %4380 = vmatpush.xpose.msra.mxu0 0.0
        %4381 = vmatpush.xpose.msra.mxu0 0.0
        %4382 = vmatpush.xpose.msra.mxu0 0.0
        %4383 = vmatpush.xpose.msra.mxu0 0.0
        %4384 = vmatpush.xpose.msra.mxu0 0.0
        %4385 = vmatpush.xpose.msra.mxu0 0.0
        %4386 = vmatpush.xpose.msra.mxu0 0.0
        %4387 = vmatpush.xpose.msra.mxu0 0.0
        %4388 = vmatpush.xpose.msra.mxu0 0.0
        %4389 = vmatpush.xpose.msra.mxu0 %v4372
        %4390 = vmatmul.f32.gmra.mxu0 %v4370
        %v4391 = vpop.f32.mrf.mxu0
        %v4392 = vadd.f32 %v4310, %v4391
        %4393 = vdwg.mxu0
        %4394 = vrot.lane.b32.xlu0 %v4253, 96
        %v4395 = vpop.permute.xlu0 %4394
        %v4396 = vsel %vm1607, %v4253, 0
        %v4398 = vsel %vm1607, %v4395, 0
        %4400 = vmatpush.xpose.msra.mxu0 0.0
        %4401 = vmatpush.xpose.msra.mxu0 0.0
        %4402 = vmatpush.xpose.msra.mxu0 0.0
        %4403 = vmatpush.xpose.msra.mxu0 0.0
        %4404 = vmatpush.xpose.msra.mxu0 0.0
        %4405 = vmatpush.xpose.msra.mxu0 0.0
        %4406 = vmatpush.xpose.msra.mxu0 0.0
        %4407 = vmatpush.xpose.msra.mxu0 0.0
        %4408 = vmatpush.xpose.msra.mxu0 0.0
        %4409 = vmatpush.xpose.msra.mxu0 0.0
        %4410 = vmatpush.xpose.msra.mxu0 0.0
        %4411 = vmatpush.xpose.msra.mxu0 0.0
        %4412 = vmatpush.xpose.msra.mxu0 0.0
        %4413 = vmatpush.xpose.msra.mxu0 0.0
        %4414 = vmatpush.xpose.msra.mxu0 0.0
        %4415 = vmatpush.xpose.msra.mxu0 %v4398
        %4416 = vmatmul.f32.gmra.mxu0 %v4396
        %v4417 = vpop.f32.mrf.mxu0
        %v4418 = vadd.f32 %v4311, %v4417
        %4419 = vdwg.mxu0
        %4420 = vrot.lane.b32.xlu0 %v4256, 96
        %v4421 = vpop.permute.xlu0 %4420
        %v4422 = vsel %vm1607, %v4256, 0
        %v4424 = vsel %vm1607, %v4421, 0
        %4426 = vmatpush.xpose.msra.mxu0 0.0
        %4427 = vmatpush.xpose.msra.mxu0 0.0
        %4428 = vmatpush.xpose.msra.mxu0 0.0
        %4429 = vmatpush.xpose.msra.mxu0 0.0
        %4430 = vmatpush.xpose.msra.mxu0 0.0
        %4431 = vmatpush.xpose.msra.mxu0 0.0
        %4432 = vmatpush.xpose.msra.mxu0 0.0
        %4433 = vmatpush.xpose.msra.mxu0 0.0
        %4434 = vmatpush.xpose.msra.mxu0 0.0
        %4435 = vmatpush.xpose.msra.mxu0 0.0
        %4436 = vmatpush.xpose.msra.mxu0 0.0
        %4437 = vmatpush.xpose.msra.mxu0 0.0
        %4438 = vmatpush.xpose.msra.mxu0 0.0
        %4439 = vmatpush.xpose.msra.mxu0 0.0
        %4440 = vmatpush.xpose.msra.mxu0 0.0
        %4441 = vmatpush.xpose.msra.mxu0 %v4424
        %4442 = vmatmul.f32.gmra.mxu0 %v4422
        %v4443 = vpop.f32.mrf.mxu0
        %v4444 = vadd.f32 %v4312, %v4443
        %4445 = vdwg.mxu0
        %4446 = vrot.lane.b32.xlu0 %v4259, 96
        %v4447 = vpop.permute.xlu0 %4446
        %v4448 = vsel %vm1607, %v4259, 0
        %v4450 = vsel %vm1607, %v4447, 0
        %4452 = vmatpush.xpose.msra.mxu0 0.0
        %4453 = vmatpush.xpose.msra.mxu0 0.0
        %4454 = vmatpush.xpose.msra.mxu0 0.0
        %4455 = vmatpush.xpose.msra.mxu0 0.0
        %4456 = vmatpush.xpose.msra.mxu0 0.0
        %4457 = vmatpush.xpose.msra.mxu0 0.0
        %4458 = vmatpush.xpose.msra.mxu0 0.0
        %4459 = vmatpush.xpose.msra.mxu0 0.0
        %4460 = vmatpush.xpose.msra.mxu0 0.0
        %4461 = vmatpush.xpose.msra.mxu0 0.0
        %4462 = vmatpush.xpose.msra.mxu0 0.0
        %4463 = vmatpush.xpose.msra.mxu0 0.0
        %4464 = vmatpush.xpose.msra.mxu0 0.0
        %4465 = vmatpush.xpose.msra.mxu0 0.0
        %4466 = vmatpush.xpose.msra.mxu0 0.0
        %4467 = vmatpush.xpose.msra.mxu0 %v4450
        %4468 = vmatmul.f32.gmra.mxu0 %v4448
        %v4469 = vpop.f32.mrf.mxu0
        %v4470 = vadd.f32 %v4313, %v4469
        %4471 = vdwg.mxu0
        %4472 = vrot.lane.b32.xlu0 %v4262, 96
        %v4473 = vpop.permute.xlu0 %4472
        %v4474 = vsel %vm1607, %v4262, 0
        %v4476 = vsel %vm1607, %v4473, 0
        %4478 = vmatpush.xpose.msra.mxu0 0.0
        %4479 = vmatpush.xpose.msra.mxu0 0.0
        %4480 = vmatpush.xpose.msra.mxu0 0.0
        %4481 = vmatpush.xpose.msra.mxu0 0.0
        %4482 = vmatpush.xpose.msra.mxu0 0.0
        %4483 = vmatpush.xpose.msra.mxu0 0.0
        %4484 = vmatpush.xpose.msra.mxu0 0.0
        %4485 = vmatpush.xpose.msra.mxu0 0.0
        %4486 = vmatpush.xpose.msra.mxu0 0.0
        %4487 = vmatpush.xpose.msra.mxu0 0.0
        %4488 = vmatpush.xpose.msra.mxu0 0.0
        %4489 = vmatpush.xpose.msra.mxu0 0.0
        %4490 = vmatpush.xpose.msra.mxu0 0.0
        %4491 = vmatpush.xpose.msra.mxu0 0.0
        %4492 = vmatpush.xpose.msra.mxu0 0.0
        %4493 = vmatpush.xpose.msra.mxu0 %v4476
        %4494 = vmatmul.f32.gmra.mxu0 %v4474
        %v4495 = vpop.f32.mrf.mxu0
        %v4496 = vadd.f32 %v4314, %v4495
        %4497 = vdwg.mxu0
        %4498 = vrot.lane.b32.xlu0 %v4265, 96
        %v4499 = vpop.permute.xlu0 %4498
        %v4500 = vsel %vm1607, %v4265, 0
        %v4502 = vsel %vm1607, %v4499, 0
        %4504 = vmatpush.xpose.msra.mxu0 0.0
        %4505 = vmatpush.xpose.msra.mxu0 0.0
        %4506 = vmatpush.xpose.msra.mxu0 0.0
        %4507 = vmatpush.xpose.msra.mxu0 0.0
        %4508 = vmatpush.xpose.msra.mxu0 0.0
        %4509 = vmatpush.xpose.msra.mxu0 0.0
        %4510 = vmatpush.xpose.msra.mxu0 0.0
        %4511 = vmatpush.xpose.msra.mxu0 0.0
        %4512 = vmatpush.xpose.msra.mxu0 0.0
        %4513 = vmatpush.xpose.msra.mxu0 0.0
        %4514 = vmatpush.xpose.msra.mxu0 0.0
        %4515 = vmatpush.xpose.msra.mxu0 0.0
        %4516 = vmatpush.xpose.msra.mxu0 0.0
        %4517 = vmatpush.xpose.msra.mxu0 0.0
        %4518 = vmatpush.xpose.msra.mxu0 0.0
        %4519 = vmatpush.xpose.msra.mxu0 %v4502
        %4520 = vmatmul.f32.gmra.mxu0 %v4500
        %v4521 = vpop.f32.mrf.mxu0
        %v4522 = vadd.f32 %v4315, %v4521
        %4523 = vdwg.mxu0
        %v4524 = vmul.f32 %v4340, 0.17677669
        %v4525 = vmul.f32 %v4366, 0.17677669
        %v4526 = vmul.f32 %v4392, 0.17677669
        %v4527 = vmul.f32 %v4418, 0.17677669
        %v4528 = vmul.f32 %v4444, 0.17677669
        %v4529 = vmul.f32 %v4470, 0.17677669
        %v4530 = vmul.f32 %v4496, 0.17677669
        %v4531 = vmul.f32 %v4522, 0.17677669
        %v4532 = vadd.f32 %v4524, %v1598
        %v4533 = vadd.f32 %v4525, %v1598
        %v4534 = vadd.f32 %v4526, %v1598
        %v4535 = vadd.f32 %v4527, %v1598
        %v4536 = vadd.f32 %v4528, %v1598
        %v4537 = vadd.f32 %v4529, %v1598
        %v4538 = vadd.f32 %v4530, %v1598
        %v4539 = vadd.f32 %v4531, %v1598
        %v4540 = vsel %vm882, %v4532, -inf
        %4541 = vmax.xlane.f32.xlu0 %v4540
        %v4542 = vpop.xlane.xlu0 %4541
        %v4543 = vsel %vm882, %v4533, -inf
        %4544 = vmax.xlane.f32.xlu0 %v4543
        %v4545 = vpop.xlane.xlu0 %4544
        %v4546 = vsel %vm882, %v4534, -inf
        %4547 = vmax.xlane.f32.xlu0 %v4546
        %v4548 = vpop.xlane.xlu0 %4547
        %v4549 = vsel %vm882, %v4535, -inf
        %4550 = vmax.xlane.f32.xlu0 %v4549
        %v4551 = vpop.xlane.xlu0 %4550
        %v4552 = vsel %vm882, %v4536, -inf
        %4553 = vmax.xlane.f32.xlu0 %v4552
        %v4554 = vpop.xlane.xlu0 %4553
        %v4555 = vsel %vm882, %v4537, -inf
        %4556 = vmax.xlane.f32.xlu0 %v4555
        %v4557 = vpop.xlane.xlu0 %4556
        %v4558 = vsel %vm882, %v4538, -inf
        %4559 = vmax.xlane.f32.xlu0 %v4558
        %v4560 = vpop.xlane.xlu0 %4559
        %v4561 = vsel %vm882, %v4539, -inf
        %4562 = vmax.xlane.f32.xlu0 %v4561
        %v4563 = vpop.xlane.xlu0 %4562
        %v4564 = vsub.f32 %v4532, %v4542
        %v4565 = vsub.f32 %v4533, %v4545
        %v4566 = vsub.f32 %v4534, %v4548
        %v4567 = vsub.f32 %v4535, %v4551
        %v4568 = vsub.f32 %v4536, %v4554
        %v4569 = vsub.f32 %v4537, %v4557
        %v4570 = vsub.f32 %v4538, %v4560
        %v4571 = vsub.f32 %v4539, %v4563
        %v4572 = vmul.f32 %v4564, 1.442695
        %v4573 = vpow.pop %v4572
        %v4574 = vmul.f32 %v4565, 1.442695
        %v4575 = vpow.pop %v4574
        %v4576 = vmul.f32 %v4566, 1.442695
        %v4577 = vpow.pop %v4576
        %v4578 = vmul.f32 %v4567, 1.442695
        %v4579 = vpow.pop %v4578
        %v4580 = vmul.f32 %v4568, 1.442695
        %v4581 = vpow.pop %v4580
        %v4582 = vmul.f32 %v4569, 1.442695
        %v4583 = vpow.pop %v4582
        %v4584 = vmul.f32 %v4570, 1.442695
        %v4585 = vpow.pop %v4584
        %v4586 = vmul.f32 %v4571, 1.442695
        %v4587 = vpow.pop %v4586
        %v4588 = vsel %vm882, %v4573, 0.0
        %4589 = vadd.xlane.f32.xlu0 %v4588
        %v4590 = vpop.xlane.xlu0 %4589
        %v4591 = vsel %vm882, %v4575, 0.0
        %4592 = vadd.xlane.f32.xlu0 %v4591
        %v4593 = vpop.xlane.xlu0 %4592
        %v4594 = vsel %vm882, %v4577, 0.0
        %4595 = vadd.xlane.f32.xlu0 %v4594
        %v4596 = vpop.xlane.xlu0 %4595
        %v4597 = vsel %vm882, %v4579, 0.0
        %4598 = vadd.xlane.f32.xlu0 %v4597
        %v4599 = vpop.xlane.xlu0 %4598
        %v4600 = vsel %vm882, %v4581, 0.0
        %4601 = vadd.xlane.f32.xlu0 %v4600
        %v4602 = vpop.xlane.xlu0 %4601
        %v4603 = vsel %vm882, %v4583, 0.0
        %4604 = vadd.xlane.f32.xlu0 %v4603
        %v4605 = vpop.xlane.xlu0 %4604
        %v4606 = vsel %vm882, %v4585, 0.0
        %4607 = vadd.xlane.f32.xlu0 %v4606
        %v4608 = vpop.xlane.xlu0 %4607
        %v4609 = vsel %vm882, %v4587, 0.0
        %4610 = vadd.xlane.f32.xlu0 %v4609
        %v4611 = vpop.xlane.xlu0 %4610
        %v4612 = vrcp.pop %v4590
        %v4613 = vmul.f32 %v4590, %v4612
        %v4614 = vsub.f32 1.0, %v4613
        %v4615 = vmul.f32 %v4612, %v4614
        %v4616 = vadd.f32 %v4612, %v4615
        %vm4617 = vweird.f32 %v4590
        %vm4618 = vweird.f32 %v4612
        %vm4619 = vmor %vm4617, %vm4618
        %v4620 = vsel %vm4619, %v4612, %v4616
        %v4621 = vand.u32 2147483647, %v4590
        %vm4622 = vcmp.eq.f32.partialorder %v4621, 8.507059e+37
        %v4623 = vand.u32 %v4590, 2147483648
        %v4624 = vor.u32 1.1754944e-38, %v4623
        %v4625 = vsel %vm4622, %v4624, %v4620
        %v4626 = vmul.f32 %v4573, %v4625
        %v4627 = vrcp.pop %v4593
        %v4628 = vmul.f32 %v4593, %v4627
        %v4629 = vsub.f32 1.0, %v4628
        %v4630 = vmul.f32 %v4627, %v4629
        %v4631 = vadd.f32 %v4627, %v4630
        %vm4632 = vweird.f32 %v4593
        %vm4633 = vweird.f32 %v4627
        %vm4634 = vmor %vm4632, %vm4633
        %v4635 = vsel %vm4634, %v4627, %v4631
        %v4636 = vand.u32 2147483647, %v4593
        %vm4637 = vcmp.eq.f32.partialorder %v4636, 8.507059e+37
        %v4638 = vand.u32 %v4593, 2147483648
        %v4639 = vor.u32 1.1754944e-38, %v4638
        %v4640 = vsel %vm4637, %v4639, %v4635
        %v4641 = vmul.f32 %v4575, %v4640
        %v4642 = vrcp.pop %v4596
        %v4643 = vmul.f32 %v4596, %v4642
        %v4644 = vsub.f32 1.0, %v4643
        %v4645 = vmul.f32 %v4642, %v4644
        %v4646 = vadd.f32 %v4642, %v4645
        %vm4647 = vweird.f32 %v4596
        %vm4648 = vweird.f32 %v4642
        %vm4649 = vmor %vm4647, %vm4648
        %v4650 = vsel %vm4649, %v4642, %v4646
        %v4651 = vand.u32 2147483647, %v4596
        %vm4652 = vcmp.eq.f32.partialorder %v4651, 8.507059e+37
        %v4653 = vand.u32 %v4596, 2147483648
        %v4654 = vor.u32 1.1754944e-38, %v4653
        %v4655 = vsel %vm4652, %v4654, %v4650
        %v4656 = vmul.f32 %v4577, %v4655
        %v4657 = vrcp.pop %v4599
        %v4658 = vmul.f32 %v4599, %v4657
        %v4659 = vsub.f32 1.0, %v4658
        %v4660 = vmul.f32 %v4657, %v4659
        %v4661 = vadd.f32 %v4657, %v4660
        %vm4662 = vweird.f32 %v4599
        %vm4663 = vweird.f32 %v4657
        %vm4664 = vmor %vm4662, %vm4663
        %v4665 = vsel %vm4664, %v4657, %v4661
        %v4666 = vand.u32 2147483647, %v4599
        %vm4667 = vcmp.eq.f32.partialorder %v4666, 8.507059e+37
        %v4668 = vand.u32 %v4599, 2147483648
        %v4669 = vor.u32 1.1754944e-38, %v4668
        %v4670 = vsel %vm4667, %v4669, %v4665
        %v4671 = vmul.f32 %v4579, %v4670
        %v4672 = vrcp.pop %v4602
        %v4673 = vmul.f32 %v4602, %v4672
        %v4674 = vsub.f32 1.0, %v4673
        %v4675 = vmul.f32 %v4672, %v4674
        %v4676 = vadd.f32 %v4672, %v4675
        %vm4677 = vweird.f32 %v4602
        %vm4678 = vweird.f32 %v4672
        %vm4679 = vmor %vm4677, %vm4678
        %v4680 = vsel %vm4679, %v4672, %v4676
        %v4681 = vand.u32 2147483647, %v4602
        %vm4682 = vcmp.eq.f32.partialorder %v4681, 8.507059e+37
        %v4683 = vand.u32 %v4602, 2147483648
        %v4684 = vor.u32 1.1754944e-38, %v4683
        %v4685 = vsel %vm4682, %v4684, %v4680
        %v4686 = vmul.f32 %v4581, %v4685
        %v4687 = vrcp.pop %v4605
        %v4688 = vmul.f32 %v4605, %v4687
        %v4689 = vsub.f32 1.0, %v4688
        %v4690 = vmul.f32 %v4687, %v4689
        %v4691 = vadd.f32 %v4687, %v4690
        %vm4692 = vweird.f32 %v4605
        %vm4693 = vweird.f32 %v4687
        %vm4694 = vmor %vm4692, %vm4693
        %v4695 = vsel %vm4694, %v4687, %v4691
        %v4696 = vand.u32 2147483647, %v4605
        %vm4697 = vcmp.eq.f32.partialorder %v4696, 8.507059e+37
        %v4698 = vand.u32 %v4605, 2147483648
        %v4699 = vor.u32 1.1754944e-38, %v4698
        %v4700 = vsel %vm4697, %v4699, %v4695
        %v4701 = vmul.f32 %v4583, %v4700
        %v4702 = vrcp.pop %v4608
        %v4703 = vmul.f32 %v4608, %v4702
        %v4704 = vsub.f32 1.0, %v4703
        %v4705 = vmul.f32 %v4702, %v4704
        %v4706 = vadd.f32 %v4702, %v4705
        %vm4707 = vweird.f32 %v4608
        %vm4708 = vweird.f32 %v4702
        %vm4709 = vmor %vm4707, %vm4708
        %v4710 = vsel %vm4709, %v4702, %v4706
        %v4711 = vand.u32 2147483647, %v4608
        %vm4712 = vcmp.eq.f32.partialorder %v4711, 8.507059e+37
        %v4713 = vand.u32 %v4608, 2147483648
        %v4714 = vor.u32 1.1754944e-38, %v4713
        %v4715 = vsel %vm4712, %v4714, %v4710
        %v4716 = vmul.f32 %v4585, %v4715
        %v4717 = vrcp.pop %v4611
        %v4718 = vmul.f32 %v4611, %v4717
        %v4719 = vsub.f32 1.0, %v4718
        %v4720 = vmul.f32 %v4717, %v4719
        %v4721 = vadd.f32 %v4717, %v4720
        %vm4722 = vweird.f32 %v4611
        %vm4723 = vweird.f32 %v4717
        %vm4724 = vmor %vm4722, %vm4723
        %v4725 = vsel %vm4724, %v4717, %v4721
        %v4726 = vand.u32 2147483647, %v4611
        %vm4727 = vcmp.eq.f32.partialorder %v4726, 8.507059e+37
        %v4728 = vand.u32 %v4611, 2147483648
        %v4729 = vor.u32 1.1754944e-38, %v4728
        %v4730 = vsel %vm4727, %v4729, %v4725
        %v4731 = vmul.f32 %v4587, %v4730
        %v4732 = vmul.f32 %v4626, %v1596
        %v4733 = vmul.f32 %v4641, %v1596
        %v4734 = vmul.f32 %v4656, %v1596
        %v4735 = vmul.f32 %v4671, %v1596
        %v4736 = vmul.f32 %v4686, %v1596
        %v4737 = vmul.f32 %v4701, %v1596
        %v4738 = vmul.f32 %v4716, %v1596
        %v4739 = vmul.f32 %v4731, %v1596
        %v4740 = vsel %vm882, %v4732, 0.0
        %4741 = vadd.xlane.f32.xlu0 %v4740
        %v4742 = vpop.xlane.xlu0 %4741
        %v4743 = vsel %vm882, %v4733, 0.0
        %4744 = vadd.xlane.f32.xlu0 %v4743
        %v4745 = vpop.xlane.xlu0 %4744
        %v4746 = vsel %vm882, %v4734, 0.0
        %4747 = vadd.xlane.f32.xlu0 %v4746
        %v4748 = vpop.xlane.xlu0 %4747
        %v4749 = vsel %vm882, %v4735, 0.0
        %4750 = vadd.xlane.f32.xlu0 %v4749
        %v4751 = vpop.xlane.xlu0 %4750
        %v4752 = vsel %vm882, %v4736, 0.0
        %4753 = vadd.xlane.f32.xlu0 %v4752
        %v4754 = vpop.xlane.xlu0 %4753
        %v4755 = vsel %vm882, %v4737, 0.0
        %4756 = vadd.xlane.f32.xlu0 %v4755
        %v4757 = vpop.xlane.xlu0 %4756
        %v4758 = vsel %vm882, %v4738, 0.0
        %4759 = vadd.xlane.f32.xlu0 %v4758
        %v4760 = vpop.xlane.xlu0 %4759
        %v4761 = vsel %vm882, %v4739, 0.0
        %4762 = vadd.xlane.f32.xlu0 %v4761
        %v4763 = vpop.xlane.xlu0 %4762
        %v4765 = vperm.slane %v4267, 0
        %v4767 = vmul.f32 %v4742, %v4765
        %v4768 = vmul.f32 %v4745, %v4765
        %v4769 = vmul.f32 %v4748, %v4765
        %v4770 = vmul.f32 %v4751, %v4765
        %v4771 = vmul.f32 %v4754, %v4765
        %v4772 = vmul.f32 %v4757, %v4765
        %v4773 = vmul.f32 %v4760, %v4765
        %v4774 = vmul.f32 %v4763, %v4765
        %4775 = vrot.lane.b32.xlu0 %v4244, 64
        %v4776 = vpop.permute.xlu0 %4775
        %4779 = vrot.lane.b32.xlu0 %v4767, 32
        %v4780 = vpop.permute.xlu0 %4779
        %v4783 = vsel %vm882, %v4626, 0
        %4785 = vmatpush.msra.mxu0 0.0
        %4786 = vmatpush.msra.mxu0 0.0
        %4787 = vmatpush.msra.mxu0 0.0
        %4788 = vmatpush.msra.mxu0 0.0
        %4789 = vmatpush.msra.mxu0 0.0
        %4790 = vmatpush.msra.mxu0 0.0
        %4791 = vmatpush.msra.mxu0 0.0
        %4792 = vmatpush.msra.mxu0 0.0
        %4793 = vmatpush.msra.mxu0 0.0
        %4794 = vmatpush.msra.mxu0 0.0
        %4795 = vmatpush.msra.mxu0 0.0
        %4796 = vmatpush.msra.mxu0 0.0
        %4797 = vmatpush.msra.mxu0 0.0
        %4798 = vmatpush.msra.mxu0 0.0
        %4799 = vmatpush.msra.mxu0 0.0
        %4800 = vmatpush.msra.mxu0 %v4776
        %4801 = vmatmul.f32.gmra.mxu0 %v4783
        %v4802 = vpop.f32.mrf.mxu0
        %v4803 = vadd.f32 %v4780, %v4802
        %4804 = vdwg.mxu0
        %4805 = vrot.lane.b32.xlu0 %v4247, 64
        %v4806 = vpop.permute.xlu0 %4805
        %4809 = vrot.lane.b32.xlu0 %v4768, 32
        %v4810 = vpop.permute.xlu0 %4809
        %v4813 = vsel %vm882, %v4641, 0
        %4815 = vmatpush.msra.mxu0 0.0
        %4816 = vmatpush.msra.mxu0 0.0
        %4817 = vmatpush.msra.mxu0 0.0
        %4818 = vmatpush.msra.mxu0 0.0
        %4819 = vmatpush.msra.mxu0 0.0
        %4820 = vmatpush.msra.mxu0 0.0
        %4821 = vmatpush.msra.mxu0 0.0
        %4822 = vmatpush.msra.mxu0 0.0
        %4823 = vmatpush.msra.mxu0 0.0
        %4824 = vmatpush.msra.mxu0 0.0
        %4825 = vmatpush.msra.mxu0 0.0
        %4826 = vmatpush.msra.mxu0 0.0
        %4827 = vmatpush.msra.mxu0 0.0
        %4828 = vmatpush.msra.mxu0 0.0
        %4829 = vmatpush.msra.mxu0 0.0
        %4830 = vmatpush.msra.mxu0 %v4806
        %4831 = vmatmul.f32.gmra.mxu0 %v4813
        %v4832 = vpop.f32.mrf.mxu0
        %v4833 = vadd.f32 %v4810, %v4832
        %4834 = vdwg.mxu0
        %4835 = vrot.lane.b32.xlu0 %v4250, 64
        %v4836 = vpop.permute.xlu0 %4835
        %4839 = vrot.lane.b32.xlu0 %v4769, 32
        %v4840 = vpop.permute.xlu0 %4839
        %v4843 = vsel %vm882, %v4656, 0
        %4845 = vmatpush.msra.mxu0 0.0
        %4846 = vmatpush.msra.mxu0 0.0
        %4847 = vmatpush.msra.mxu0 0.0
        %4848 = vmatpush.msra.mxu0 0.0
        %4849 = vmatpush.msra.mxu0 0.0
        %4850 = vmatpush.msra.mxu0 0.0
        %4851 = vmatpush.msra.mxu0 0.0
        %4852 = vmatpush.msra.mxu0 0.0
        %4853 = vmatpush.msra.mxu0 0.0
        %4854 = vmatpush.msra.mxu0 0.0
        %4855 = vmatpush.msra.mxu0 0.0
        %4856 = vmatpush.msra.mxu0 0.0
        %4857 = vmatpush.msra.mxu0 0.0
        %4858 = vmatpush.msra.mxu0 0.0
        %4859 = vmatpush.msra.mxu0 0.0
        %4860 = vmatpush.msra.mxu0 %v4836
        %4861 = vmatmul.f32.gmra.mxu0 %v4843
        %v4862 = vpop.f32.mrf.mxu0
        %v4863 = vadd.f32 %v4840, %v4862
        %4864 = vdwg.mxu0
        %4865 = vrot.lane.b32.xlu0 %v4253, 64
        %v4866 = vpop.permute.xlu0 %4865
        %4869 = vrot.lane.b32.xlu0 %v4770, 32
        %v4870 = vpop.permute.xlu0 %4869
        %v4873 = vsel %vm882, %v4671, 0
        %4875 = vmatpush.msra.mxu0 0.0
        %4876 = vmatpush.msra.mxu0 0.0
        %4877 = vmatpush.msra.mxu0 0.0
        %4878 = vmatpush.msra.mxu0 0.0
        %4879 = vmatpush.msra.mxu0 0.0
        %4880 = vmatpush.msra.mxu0 0.0
        %4881 = vmatpush.msra.mxu0 0.0
        %4882 = vmatpush.msra.mxu0 0.0
        %4883 = vmatpush.msra.mxu0 0.0
        %4884 = vmatpush.msra.mxu0 0.0
        %4885 = vmatpush.msra.mxu0 0.0
        %4886 = vmatpush.msra.mxu0 0.0
        %4887 = vmatpush.msra.mxu0 0.0
        %4888 = vmatpush.msra.mxu0 0.0
        %4889 = vmatpush.msra.mxu0 0.0
        %4890 = vmatpush.msra.mxu0 %v4866
        %4891 = vmatmul.f32.gmra.mxu0 %v4873
        %v4892 = vpop.f32.mrf.mxu0
        %v4893 = vadd.f32 %v4870, %v4892
        %4894 = vdwg.mxu0
        %4895 = vrot.lane.b32.xlu0 %v4256, 64
        %v4896 = vpop.permute.xlu0 %4895
        %4899 = vrot.lane.b32.xlu0 %v4771, 32
        %v4900 = vpop.permute.xlu0 %4899
        %v4903 = vsel %vm882, %v4686, 0
        %4905 = vmatpush.msra.mxu0 0.0
        %4906 = vmatpush.msra.mxu0 0.0
        %4907 = vmatpush.msra.mxu0 0.0
        %4908 = vmatpush.msra.mxu0 0.0
        %4909 = vmatpush.msra.mxu0 0.0
        %4910 = vmatpush.msra.mxu0 0.0
        %4911 = vmatpush.msra.mxu0 0.0
        %4912 = vmatpush.msra.mxu0 0.0
        %4913 = vmatpush.msra.mxu0 0.0
        %4914 = vmatpush.msra.mxu0 0.0
        %4915 = vmatpush.msra.mxu0 0.0
        %4916 = vmatpush.msra.mxu0 0.0
        %4917 = vmatpush.msra.mxu0 0.0
        %4918 = vmatpush.msra.mxu0 0.0
        %4919 = vmatpush.msra.mxu0 0.0
        %4920 = vmatpush.msra.mxu0 %v4896
        %4921 = vmatmul.f32.gmra.mxu0 %v4903
        %v4922 = vpop.f32.mrf.mxu0
        %v4923 = vadd.f32 %v4900, %v4922
        %4924 = vdwg.mxu0
        %4925 = vrot.lane.b32.xlu0 %v4259, 64
        %v4926 = vpop.permute.xlu0 %4925
        %4929 = vrot.lane.b32.xlu0 %v4772, 32
        %v4930 = vpop.permute.xlu0 %4929
        %v4933 = vsel %vm882, %v4701, 0
        %4935 = vmatpush.msra.mxu0 0.0
        %4936 = vmatpush.msra.mxu0 0.0
        %4937 = vmatpush.msra.mxu0 0.0
        %4938 = vmatpush.msra.mxu0 0.0
        %4939 = vmatpush.msra.mxu0 0.0
        %4940 = vmatpush.msra.mxu0 0.0
        %4941 = vmatpush.msra.mxu0 0.0
        %4942 = vmatpush.msra.mxu0 0.0
        %4943 = vmatpush.msra.mxu0 0.0
        %4944 = vmatpush.msra.mxu0 0.0
        %4945 = vmatpush.msra.mxu0 0.0
        %4946 = vmatpush.msra.mxu0 0.0
        %4947 = vmatpush.msra.mxu0 0.0
        %4948 = vmatpush.msra.mxu0 0.0
        %4949 = vmatpush.msra.mxu0 0.0
        %4950 = vmatpush.msra.mxu0 %v4926
        %4951 = vmatmul.f32.gmra.mxu0 %v4933
        %v4952 = vpop.f32.mrf.mxu0
        %v4953 = vadd.f32 %v4930, %v4952
        %4954 = vdwg.mxu0
        %4955 = vrot.lane.b32.xlu0 %v4262, 64
        %v4956 = vpop.permute.xlu0 %4955
        %4959 = vrot.lane.b32.xlu0 %v4773, 32
        %v4960 = vpop.permute.xlu0 %4959
        %v4963 = vsel %vm882, %v4716, 0
        %4965 = vmatpush.msra.mxu0 0.0
        %4966 = vmatpush.msra.mxu0 0.0
        %4967 = vmatpush.msra.mxu0 0.0
        %4968 = vmatpush.msra.mxu0 0.0
        %4969 = vmatpush.msra.mxu0 0.0
        %4970 = vmatpush.msra.mxu0 0.0
        %4971 = vmatpush.msra.mxu0 0.0
        %4972 = vmatpush.msra.mxu0 0.0
        %4973 = vmatpush.msra.mxu0 0.0
        %4974 = vmatpush.msra.mxu0 0.0
        %4975 = vmatpush.msra.mxu0 0.0
        %4976 = vmatpush.msra.mxu0 0.0
        %4977 = vmatpush.msra.mxu0 0.0
        %4978 = vmatpush.msra.mxu0 0.0
        %4979 = vmatpush.msra.mxu0 0.0
        %4980 = vmatpush.msra.mxu0 %v4956
        %4981 = vmatmul.f32.gmra.mxu0 %v4963
        %v4982 = vpop.f32.mrf.mxu0
        %v4983 = vadd.f32 %v4960, %v4982
        %4984 = vdwg.mxu0
        %4985 = vrot.lane.b32.xlu0 %v4265, 64
        %v4986 = vpop.permute.xlu0 %4985
        %4989 = vrot.lane.b32.xlu0 %v4774, 32
        %v4990 = vpop.permute.xlu0 %4989
        %v4993 = vsel %vm882, %v4731, 0
        %4995 = vmatpush.msra.mxu0 0.0
        %4996 = vmatpush.msra.mxu0 0.0
        %4997 = vmatpush.msra.mxu0 0.0
        %4998 = vmatpush.msra.mxu0 0.0
        %4999 = vmatpush.msra.mxu0 0.0
        %5000 = vmatpush.msra.mxu0 0.0
        %5001 = vmatpush.msra.mxu0 0.0
        %5002 = vmatpush.msra.mxu0 0.0
        %5003 = vmatpush.msra.mxu0 0.0
        %5004 = vmatpush.msra.mxu0 0.0
        %5005 = vmatpush.msra.mxu0 0.0
        %5006 = vmatpush.msra.mxu0 0.0
        %5007 = vmatpush.msra.mxu0 0.0
        %5008 = vmatpush.msra.mxu0 0.0
        %5009 = vmatpush.msra.mxu0 0.0
        %5010 = vmatpush.msra.mxu0 %v4986
        %5011 = vmatmul.f32.gmra.mxu0 %v4993
        %v5012 = vpop.f32.mrf.mxu0
        %v5013 = vadd.f32 %v4990, %v5012
        %5014 = vdwg.mxu0
        %v5015 = vadd.f32 %v4210, %v4803
        %v5016 = vadd.f32 %v4211, %v4833
        %v5017 = vadd.f32 %v4212, %v4863
        %v5018 = vadd.f32 %v4213, %v4893
        %v5019 = vadd.f32 %v4214, %v4923
        %v5020 = vadd.f32 %v4215, %v4953
        %v5021 = vadd.f32 %v4216, %v4983
        %v5022 = vadd.f32 %v4217, %v5013
        %v5023 = vld [vmem:[%s5 + $0x20] sm:$0xff]
        %v5024 = vld [vmem:[%s5 + $0x48] sm:$0xff]
        %v5025 = vld [vmem:[%s5 + $0x70] sm:$0xff]
        %v5026 = vld [vmem:[%s5 + $0x98] sm:$0xff]
        %v5027 = vld [vmem:[%s6 + $0x4] sm:$0x1]
        %v5029 = vperm.slane %v5027, 0
        %5031 = vmatpush.msra.mxu0 0.0
        %5032 = vmatpush.msra.mxu0 0.0
        %5033 = vmatpush.msra.mxu0 0.0
        %5034 = vmatpush.msra.mxu0 0.0
        %5035 = vmatpush.msra.mxu0 0.0
        %5036 = vmatpush.msra.mxu0 0.0
        %5037 = vmatpush.msra.mxu0 0.0
        %5038 = vmatpush.msra.mxu0 0.0
        %5039 = vmatpush.msra.mxu0 0.0
        %5040 = vmatpush.msra.mxu0 0.0
        %5041 = vmatpush.msra.mxu0 0.0
        %5042 = vmatpush.msra.mxu0 0.0
        %5043 = vmatpush.msra.mxu0 %v5026
        %5044 = vmatpush.msra.mxu0 %v5025
        %5045 = vmatpush.msra.mxu0 %v5024
        %5046 = vmatpush.msra.mxu0 %v5023
        %5047 = vmatmul.f32.gmra.mxu0 %v1820
        %v5048 = vpop.f32.mrf.mxu0
        %v5049 = vadd.f32 %v5029, %v5048
        %5050 = vmatmul.f32.gmra.mxu0 %v1823
        %v5051 = vpop.f32.mrf.mxu0
        %v5052 = vadd.f32 %v5029, %v5051
        %5053 = vmatmul.f32.gmra.mxu0 %v1826
        %v5054 = vpop.f32.mrf.mxu0
        %v5055 = vadd.f32 %v5029, %v5054
        %5056 = vmatmul.f32.gmra.mxu0 %v1829
        %v5057 = vpop.f32.mrf.mxu0
        %v5058 = vadd.f32 %v5029, %v5057
        %5059 = vmatmul.f32.gmra.mxu0 %v1832
        %v5060 = vpop.f32.mrf.mxu0
        %v5061 = vadd.f32 %v5029, %v5060
        %5062 = vmatmul.f32.gmra.mxu0 %v1835
        %v5063 = vpop.f32.mrf.mxu0
        %v5064 = vadd.f32 %v5029, %v5063
        %5065 = vmatmul.f32.gmra.mxu0 %v1838
        %v5066 = vpop.f32.mrf.mxu0
        %v5067 = vadd.f32 %v5029, %v5066
        %5068 = vmatmul.f32.gmra.mxu0 %v1841
        %v5069 = vpop.f32.mrf.mxu0
        %v5070 = vadd.f32 %v5029, %v5069
        %5071 = vdwg.mxu0
        %v5072 = vmul.f32 %v5015, 0.25
        %v5073 = vmul.f32 %v5016, 0.25
        %v5074 = vmul.f32 %v5017, 0.25
        %v5075 = vmul.f32 %v5018, 0.25
        %v5076 = vmul.f32 %v5019, 0.25
        %v5077 = vmul.f32 %v5020, 0.25
        %v5078 = vmul.f32 %v5021, 0.25
        %v5079 = vmul.f32 %v5022, 0.25
        %v5080 = vadd.f32 %v5072, %v5049
        %v5081 = vadd.f32 %v5073, %v5052
        %v5082 = vadd.f32 %v5074, %v5055
        %v5083 = vadd.f32 %v5075, %v5058
        %v5084 = vadd.f32 %v5076, %v5061
        %v5085 = vadd.f32 %v5077, %v5064
        %v5086 = vadd.f32 %v5078, %v5067
        %v5087 = vadd.f32 %v5079, %v5070
        %v5088 = vadd.f32 %v1599, %v5080
        %v5089 = vadd.f32 %v1600, %v5081
        %v5090 = vadd.f32 %v1601, %v5082
        %v5091 = vadd.f32 %v1602, %v5083
        %v5092 = vadd.f32 %v1603, %v5084
        %v5093 = vadd.f32 %v1604, %v5085
        %v5094 = vadd.f32 %v1605, %v5086
        %v5095 = vadd.f32 %v1606, %v5087
        %v5096 = vsel %vm1607, %v5088, 0.0
        %5097 = vadd.xlane.f32.xlu0 %v5096
        %v5098 = vpop.xlane.xlu0 %5097
        %v5099 = vsel %vm1607, %v5089, 0.0
        %5100 = vadd.xlane.f32.xlu0 %v5099
        %v5101 = vpop.xlane.xlu0 %5100
        %v5102 = vsel %vm1607, %v5090, 0.0
        %5103 = vadd.xlane.f32.xlu0 %v5102
        %v5104 = vpop.xlane.xlu0 %5103
        %v5105 = vsel %vm1607, %v5091, 0.0
        %5106 = vadd.xlane.f32.xlu0 %v5105
        %v5107 = vpop.xlane.xlu0 %5106
        %v5108 = vsel %vm1607, %v5092, 0.0
        %5109 = vadd.xlane.f32.xlu0 %v5108
        %v5110 = vpop.xlane.xlu0 %5109
        %v5111 = vsel %vm1607, %v5093, 0.0
        %5112 = vadd.xlane.f32.xlu0 %v5111
        %v5113 = vpop.xlane.xlu0 %5112
        %v5114 = vsel %vm1607, %v5094, 0.0
        %5115 = vadd.xlane.f32.xlu0 %v5114
        %v5116 = vpop.xlane.xlu0 %5115
        %v5117 = vsel %vm1607, %v5095, 0.0
        %5118 = vadd.xlane.f32.xlu0 %v5117
        %v5119 = vpop.xlane.xlu0 %5118
        %v5120 = vrot.slane %v5098, 4
        %v5121 = vadd.f32 %v5098, %v5120
        %v5122 = vrot.slane %v5121, 2
        %v5123 = vadd.f32 %v5121, %v5122
        %v5124 = vrot.slane %v5123, 1
        %v5125 = vadd.f32 %v5123, %v5124
        %v5126 = vrot.slane %v5101, 4
        %v5127 = vadd.f32 %v5101, %v5126
        %v5128 = vrot.slane %v5127, 2
        %v5129 = vadd.f32 %v5127, %v5128
        %v5130 = vrot.slane %v5129, 1
        %v5131 = vadd.f32 %v5129, %v5130
        %v5132 = vrot.slane %v5104, 4
        %v5133 = vadd.f32 %v5104, %v5132
        %v5134 = vrot.slane %v5133, 2
        %v5135 = vadd.f32 %v5133, %v5134
        %v5136 = vrot.slane %v5135, 1
        %v5137 = vadd.f32 %v5135, %v5136
        %v5138 = vrot.slane %v5107, 4
        %v5139 = vadd.f32 %v5107, %v5138
        %v5140 = vrot.slane %v5139, 2
        %v5141 = vadd.f32 %v5139, %v5140
        %v5142 = vrot.slane %v5141, 1
        %v5143 = vadd.f32 %v5141, %v5142
        %v5144 = vrot.slane %v5110, 4
        %v5145 = vadd.f32 %v5110, %v5144
        %v5146 = vrot.slane %v5145, 2
        %v5147 = vadd.f32 %v5145, %v5146
        %v5148 = vrot.slane %v5147, 1
        %v5149 = vadd.f32 %v5147, %v5148
        %v5150 = vrot.slane %v5113, 4
        %v5151 = vadd.f32 %v5113, %v5150
        %v5152 = vrot.slane %v5151, 2
        %v5153 = vadd.f32 %v5151, %v5152
        %v5154 = vrot.slane %v5153, 1
        %v5155 = vadd.f32 %v5153, %v5154
        %v5156 = vrot.slane %v5116, 4
        %v5157 = vadd.f32 %v5116, %v5156
        %v5158 = vrot.slane %v5157, 2
        %v5159 = vadd.f32 %v5157, %v5158
        %v5160 = vrot.slane %v5159, 1
        %v5161 = vadd.f32 %v5159, %v5160
        %v5162 = vrot.slane %v5119, 4
        %v5163 = vadd.f32 %v5119, %v5162
        %v5164 = vrot.slane %v5163, 2
        %v5165 = vadd.f32 %v5163, %v5164
        %v5166 = vrot.slane %v5165, 1
        %v5167 = vadd.f32 %v5165, %v5166
        %v5168 = vmul.f32 %v5125, 0.00390625
        %v5169 = vmul.f32 %v5131, 0.00390625
        %v5170 = vmul.f32 %v5137, 0.00390625
        %v5171 = vmul.f32 %v5143, 0.00390625
        %v5172 = vmul.f32 %v5149, 0.00390625
        %v5173 = vmul.f32 %v5155, 0.00390625
        %v5174 = vmul.f32 %v5161, 0.00390625
        %v5175 = vmul.f32 %v5167, 0.00390625
        %v5176 = vsub.f32 %v5088, %v5168
        %v5177 = vsub.f32 %v5089, %v5169
        %v5178 = vsub.f32 %v5090, %v5170
        %v5179 = vsub.f32 %v5091, %v5171
        %v5180 = vsub.f32 %v5092, %v5172
        %v5181 = vsub.f32 %v5093, %v5173
        %v5182 = vsub.f32 %v5094, %v5174
        %v5183 = vsub.f32 %v5095, %v5175
        %v5184 = vmul.f32 %v5176, %v5176
        %v5185 = vmul.f32 %v5177, %v5177
        %v5186 = vmul.f32 %v5178, %v5178
        %v5187 = vmul.f32 %v5179, %v5179
        %v5188 = vmul.f32 %v5180, %v5180
        %v5189 = vmul.f32 %v5181, %v5181
        %v5190 = vmul.f32 %v5182, %v5182
        %v5191 = vmul.f32 %v5183, %v5183
        %v5192 = vsel %vm1607, %v5184, 0.0
        %5193 = vadd.xlane.f32.xlu0 %v5192
        %v5194 = vpop.xlane.xlu0 %5193
        %v5195 = vsel %vm1607, %v5185, 0.0
        %5196 = vadd.xlane.f32.xlu0 %v5195
        %v5197 = vpop.xlane.xlu0 %5196
        %v5198 = vsel %vm1607, %v5186, 0.0
        %5199 = vadd.xlane.f32.xlu0 %v5198
        %v5200 = vpop.xlane.xlu0 %5199
        %v5201 = vsel %vm1607, %v5187, 0.0
        %5202 = vadd.xlane.f32.xlu0 %v5201
        %v5203 = vpop.xlane.xlu0 %5202
        %v5204 = vsel %vm1607, %v5188, 0.0
        %5205 = vadd.xlane.f32.xlu0 %v5204
        %v5206 = vpop.xlane.xlu0 %5205
        %v5207 = vsel %vm1607, %v5189, 0.0
        %5208 = vadd.xlane.f32.xlu0 %v5207
        %v5209 = vpop.xlane.xlu0 %5208
        %v5210 = vsel %vm1607, %v5190, 0.0
        %5211 = vadd.xlane.f32.xlu0 %v5210
        %v5212 = vpop.xlane.xlu0 %5211
        %v5213 = vsel %vm1607, %v5191, 0.0
        %5214 = vadd.xlane.f32.xlu0 %v5213
        %v5215 = vpop.xlane.xlu0 %5214
        %v5216 = vrot.slane %v5194, 4
        %v5217 = vadd.f32 %v5194, %v5216
        %v5218 = vrot.slane %v5217, 2
        %v5219 = vadd.f32 %v5217, %v5218
        %v5220 = vrot.slane %v5219, 1
        %v5221 = vadd.f32 %v5219, %v5220
        %v5222 = vrot.slane %v5197, 4
        %v5223 = vadd.f32 %v5197, %v5222
        %v5224 = vrot.slane %v5223, 2
        %v5225 = vadd.f32 %v5223, %v5224
        %v5226 = vrot.slane %v5225, 1
        %v5227 = vadd.f32 %v5225, %v5226
        %v5228 = vrot.slane %v5200, 4
        %v5229 = vadd.f32 %v5200, %v5228
        %v5230 = vrot.slane %v5229, 2
        %v5231 = vadd.f32 %v5229, %v5230
        %v5232 = vrot.slane %v5231, 1
        %v5233 = vadd.f32 %v5231, %v5232
        %v5234 = vrot.slane %v5203, 4
        %v5235 = vadd.f32 %v5203, %v5234
        %v5236 = vrot.slane %v5235, 2
        %v5237 = vadd.f32 %v5235, %v5236
        %v5238 = vrot.slane %v5237, 1
        %v5239 = vadd.f32 %v5237, %v5238
        %v5240 = vrot.slane %v5206, 4
        %v5241 = vadd.f32 %v5206, %v5240
        %v5242 = vrot.slane %v5241, 2
        %v5243 = vadd.f32 %v5241, %v5242
        %v5244 = vrot.slane %v5243, 1
        %v5245 = vadd.f32 %v5243, %v5244
        %v5246 = vrot.slane %v5209, 4
        %v5247 = vadd.f32 %v5209, %v5246
        %v5248 = vrot.slane %v5247, 2
        %v5249 = vadd.f32 %v5247, %v5248
        %v5250 = vrot.slane %v5249, 1
        %v5251 = vadd.f32 %v5249, %v5250
        %v5252 = vrot.slane %v5212, 4
        %v5253 = vadd.f32 %v5212, %v5252
        %v5254 = vrot.slane %v5253, 2
        %v5255 = vadd.f32 %v5253, %v5254
        %v5256 = vrot.slane %v5255, 1
        %v5257 = vadd.f32 %v5255, %v5256
        %v5258 = vrot.slane %v5215, 4
        %v5259 = vadd.f32 %v5215, %v5258
        %v5260 = vrot.slane %v5259, 2
        %v5261 = vadd.f32 %v5259, %v5260
        %v5262 = vrot.slane %v5261, 1
        %v5263 = vadd.f32 %v5261, %v5262
        %v5264 = vmul.f32 %v5221, 0.00390625
        %v5265 = vmul.f32 %v5227, 0.00390625
        %v5266 = vmul.f32 %v5233, 0.00390625
        %v5267 = vmul.f32 %v5239, 0.00390625
        %v5268 = vmul.f32 %v5245, 0.00390625
        %v5269 = vmul.f32 %v5251, 0.00390625
        %v5270 = vmul.f32 %v5257, 0.00390625
        %v5271 = vmul.f32 %v5263, 0.00390625
        %v5272 = vadd.f32 %v5264, 1e-05
        %v5273 = vadd.f32 %v5265, 1e-05
        %v5274 = vadd.f32 %v5266, 1e-05
        %v5275 = vadd.f32 %v5267, 1e-05
        %v5276 = vadd.f32 %v5268, 1e-05
        %v5277 = vadd.f32 %v5269, 1e-05
        %v5278 = vadd.f32 %v5270, 1e-05
        %v5279 = vadd.f32 %v5271, 1e-05
        %v5280 = vrsqrt.pop %v5272
        %v5281 = vmul.f32 %v5280, %v5272
        %v5282 = vmul.f32 %v5281, %v5280
        %v5283 = vmul.f32 0.5, %v5282
        %v5284 = vsub.f32 1.5, %v5283
        %v5285 = vmul.f32 %v5280, %v5284
        %vm5286 = vweird.f32 %v5272
        %vm5287 = vweird.f32 %v5280
        %vm5288 = vmor %vm5286, %vm5287
        %v5289 = vsel %vm5288, %v5280, %v5285
        %v5290 = vrsqrt.pop %v5273
        %v5291 = vmul.f32 %v5290, %v5273
        %v5292 = vmul.f32 %v5291, %v5290
        %v5293 = vmul.f32 0.5, %v5292
        %v5294 = vsub.f32 1.5, %v5293
        %v5295 = vmul.f32 %v5290, %v5294
        %vm5296 = vweird.f32 %v5273
        %vm5297 = vweird.f32 %v5290
        %vm5298 = vmor %vm5296, %vm5297
        %v5299 = vsel %vm5298, %v5290, %v5295
        %v5300 = vrsqrt.pop %v5274
        %v5301 = vmul.f32 %v5300, %v5274
        %v5302 = vmul.f32 %v5301, %v5300
        %v5303 = vmul.f32 0.5, %v5302
        %v5304 = vsub.f32 1.5, %v5303
        %v5305 = vmul.f32 %v5300, %v5304
        %vm5306 = vweird.f32 %v5274
        %vm5307 = vweird.f32 %v5300
        %vm5308 = vmor %vm5306, %vm5307
        %v5309 = vsel %vm5308, %v5300, %v5305
        %v5310 = vrsqrt.pop %v5275
        %v5311 = vmul.f32 %v5310, %v5275
        %v5312 = vmul.f32 %v5311, %v5310
        %v5313 = vmul.f32 0.5, %v5312
        %v5314 = vsub.f32 1.5, %v5313
        %v5315 = vmul.f32 %v5310, %v5314
        %vm5316 = vweird.f32 %v5275
        %vm5317 = vweird.f32 %v5310
        %vm5318 = vmor %vm5316, %vm5317
        %v5319 = vsel %vm5318, %v5310, %v5315
        %v5320 = vrsqrt.pop %v5276
        %v5321 = vmul.f32 %v5320, %v5276
        %v5322 = vmul.f32 %v5321, %v5320
        %v5323 = vmul.f32 0.5, %v5322
        %v5324 = vsub.f32 1.5, %v5323
        %v5325 = vmul.f32 %v5320, %v5324
        %vm5326 = vweird.f32 %v5276
        %vm5327 = vweird.f32 %v5320
        %vm5328 = vmor %vm5326, %vm5327
        %v5329 = vsel %vm5328, %v5320, %v5325
        %v5330 = vrsqrt.pop %v5277
        %v5331 = vmul.f32 %v5330, %v5277
        %v5332 = vmul.f32 %v5331, %v5330
        %v5333 = vmul.f32 0.5, %v5332
        %v5334 = vsub.f32 1.5, %v5333
        %v5335 = vmul.f32 %v5330, %v5334
        %vm5336 = vweird.f32 %v5277
        %vm5337 = vweird.f32 %v5330
        %vm5338 = vmor %vm5336, %vm5337
        %v5339 = vsel %vm5338, %v5330, %v5335
        %v5340 = vrsqrt.pop %v5278
        %v5341 = vmul.f32 %v5340, %v5278
        %v5342 = vmul.f32 %v5341, %v5340
        %v5343 = vmul.f32 0.5, %v5342
        %v5344 = vsub.f32 1.5, %v5343
        %v5345 = vmul.f32 %v5340, %v5344
        %vm5346 = vweird.f32 %v5278
        %vm5347 = vweird.f32 %v5340
        %vm5348 = vmor %vm5346, %vm5347
        %v5349 = vsel %vm5348, %v5340, %v5345
        %v5350 = vrsqrt.pop %v5279
        %v5351 = vmul.f32 %v5350, %v5279
        %v5352 = vmul.f32 %v5351, %v5350
        %v5353 = vmul.f32 0.5, %v5352
        %v5354 = vsub.f32 1.5, %v5353
        %v5355 = vmul.f32 %v5350, %v5354
        %vm5356 = vweird.f32 %v5279
        %vm5357 = vweird.f32 %v5350
        %vm5358 = vmor %vm5356, %vm5357
        %v5359 = vsel %vm5358, %v5350, %v5355
        %v5360 = vmul.f32 %v5176, %v5289
        %v5361 = vmul.f32 %v5177, %v5299
        %v5362 = vmul.f32 %v5178, %v5309
        %v5363 = vmul.f32 %v5179, %v5319
        %v5364 = vmul.f32 %v5180, %v5329
        %v5365 = vmul.f32 %v5181, %v5339
        %v5366 = vmul.f32 %v5182, %v5349
        %v5367 = vmul.f32 %v5183, %v5359
        %v5368 = vld [vmem:[#allocation9] sm:$0xff]
        %v5369 = vmul.f32 %v5360, %v5368
        %v5370 = vmul.f32 %v5361, %v5368
        %v5371 = vmul.f32 %v5362, %v5368
        %v5372 = vmul.f32 %v5363, %v5368
        %v5373 = vmul.f32 %v5364, %v5368
        %v5374 = vmul.f32 %v5365, %v5368
        %v5375 = vmul.f32 %v5366, %v5368
        %v5376 = vmul.f32 %v5367, %v5368
        %s5377 = scalar_lea.vmem [#allocation9], 8
        %v5378 = vld [vmem:[%s5377] sm:$0xff]
        %v5379 = vadd.f32 %v5369, %v5378
        %v5380 = vadd.f32 %v5370, %v5378
        %v5381 = vadd.f32 %v5371, %v5378
        %v5382 = vadd.f32 %v5372, %v5378
        %v5383 = vadd.f32 %v5373, %v5378
        %v5384 = vadd.f32 %v5374, %v5378
        %v5385 = vadd.f32 %v5375, %v5378
        %v5386 = vadd.f32 %v5376, %v5378
        %5387 = vst.msk [vmem:[%s468] sm:$0xff] %vm1607, %v5379
        %5388 = vst.msk [vmem:[%s468 + $0x8] sm:$0xff] %vm1607, %v5380
        %5389 = vst.msk [vmem:[%s468 + $0x10] sm:$0xff] %vm1607, %v5381
        %5390 = vst.msk [vmem:[%s468 + $0x18] sm:$0xff] %vm1607, %v5382
        %5391 = vst.msk [vmem:[%s468 + $0x20] sm:$0xff] %vm1607, %v5383
        %5392 = vst.msk [vmem:[%s468 + $0x28] sm:$0xff] %vm1607, %v5384
        %5393 = vst.msk [vmem:[%s468 + $0x30] sm:$0xff] %vm1607, %v5385
        %5394 = vst.msk [vmem:[%s468 + $0x38] sm:$0xff] %vm1607, %v5386
        %p5395 = scmp.lt.s32.totalorder %s25, 1
        %s5396 = scalar_select %p5395, %s25, 1
        %s5397 = smul.addr %s5396, 8
        %s5398 = smul.addr %s5397, 8
        %s5399 = scalar_lea.vmem %s10, %s5398
        // Predicated region
        $region81: #{tpu_custom_call.1} parent=59 // pred_check
          %p5400 = pneg %p268
        $region82: #{tpu_custom_call.1} parent=59 // pred_check_branch
          %5402 = sbr.rel (%p5400) target = $region84
        $region83: #{tpu_custom_call.1} parent=59 // pred_region
          _
        $region84: #{tpu_custom_call.1} parent=59 // pred_fallthru
          _
      $region60: #{tpu_custom_call.1} parent=5 // pred_fallthru
        _
      %p5403 = scmp.le.s32.totalorder 2, %s20
      // Predicated region
      $region85: #{tpu_custom_call.1} parent=5 // pred_check
        %p5404 = pneg %p5403
      $region86: #{tpu_custom_call.1} parent=5 // pred_check_branch
        %5406 = sbr.rel (%p5404) target = $region88
      $region87: #{tpu_custom_call.1} parent=5 // pred_region
        %s5407 = ssub.s32 %s20, 2
        // Predicated region
        $region89: #{tpu_custom_call.1} parent=87 // pred_check
          %p5408 = pneg %p274
        $region90: #{tpu_custom_call.1} parent=87 // pred_check_branch
          %5410 = sbr.rel (%p5408) target = $region92
        $region91: #{tpu_custom_call.1} parent=87 // pred_region
          %p5411 = scmp.lt.s32.totalorder %s26, 1
          %s5412 = scalar_select %p5411, %s26, 1
          %s5413 = smul.addr %s5412, 8
          %s5414 = smul.addr %s5413, 8
          %s5415 = scalar_lea.vmem %s10, %s5414
        $region92: #{tpu_custom_call.1} parent=87 // pred_fallthru
          _
      $region88: #{tpu_custom_call.1} parent=5 // pred_fallthru
        _
    $region6: #{tpu_custom_call.1} parent=1 // loop_footer
      %s24 = sadd.s32 1, %s20
    $region7: #{tpu_custom_call.1} parent=1 // loop_footer_branch
      %19 = sbr.rel target = $region3
    $region8: #{tpu_custom_call.1} parent=1 // loop_exit
      _
    %5416 = vsyncpa [#allocation3], 1
    %s5417 = scalar_lea.sflag [#allocation3], 1
    %5418 = vsyncpa %s5417, 1
    %5419 = vsyncpa [#allocation7], 1
    %5420 = vsyncpa [#allocation10], 1
    %5421 = vsyncpa [#allocation4], 1
    %s5422 = scalar_lea.sflag [#allocation4], 1
    %5423 = vsyncpa %s5422, 1

</llo_original>
